<compile_context>
chip_gen: v7x
topology: tpu7x:2x2x1
jax: 0.10.0
libtpu: 0.0.40
codegen_flags: <defaults>
</compile_context>

<pallas_src>
import jax
import jax.numpy as jnp
from jax import lax
from jax.experimental import pallas as pl
from jax.experimental.pallas import tpu as pltpu

N_LAYERS = 3
N_HEAD = 2
D_MODEL = 64       # hidden_size
D_K = 32           # d_k = d_v = ori_64
D_INNER = 128      # ori_512
PLATFORM = 4       # platform_size
PLATFORM_PAD = 8   # lane-padded platform feature width
LN_EPS = 1e-6
NEG_INF = -1e30


def _layer_norm(x, g, b):
    # E[x^2] - E[x]^2 form: the two cross-lane reductions issue back-to-back
    # instead of the (x - mu)^2 reduce serializing behind the mean reduce.
    mu = jnp.mean(x, axis=-1, keepdims=True)
    mu2 = jnp.mean(x * x, axis=-1, keepdims=True)
    var = jnp.maximum(mu2 - mu * mu, 0.0)
    return (x - mu) * lax.rsqrt(var + LN_EPS) * g + b


def entity_encoder_kernel(n_ref, x_ref, wl_ref, wbig_ref, misc_ref, out_ref):
    f32 = jnp.float32
    bf16 = jnp.bfloat16
    n_pad = out_ref.shape[0]
    n_valid = n_ref[0, 0]                              # dynamic entity count (SMEM)

    # ---- non-layer biases (f32 misc slab, index N_LAYERS) ----
    tail = misc_ref[N_LAYERS]                          # (8, 128)
    be = tail[0:1, :D_MODEL]                           # embedd_platform bias
    bfc = tail[1:2, :D_MODEL]                          # fc bias

    # ---- weight slices from the big bf16 slab ----
    we = wbig_ref[0:PLATFORM_PAD, 4 * D_MODEL:5 * D_MODEL]   # (8, 64)
    wc = wbig_ref[0:D_MODEL, 3 * D_MODEL:4 * D_MODEL]        # Conv1d(64,64,k=1)
    wf = wbig_ref[D_MODEL:2 * D_MODEL, 3 * D_MODEL:4 * D_MODEL]  # fc weight

    # ---- embedd_platform: single degenerate MXU matmul (MXU is idle -> free) ----
    h = jnp.dot(x_ref[...].astype(bf16), we, preferred_element_type=f32) + be

    # ---- masks derived from the dynamic n_valid ----
    col_ids = lax.broadcasted_iota(jnp.int32, (1, n_pad), 1)
    valid = col_ids < n_valid
    key_bias = jnp.where(valid, 0.0, NEG_INF).astype(f32)    # softmax key-pad bias

    # TODO(synk): nn.Dropout is treated as identity (eval mode).
    # TODO(synk): for large N, tile attention flash-style — the f32 (N,N)
    #             score buffers hit the VMEM wall near N~1.2k on v7x (64 MiB),
    #             roughly 2x earlier than v5e/v6e.
    for l in range(N_LAYERS):                          # static unroll, 3 layers
        ml = misc_ref[l]                               # (8, 128) f32
        b1 = ml[0:1, :]                                # (1, 128)
        b2 = ml[1:2, :D_MODEL]
        ln1g = ml[2:3, :D_MODEL]
        ln1b = ml[3:4, :D_MODEL]
        ln2g = ml[4:5, :D_MODEL]
        ln2b = ml[5:6, :D_MODEL]

        wl = wl_ref[l]                                 # (64, 384) bf16
        wqkv = wl[:, 0:3 * D_MODEL]                    # (64, 192)  Q scale folded
        w1 = wl[:, 3 * D_MODEL:3 * D_MODEL + D_INNER]  # (64, 128)
        wo = wl[:, 3 * D_MODEL + D_INNER:]             # (64, 64)
        w2 = wbig_ref[:, l * D_MODEL:(l + 1) * D_MODEL]  # (128, 64) bf16

        # ---- multi-head self-attention, post-norm residual ----
        residual = h
        qkv = jnp.dot(h.astype(bf16), wqkv, preferred_element_type=f32)  # (N, 192)
        attn_out = None
        for hd in range(N_HEAD):
            qh = qkv[:, hd * D_K:(hd + 1) * D_K].astype(bf16)
            kh = qkv[:, D_MODEL + hd * D_K:D_MODEL + (hd + 1) * D_K].astype(bf16)
            vh = qkv[:, 2 * D_MODEL + hd * D_K:2 * D_MODEL + (hd + 1) * D_K].astype(bf16)
            # (N, d_k) x (N, d_k) contracted over d_k -> (N, N), no transpose
            logits = lax.dot_general(qh, kh, (((1,), (1,)), ((), ())),
                                     preferred_element_type=f32)
            logits = logits + key_bias
            logits = logits - jnp.max(logits, axis=-1, keepdims=True)
            p = jnp.exp(logits)                                           # f32
            p = p * pl.reciprocal(jnp.sum(p, axis=-1, keepdims=True),
                                  approx=True)
            ctx = jnp.dot(p.astype(bf16), vh, preferred_element_type=f32)  # (N, 32)
            # per-head output projection: sublane-aligned 32-row slice of W_o
            part = jnp.dot(ctx.astype(bf16), wo[hd * D_K:(hd + 1) * D_K, :],
                           preferred_element_type=f32)                     # (N, 64)
            attn_out = part if attn_out is None else attn_out + part
        h = _layer_norm(attn_out + residual, ln1g, ln1b)

        # ---- position-wise feed-forward ----
        residual = h
        f = jnp.maximum(
            jnp.dot(h.astype(bf16), w1, preferred_element_type=f32) + b1, 0.0)
        f = jnp.dot(f.astype(bf16), w2, preferred_element_type=f32) + b2
        h = _layer_norm(f + residual, ln2g, ln2b)

    # ---- heads ----
    # entity_embeddings = relu(conv1(relu(entity_out))), Conv1d k=1 no bias
    emb = jnp.maximum(
        jnp.dot(jnp.maximum(h, 0.0).astype(bf16), wc,
                preferred_element_type=f32), 0.0)                 # (N, 64)

    # embedded_entity = relu(fc(mean over *valid* entities)); the cross-sublane
    # sum rides the MXU as a (1,N)@(N,64) mask-row matmul, 1/n applied in f32.
    mask_row = valid.astype(bf16)                                  # (1, n_pad)
    h_sum = jnp.dot(mask_row, h.astype(bf16), preferred_element_type=f32)  # (1, 64)
    mean_h = h_sum * (1.0 / n_valid.astype(f32))
    pooled = jnp.maximum(
        jnp.dot(mean_h.astype(bf16), wf, preferred_element_type=f32) + bfc, 0.0)

    # ---- lane-dense packed output: emb in lanes 0:64, pooled in row 0 64:128 ----
    row_ids = lax.broadcasted_iota(jnp.int32, (n_pad, 1), 0)
    pooled_blk = jnp.where(row_ids == 0, pooled, 0.0)              # (n_pad, 64)
    out_ref[...] = jnp.concatenate([emb, pooled_blk], axis=-1)     # (n_pad, 128)


def make_params():
    """Deterministic synthetic weights (Linear weights stored as (in, out))."""
    key = jax.random.PRNGKey(42)
    ks = iter(jax.random.split(key, 32))

    def rnd(shape, s=0.1):
        return (s * jax.random.normal(next(ks), shape)).astype(jnp.float32)

    we = rnd((PLATFORM, D_MODEL))
    be = rnd((1, D_MODEL))
    wq = rnd((N_LAYERS, D_MODEL, N_HEAD * D_K))
    wk = rnd((N_LAYERS, D_MODEL, N_HEAD * D_K))
    wv = rnd((N_LAYERS, D_MODEL, N_HEAD * D_K))
    wo = rnd((N_LAYERS, N_HEAD * D_K, D_MODEL))
    ln1g = jnp.ones((N_LAYERS, 1, D_MODEL), jnp.float32)
    ln1b = jnp.zeros((N_LAYERS, 1, D_MODEL), jnp.float32)
    w1 = rnd((N_LAYERS, D_MODEL, D_INNER))
    b1 = rnd((N_LAYERS, 1, D_INNER))
    w2 = rnd((N_LAYERS, D_INNER, D_MODEL))
    b2 = rnd((N_LAYERS, 1, D_MODEL))
    ln2g = jnp.ones((N_LAYERS, 1, D_MODEL), jnp.float32)
    ln2b = jnp.zeros((N_LAYERS, 1, D_MODEL), jnp.float32)
    wc = rnd((D_MODEL, D_MODEL))   # Conv1d(64,64,k=1) weight, stored (in, out)
    wf = rnd((D_MODEL, D_MODEL))   # fc weight, stored (in, out)
    bf = rnd((1, D_MODEL))
    return (we, be, wq, wk, wv, wo, ln1g, ln1b,
            w1, b1, w2, b2, ln2g, ln2b, wc, wf, bf)


def pack_params(params):
    """Consolidate 17 raw arrays into 3 slabs (fewer DMAs, bf16 MXU operands).

    - w_layer bf16 (3, 64, 384): [wq*1/sqrt(d_k) | wk | wv | w1 | wo]
    - w_big   bf16 (128, 384):   lanes 0:192 = w2 (layers 0..2),
                                 lanes 192:256 = [wc ; wf] stacked on rows,
                                 lanes 256:320 rows 0:4 = we (platform embed),
                                 lanes 320:384 = zero pad
    - misc    f32  (4, 8, 128):  layers 0-2 rows = b1,b2,ln1g,ln1b,ln2g,ln2b;
                                 slab 3 rows = be, bf (zero pad elsewhere)
    """
    (we, be, wq, wk, wv, wo, ln1g, ln1b,
     w1, b1, w2, b2, ln2g, ln2b, wc, wf, bf) = params
    scale = jnp.float32(1.0 / (D_K ** 0.5))

    w_layer = jnp.concatenate([wq * scale, wk, wv, w1, wo],
                              axis=-1).astype(jnp.bfloat16)        # (3, 64, 384)

    big = jnp.zeros((D_INNER, 6 * D_MODEL), jnp.float32)
    for l in range(N_LAYERS):
        big = big.at[:, l * D_MODEL:(l + 1) * D_MODEL].set(w2[l])
    big = big.at[0:D_MODEL, 3 * D_MODEL:4 * D_MODEL].set(wc)
    big = big.at[D_MODEL:2 * D_MODEL, 3 * D_MODEL:4 * D_MODEL].set(wf)
    big = big.at[0:PLATFORM, 4 * D_MODEL:4 * D_MODEL + D_MODEL].set(we)
    w_big = big.astype(jnp.bfloat16)                               # (128, 384)

    def pad_lane(a, width=128):
        return jnp.pad(a, ((0, 0), (0, width - a.shape[-1])))

    misc_slabs = []
    for l in range(N_LAYERS):
        rows = jnp.concatenate([
            pad_lane(b1[l]), pad_lane(b2[l]),
            pad_lane(ln1g[l]), pad_lane(ln1b[l]),
            pad_lane(ln2g[l]), pad_lane(ln2b[l]),
            jnp.zeros((2, 128), jnp.float32),
        ], axis=0)                                                 # (8, 128)
        misc_slabs.append(rows)
    tail = jnp.concatenate([
        pad_lane(be), pad_lane(bf),
        jnp.zeros((6, 128), jnp.float32),
    ], axis=0)                                                     # (8, 128)
    misc = jnp.stack(misc_slabs + [tail], axis=0)                  # (4, 8, 128)
    return w_layer, w_big, misc


def _cost_estimate(m):
    per_layer = (2 * m * D_MODEL * 3 * D_MODEL                      # fused qkv
                 + N_HEAD * (2 * m * m * D_K            # logits
                             + 2 * m * m * D_K          # p @ v
                             + 2 * m * D_K * D_MODEL)   # per-head out proj
                 + 2 * m * D_MODEL * D_INNER
                 + 2 * m * D_INNER * D_MODEL)
    flops = (2 * m * PLATFORM_PAD * D_MODEL              # platform embed
             + N_LAYERS * per_layer
             + 2 * m * D_MODEL * D_MODEL                 # conv1 (k=1)
             + 2 * m * D_MODEL                           # mask-row pool
             + 2 * D_MODEL * D_MODEL)                    # fc on pooled row
    transcendentals = N_LAYERS * (N_HEAD * m * m + N_HEAD * m + 4 * m)
    param_bytes = (2 * (N_LAYERS * D_MODEL * 6 * D_MODEL + D_INNER * 6 * D_MODEL)
                   + 4 * (N_LAYERS + 1) * 8 * 128)
    io_bytes = 4 * (m * PLATFORM_PAD + m * 2 * D_MODEL) + 4
    return pl.CostEstimate(flops=flops, transcendentals=transcendentals,
                           bytes_accessed=param_bytes + io_bytes)


def entity_encoder(x, packed_params):
    """x: (N, 4) float32 entity list.  Returns
    (entity_embeddings (1, N, 64), embedded_entity (1, 64))."""
    n = x.shape[0]
    assert n >= 1, "empty entity list"
    # Bucketed padding: every N in a bucket reuses the same compiled kernel,
    # the true count goes in as a dynamic SMEM scalar.
    n_pad = max(8, int(pl.next_power_of_2(n)))
    x = jnp.pad(x.astype(jnp.float32),
                ((0, n_pad - n), (0, PLATFORM_PAD - x.shape[1])))
    n_arr = jnp.full((1, 1), n, dtype=jnp.int32)
    w_layer, w_big, misc = packed_params

    vmem = pl.BlockSpec(memory_space=pltpu.MemorySpace.VMEM)
    smem = pl.BlockSpec(memory_space=pltpu.MemorySpace.SMEM)
    out = pl.pallas_call(
        entity_encoder_kernel,
        out_shape=jax.ShapeDtypeStruct((n_pad, 2 * D_MODEL), jnp.float32),
        in_specs=[smem, vmem, vmem, vmem, vmem],
        out_specs=vmem,
        cost_estimate=_cost_estimate(n_pad),
    )(n_arr, x, w_layer, w_big, misc)
    # TODO(synk): when batching many entity lists, stack them on a leading
    #             grid axis with dimension_semantics=("parallel",) so both
    #             v7x TensorCores run (v5e/v6e: pack several lists per step).
    entity_embeddings = out[None, :n, 0:D_MODEL]        # (1, N, 64)
    embedded_entity = out[0:1, D_MODEL:2 * D_MODEL]     # (1, 64)
    return entity_embeddings, embedded_entity


if __name__ == "__main__":
    params = make_params()
    packed = pack_params(params)

    # aligned case (N multiple of 8)
    N_ENTITIES = 8
    x = jax.random.normal(jax.random.PRNGKey(0),
                          (N_ENTITIES, PLATFORM)).astype(jnp.float32)
    entity_embeddings, embedded_entity = entity_encoder(x, packed)
    jax.block_until_ready((entity_embeddings, embedded_entity))
    assert entity_embeddings.shape == (1, N_ENTITIES, D_MODEL)
    assert embedded_entity.shape == (1, D_MODEL)
    assert bool(jnp.all(jnp.isfinite(entity_embeddings)))
    assert bool(jnp.all(jnp.isfinite(embedded_entity)))

    # ragged cases: 6 and 7 both bucket to n_pad=8 -> same compiled kernel,
    # exercising the dynamic n_valid masking of softmax + mean pooling.
    emb6, pooled6 = entity_encoder(x[:6], packed)
    emb7, pooled7 = entity_encoder(x[:7], packed)
    jax.block_until_ready((emb6, pooled6, emb7, pooled7))
    assert emb6.shape == (1, 6, D_MODEL) and pooled6.shape == (1, D_MODEL)
    assert emb7.shape == (1, 7, D_MODEL) and pooled7.shape == (1, D_MODEL)
    assert bool(jnp.all(jnp.isfinite(emb6))) and bool(jnp.all(jnp.isfinite(emb7)))

    print("KERNEL_OK")
</pallas_src>

<mosaic_0001>
module attributes {stable_mosaic.version = 11 : i64} {
  func.func @entity_encoder_kernel(%arg0: memref<1x1xi32, #tpu.memory_space<smem>>, %arg1: memref<8x8xf32, #tpu.memory_space<vmem>>, %arg2: memref<3x64x384xbf16, #tpu.memory_space<vmem>>, %arg3: memref<128x384xbf16, #tpu.memory_space<vmem>>, %arg4: memref<4x8x128xf32, #tpu.memory_space<vmem>>, %arg5: memref<8x128xf32, #tpu.memory_space<vmem>>) attributes {dimension_semantics = [], scalar_prefetch = 0 : i64, scratch_operands = 0 : i64, tpu.core_type = #tpu.core_type<tc>} {
    %c0 = arith.constant 0 : index
    %c0_0 = arith.constant 0 : index
    %0 = memref.load %arg0[%c0, %c0_0] : memref<1x1xi32, #tpu.memory_space<smem>>
    %c3 = arith.constant 3 : index
    %c0_1 = arith.constant 0 : index
    %c0_2 = arith.constant 0 : index
    %1 = vector.load %arg4[%c3, %c0_1, %c0_2] : memref<4x8x128xf32, #tpu.memory_space<vmem>>, vector<1x8x128xf32>
    %2 = vector.shape_cast %1 : vector<1x8x128xf32> to vector<8x128xf32>
    %3 = vector.extract_strided_slice %2 {offsets = [0, 0], sizes = [1, 64], strides = [1, 1]} : vector<8x128xf32> to vector<1x64xf32>
    %4 = vector.extract_strided_slice %2 {offsets = [1, 0], sizes = [1, 64], strides = [1, 1]} : vector<8x128xf32> to vector<1x64xf32>
    %c0_3 = arith.constant 0 : index
    %c256 = arith.constant 256 : index
    %5 = vector.load %arg3[%c0_3, %c256] : memref<128x384xbf16, #tpu.memory_space<vmem>>, vector<8x64xbf16>
    %c0_4 = arith.constant 0 : index
    %c192 = arith.constant 192 : index
    %6 = vector.load %arg3[%c0_4, %c192] : memref<128x384xbf16, #tpu.memory_space<vmem>>, vector<64x64xbf16>
    %c64 = arith.constant 64 : index
    %c192_5 = arith.constant 192 : index
    %7 = vector.load %arg3[%c64, %c192_5] : memref<128x384xbf16, #tpu.memory_space<vmem>>, vector<64x64xbf16>
    %c0_6 = arith.constant 0 : index
    %c0_7 = arith.constant 0 : index
    %8 = vector.load %arg1[%c0_6, %c0_7] : memref<8x8xf32, #tpu.memory_space<vmem>>, vector<8x8xf32>
    %9 = arith.truncf %8 : vector<8x8xf32> to vector<8x8xbf16>
    %cst = arith.constant dense<0.000000e+00> : vector<8x64xf32>
    %10 = tpu.matmul %9, %5, %cst {dimension_numbers = #tpu.dot_dimension_numbers<[1], [0], [0], [1], [0, 0, 1, 1], [], []>} : vector<8x8xbf16>, vector<8x64xbf16>, vector<8x64xf32> -> vector<8x64xf32>
    %11 = vector.broadcast %3 : vector<1x64xf32> to vector<8x64xf32>
    %12 = arith.addf %10, %11 : vector<8x64xf32>
    %13 = tpu.iota {dimensions = array<i32: 1>} : vector<1x8xi32>
    %14 = vector.broadcast %0 : i32 to vector<1x8xi32>
    %15 = arith.cmpi slt, %13, %14 : vector<1x8xi32>
    %cst_8 = arith.constant 0.000000e+00 : f32
    %cst_9 = arith.constant -1.000000e+30 : f32
    %16 = vector.broadcast %cst_8 : f32 to vector<1x8xf32>
    %17 = vector.broadcast %cst_9 : f32 to vector<1x8xf32>
    %18 = arith.select %15, %16, %17 : vector<1x8xi1>, vector<1x8xf32>
    %c0_10 = arith.constant 0 : index
    %c0_11 = arith.constant 0 : index
    %c0_12 = arith.constant 0 : index
    %19 = vector.load %arg4[%c0_10, %c0_11, %c0_12] : memref<4x8x128xf32, #tpu.memory_space<vmem>>, vector<1x8x128xf32>
    %20 = vector.shape_cast %19 : vector<1x8x128xf32> to vector<8x128xf32>
    %21 = vector.extract_strided_slice %20 {offsets = [0, 0], sizes = [1, 128], strides = [1, 1]} : vector<8x128xf32> to vector<1x128xf32>
    %22 = vector.extract_strided_slice %20 {offsets = [1, 0], sizes = [1, 64], strides = [1, 1]} : vector<8x128xf32> to vector<1x64xf32>
    %23 = vector.extract_strided_slice %20 {offsets = [2, 0], sizes = [1, 64], strides = [1, 1]} : vector<8x128xf32> to vector<1x64xf32>
    %24 = vector.extract_strided_slice %20 {offsets = [3, 0], sizes = [1, 64], strides = [1, 1]} : vector<8x128xf32> to vector<1x64xf32>
    %25 = vector.extract_strided_slice %20 {offsets = [4, 0], sizes = [1, 64], strides = [1, 1]} : vector<8x128xf32> to vector<1x64xf32>
    %26 = vector.extract_strided_slice %20 {offsets = [5, 0], sizes = [1, 64], strides = [1, 1]} : vector<8x128xf32> to vector<1x64xf32>
    %c0_13 = arith.constant 0 : index
    %c0_14 = arith.constant 0 : index
    %c0_15 = arith.constant 0 : index
    %27 = vector.load %arg2[%c0_13, %c0_14, %c0_15] : memref<3x64x384xbf16, #tpu.memory_space<vmem>>, vector<1x64x384xbf16>
    %28 = vector.shape_cast %27 : vector<1x64x384xbf16> to vector<64x384xbf16>
    %29 = vector.extract_strided_slice %28 {offsets = [0, 0], sizes = [64, 192], strides = [1, 1]} : vector<64x384xbf16> to vector<64x192xbf16>
    %30 = vector.extract_strided_slice %28 {offsets = [0, 192], sizes = [64, 128], strides = [1, 1]} : vector<64x384xbf16> to vector<64x128xbf16>
    %31 = vector.extract_strided_slice %28 {offsets = [0, 320], sizes = [64, 64], strides = [1, 1]} : vector<64x384xbf16> to vector<64x64xbf16>
    %c0_16 = arith.constant 0 : index
    %c0_17 = arith.constant 0 : index
    %32 = vector.load %arg3[%c0_16, %c0_17] : memref<128x384xbf16, #tpu.memory_space<vmem>>, vector<128x64xbf16>
    %33 = arith.truncf %12 : vector<8x64xf32> to vector<8x64xbf16>
    %cst_18 = arith.constant dense<0.000000e+00> : vector<8x192xf32>
    %34 = tpu.matmul %33, %29, %cst_18 {dimension_numbers = #tpu.dot_dimension_numbers<[1], [0], [0], [1], [0, 0, 1, 1], [], []>} : vector<8x64xbf16>, vector<64x192xbf16>, vector<8x192xf32> -> vector<8x192xf32>
    %35 = vector.extract_strided_slice %34 {offsets = [0, 0], sizes = [8, 32], strides = [1, 1]} : vector<8x192xf32> to vector<8x32xf32>
    %36 = arith.truncf %35 : vector<8x32xf32> to vector<8x32xbf16>
    %37 = vector.extract_strided_slice %34 {offsets = [0, 64], sizes = [8, 32], strides = [1, 1]} : vector<8x192xf32> to vector<8x32xf32>
    %38 = arith.truncf %37 : vector<8x32xf32> to vector<8x32xbf16>
    %39 = vector.extract_strided_slice %34 {offsets = [0, 128], sizes = [8, 32], strides = [1, 1]} : vector<8x192xf32> to vector<8x32xf32>
    %40 = arith.truncf %39 : vector<8x32xf32> to vector<8x32xbf16>
    %cst_19 = arith.constant dense<0.000000e+00> : vector<8x8xf32>
    %41 = tpu.matmul %36, %38, %cst_19 {dimension_numbers = #tpu.dot_dimension_numbers<[1], [1], [0], [0], [0, 0, 1, 0], [], []>} : vector<8x32xbf16>, vector<8x32xbf16>, vector<8x8xf32> -> vector<8x8xf32>
    %42 = vector.broadcast %18 : vector<1x8xf32> to vector<8x8xf32>
    %43 = arith.addf %41, %42 : vector<8x8xf32>
    %cst_20 = arith.constant dense<0xFF800000> : vector<8xf32>
    %44 = vector.multi_reduction <maximumf>, %43, %cst_20 [1] : vector<8x8xf32> to vector<8xf32>
    %45 = vector.shape_cast %44 : vector<8xf32> to vector<8x1xf32>
    %46 = vector.broadcast %45 : vector<8x1xf32> to vector<8x8xf32>
    %47 = arith.subf %43, %46 : vector<8x8xf32>
    %48 = math.exp %47 : vector<8x8xf32>
    %cst_21 = arith.constant dense<0.000000e+00> : vector<8xf32>
    %49 = vector.multi_reduction <add>, %48, %cst_21 [1] : vector<8x8xf32> to vector<8xf32>
    %50 = vector.shape_cast %49 : vector<8xf32> to vector<8x1xf32>
    %51 = tpu.reciprocal %50 {approx = true} : vector<8x1xf32> -> vector<8x1xf32>
    %52 = vector.broadcast %51 : vector<8x1xf32> to vector<8x8xf32>
    %53 = arith.mulf %48, %52 : vector<8x8xf32>
    %54 = arith.truncf %53 : vector<8x8xf32> to vector<8x8xbf16>
    %cst_22 = arith.constant dense<0.000000e+00> : vector<8x32xf32>
    %55 = tpu.matmul %54, %40, %cst_22 {dimension_numbers = #tpu.dot_dimension_numbers<[1], [0], [0], [1], [0, 0, 1, 1], [], []>} : vector<8x8xbf16>, vector<8x32xbf16>, vector<8x32xf32> -> vector<8x32xf32>
    %56 = arith.truncf %55 : vector<8x32xf32> to vector<8x32xbf16>
    %57 = vector.extract_strided_slice %31 {offsets = [0, 0], sizes = [32, 64], strides = [1, 1]} : vector<64x64xbf16> to vector<32x64xbf16>
    %cst_23 = arith.constant dense<0.000000e+00> : vector<8x64xf32>
    %58 = tpu.matmul %56, %57, %cst_23 {dimension_numbers = #tpu.dot_dimension_numbers<[1], [0], [0], [1], [0, 0, 1, 1], [], []>} : vector<8x32xbf16>, vector<32x64xbf16>, vector<8x64xf32> -> vector<8x64xf32>
    %59 = vector.extract_strided_slice %34 {offsets = [0, 32], sizes = [8, 32], strides = [1, 1]} : vector<8x192xf32> to vector<8x32xf32>
    %60 = arith.truncf %59 : vector<8x32xf32> to vector<8x32xbf16>
    %61 = vector.extract_strided_slice %34 {offsets = [0, 96], sizes = [8, 32], strides = [1, 1]} : vector<8x192xf32> to vector<8x32xf32>
    %62 = arith.truncf %61 : vector<8x32xf32> to vector<8x32xbf16>
    %63 = vector.extract_strided_slice %34 {offsets = [0, 160], sizes = [8, 32], strides = [1, 1]} : vector<8x192xf32> to vector<8x32xf32>
    %64 = arith.truncf %63 : vector<8x32xf32> to vector<8x32xbf16>
    %cst_24 = arith.constant dense<0.000000e+00> : vector<8x8xf32>
    %65 = tpu.matmul %60, %62, %cst_24 {dimension_numbers = #tpu.dot_dimension_numbers<[1], [1], [0], [0], [0, 0, 1, 0], [], []>} : vector<8x32xbf16>, vector<8x32xbf16>, vector<8x8xf32> -> vector<8x8xf32>
    %66 = vector.broadcast %18 : vector<1x8xf32> to vector<8x8xf32>
    %67 = arith.addf %65, %66 : vector<8x8xf32>
    %cst_25 = arith.constant dense<0xFF800000> : vector<8xf32>
    %68 = vector.multi_reduction <maximumf>, %67, %cst_25 [1] : vector<8x8xf32> to vector<8xf32>
    %69 = vector.shape_cast %68 : vector<8xf32> to vector<8x1xf32>
    %70 = vector.broadcast %69 : vector<8x1xf32> to vector<8x8xf32>
    %71 = arith.subf %67, %70 : vector<8x8xf32>
    %72 = math.exp %71 : vector<8x8xf32>
    %cst_26 = arith.constant dense<0.000000e+00> : vector<8xf32>
    %73 = vector.multi_reduction <add>, %72, %cst_26 [1] : vector<8x8xf32> to vector<8xf32>
    %74 = vector.shape_cast %73 : vector<8xf32> to vector<8x1xf32>
    %75 = tpu.reciprocal %74 {approx = true} : vector<8x1xf32> -> vector<8x1xf32>
    %76 = vector.broadcast %75 : vector<8x1xf32> to vector<8x8xf32>
    %77 = arith.mulf %72, %76 : vector<8x8xf32>
    %78 = arith.truncf %77 : vector<8x8xf32> to vector<8x8xbf16>
    %cst_27 = arith.constant dense<0.000000e+00> : vector<8x32xf32>
    %79 = tpu.matmul %78, %64, %cst_27 {dimension_numbers = #tpu.dot_dimension_numbers<[1], [0], [0], [1], [0, 0, 1, 1], [], []>} : vector<8x8xbf16>, vector<8x32xbf16>, vector<8x32xf32> -> vector<8x32xf32>
    %80 = arith.truncf %79 : vector<8x32xf32> to vector<8x32xbf16>
    %81 = vector.extract_strided_slice %31 {offsets = [32, 0], sizes = [32, 64], strides = [1, 1]} : vector<64x64xbf16> to vector<32x64xbf16>
    %cst_28 = arith.constant dense<0.000000e+00> : vector<8x64xf32>
    %82 = tpu.matmul %80, %81, %cst_28 {dimension_numbers = #tpu.dot_dimension_numbers<[1], [0], [0], [1], [0, 0, 1, 1], [], []>} : vector<8x32xbf16>, vector<32x64xbf16>, vector<8x64xf32> -> vector<8x64xf32>
    %83 = arith.addf %58, %82 : vector<8x64xf32>
    %84 = arith.addf %83, %12 : vector<8x64xf32>
    %cst_29 = arith.constant dense<0.000000e+00> : vector<8xf32>
    %85 = vector.multi_reduction <add>, %84, %cst_29 [1] : vector<8x64xf32> to vector<8xf32>
    %86 = vector.shape_cast %85 : vector<8xf32> to vector<8x1xf32>
    %cst_30 = arith.constant 6.400000e+01 : f32
    %87 = vector.broadcast %cst_30 : f32 to vector<8x1xf32>
    %88 = arith.divf %86, %87 : vector<8x1xf32>
    %89 = arith.mulf %84, %84 : vector<8x64xf32>
    %cst_31 = arith.constant dense<0.000000e+00> : vector<8xf32>
    %90 = vector.multi_reduction <add>, %89, %cst_31 [1] : vector<8x64xf32> to vector<8xf32>
    %91 = vector.shape_cast %90 : vector<8xf32> to vector<8x1xf32>
    %cst_32 = arith.constant 6.400000e+01 : f32
    %92 = vector.broadcast %cst_32 : f32 to vector<8x1xf32>
    %93 = arith.divf %91, %92 : vector<8x1xf32>
    %94 = arith.mulf %88, %88 : vector<8x1xf32>
    %95 = arith.subf %93, %94 : vector<8x1xf32>
    %cst_33 = arith.constant 0.000000e+00 : f32
    %96 = vector.broadcast %cst_33 : f32 to vector<8x1xf32>
    %97 = arith.maximumf %95, %96 : vector<8x1xf32>
    %98 = vector.broadcast %88 : vector<8x1xf32> to vector<8x64xf32>
    %99 = arith.subf %84, %98 : vector<8x64xf32>
    %cst_34 = arith.constant 9.99999997E-7 : f32
    %100 = vector.broadcast %cst_34 : f32 to vector<8x1xf32>
    %101 = arith.addf %97, %100 : vector<8x1xf32>
    %102 = math.rsqrt %101 : vector<8x1xf32>
    %103 = vector.broadcast %102 : vector<8x1xf32> to vector<8x64xf32>
    %104 = arith.mulf %99, %103 : vector<8x64xf32>
    %105 = vector.broadcast %23 : vector<1x64xf32> to vector<8x64xf32>
    %106 = arith.mulf %104, %105 : vector<8x64xf32>
    %107 = vector.broadcast %24 : vector<1x64xf32> to vector<8x64xf32>
    %108 = arith.addf %106, %107 : vector<8x64xf32>
    %109 = arith.truncf %108 : vector<8x64xf32> to vector<8x64xbf16>
    %cst_35 = arith.constant dense<0.000000e+00> : vector<8x128xf32>
    %110 = tpu.matmul %109, %30, %cst_35 {dimension_numbers = #tpu.dot_dimension_numbers<[1], [0], [0], [1], [0, 0, 1, 1], [], []>} : vector<8x64xbf16>, vector<64x128xbf16>, vector<8x128xf32> -> vector<8x128xf32>
    %111 = vector.broadcast %21 : vector<1x128xf32> to vector<8x128xf32>
    %112 = arith.addf %110, %111 : vector<8x128xf32>
    %cst_36 = arith.constant 0.000000e+00 : f32
    %113 = vector.broadcast %cst_36 : f32 to vector<8x128xf32>
    %114 = arith.maximumf %112, %113 : vector<8x128xf32>
    %115 = arith.truncf %114 : vector<8x128xf32> to vector<8x128xbf16>
    %cst_37 = arith.constant dense<0.000000e+00> : vector<8x64xf32>
    %116 = tpu.matmul %115, %32, %cst_37 {dimension_numbers = #tpu.dot_dimension_numbers<[1], [0], [0], [1], [0, 0, 1, 1], [], []>} : vector<8x128xbf16>, vector<128x64xbf16>, vector<8x64xf32> -> vector<8x64xf32>
    %117 = vector.broadcast %22 : vector<1x64xf32> to vector<8x64xf32>
    %118 = arith.addf %116, %117 : vector<8x64xf32>
    %119 = arith.addf %118, %108 : vector<8x64xf32>
    %cst_38 = arith.constant dense<0.000000e+00> : vector<8xf32>
    %120 = vector.multi_reduction <add>, %119, %cst_38 [1] : vector<8x64xf32> to vector<8xf32>
    %121 = vector.shape_cast %120 : vector<8xf32> to vector<8x1xf32>
    %cst_39 = arith.constant 6.400000e+01 : f32
    %122 = vector.broadcast %cst_39 : f32 to vector<8x1xf32>
    %123 = arith.divf %121, %122 : vector<8x1xf32>
    %124 = arith.mulf %119, %119 : vector<8x64xf32>
    %cst_40 = arith.constant dense<0.000000e+00> : vector<8xf32>
    %125 = vector.multi_reduction <add>, %124, %cst_40 [1] : vector<8x64xf32> to vector<8xf32>
    %126 = vector.shape_cast %125 : vector<8xf32> to vector<8x1xf32>
    %cst_41 = arith.constant 6.400000e+01 : f32
    %127 = vector.broadcast %cst_41 : f32 to vector<8x1xf32>
    %128 = arith.divf %126, %127 : vector<8x1xf32>
    %129 = arith.mulf %123, %123 : vector<8x1xf32>
    %130 = arith.subf %128, %129 : vector<8x1xf32>
    %cst_42 = arith.constant 0.000000e+00 : f32
    %131 = vector.broadcast %cst_42 : f32 to vector<8x1xf32>
    %132 = arith.maximumf %130, %131 : vector<8x1xf32>
    %133 = vector.broadcast %123 : vector<8x1xf32> to vector<8x64xf32>
    %134 = arith.subf %119, %133 : vector<8x64xf32>
    %cst_43 = arith.constant 9.99999997E-7 : f32
    %135 = vector.broadcast %cst_43 : f32 to vector<8x1xf32>
    %136 = arith.addf %132, %135 : vector<8x1xf32>
    %137 = math.rsqrt %136 : vector<8x1xf32>
    %138 = vector.broadcast %137 : vector<8x1xf32> to vector<8x64xf32>
    %139 = arith.mulf %134, %138 : vector<8x64xf32>
    %140 = vector.broadcast %25 : vector<1x64xf32> to vector<8x64xf32>
    %141 = arith.mulf %139, %140 : vector<8x64xf32>
    %142 = vector.broadcast %26 : vector<1x64xf32> to vector<8x64xf32>
    %143 = arith.addf %141, %142 : vector<8x64xf32>
    %c1 = arith.constant 1 : index
    %c0_44 = arith.constant 0 : index
    %c0_45 = arith.constant 0 : index
    %144 = vector.load %arg4[%c1, %c0_44, %c0_45] : memref<4x8x128xf32, #tpu.memory_space<vmem>>, vector<1x8x128xf32>
    %145 = vector.shape_cast %144 : vector<1x8x128xf32> to vector<8x128xf32>
    %146 = vector.extract_strided_slice %145 {offsets = [0, 0], sizes = [1, 128], strides = [1, 1]} : vector<8x128xf32> to vector<1x128xf32>
    %147 = vector.extract_strided_slice %145 {offsets = [1, 0], sizes = [1, 64], strides = [1, 1]} : vector<8x128xf32> to vector<1x64xf32>
    %148 = vector.extract_strided_slice %145 {offsets = [2, 0], sizes = [1, 64], strides = [1, 1]} : vector<8x128xf32> to vector<1x64xf32>
    %149 = vector.extract_strided_slice %145 {offsets = [3, 0], sizes = [1, 64], strides = [1, 1]} : vector<8x128xf32> to vector<1x64xf32>
    %150 = vector.extract_strided_slice %145 {offsets = [4, 0], sizes = [1, 64], strides = [1, 1]} : vector<8x128xf32> to vector<1x64xf32>
    %151 = vector.extract_strided_slice %145 {offsets = [5, 0], sizes = [1, 64], strides = [1, 1]} : vector<8x128xf32> to vector<1x64xf32>
    %c1_46 = arith.constant 1 : index
    %c0_47 = arith.constant 0 : index
    %c0_48 = arith.constant 0 : index
    %152 = vector.load %arg2[%c1_46, %c0_47, %c0_48] : memref<3x64x384xbf16, #tpu.memory_space<vmem>>, vector<1x64x384xbf16>
    %153 = vector.shape_cast %152 : vector<1x64x384xbf16> to vector<64x384xbf16>
    %154 = vector.extract_strided_slice %153 {offsets = [0, 0], sizes = [64, 192], strides = [1, 1]} : vector<64x384xbf16> to vector<64x192xbf16>
    %155 = vector.extract_strided_slice %153 {offsets = [0, 192], sizes = [64, 128], strides = [1, 1]} : vector<64x384xbf16> to vector<64x128xbf16>
    %156 = vector.extract_strided_slice %153 {offsets = [0, 320], sizes = [64, 64], strides = [1, 1]} : vector<64x384xbf16> to vector<64x64xbf16>
    %c0_49 = arith.constant 0 : index
    %c64_50 = arith.constant 64 : index
    %157 = vector.load %arg3[%c0_49, %c64_50] : memref<128x384xbf16, #tpu.memory_space<vmem>>, vector<128x64xbf16>
    %158 = arith.truncf %143 : vector<8x64xf32> to vector<8x64xbf16>
    %cst_51 = arith.constant dense<0.000000e+00> : vector<8x192xf32>
    %159 = tpu.matmul %158, %154, %cst_51 {dimension_numbers = #tpu.dot_dimension_numbers<[1], [0], [0], [1], [0, 0, 1, 1], [], []>} : vector<8x64xbf16>, vector<64x192xbf16>, vector<8x192xf32> -> vector<8x192xf32>
    %160 = vector.extract_strided_slice %159 {offsets = [0, 0], sizes = [8, 32], strides = [1, 1]} : vector<8x192xf32> to vector<8x32xf32>
    %161 = arith.truncf %160 : vector<8x32xf32> to vector<8x32xbf16>
    %162 = vector.extract_strided_slice %159 {offsets = [0, 64], sizes = [8, 32], strides = [1, 1]} : vector<8x192xf32> to vector<8x32xf32>
    %163 = arith.truncf %162 : vector<8x32xf32> to vector<8x32xbf16>
    %164 = vector.extract_strided_slice %159 {offsets = [0, 128], sizes = [8, 32], strides = [1, 1]} : vector<8x192xf32> to vector<8x32xf32>
    %165 = arith.truncf %164 : vector<8x32xf32> to vector<8x32xbf16>
    %cst_52 = arith.constant dense<0.000000e+00> : vector<8x8xf32>
    %166 = tpu.matmul %161, %163, %cst_52 {dimension_numbers = #tpu.dot_dimension_numbers<[1], [1], [0], [0], [0, 0, 1, 0], [], []>} : vector<8x32xbf16>, vector<8x32xbf16>, vector<8x8xf32> -> vector<8x8xf32>
    %167 = vector.broadcast %18 : vector<1x8xf32> to vector<8x8xf32>
    %168 = arith.addf %166, %167 : vector<8x8xf32>
    %cst_53 = arith.constant dense<0xFF800000> : vector<8xf32>
    %169 = vector.multi_reduction <maximumf>, %168, %cst_53 [1] : vector<8x8xf32> to vector<8xf32>
    %170 = vector.shape_cast %169 : vector<8xf32> to vector<8x1xf32>
    %171 = vector.broadcast %170 : vector<8x1xf32> to vector<8x8xf32>
    %172 = arith.subf %168, %171 : vector<8x8xf32>
    %173 = math.exp %172 : vector<8x8xf32>
    %cst_54 = arith.constant dense<0.000000e+00> : vector<8xf32>
    %174 = vector.multi_reduction <add>, %173, %cst_54 [1] : vector<8x8xf32> to vector<8xf32>
    %175 = vector.shape_cast %174 : vector<8xf32> to vector<8x1xf32>
    %176 = tpu.reciprocal %175 {approx = true} : vector<8x1xf32> -> vector<8x1xf32>
    %177 = vector.broadcast %176 : vector<8x1xf32> to vector<8x8xf32>
    %178 = arith.mulf %173, %177 : vector<8x8xf32>
    %179 = arith.truncf %178 : vector<8x8xf32> to vector<8x8xbf16>
    %cst_55 = arith.constant dense<0.000000e+00> : vector<8x32xf32>
    %180 = tpu.matmul %179, %165, %cst_55 {dimension_numbers = #tpu.dot_dimension_numbers<[1], [0], [0], [1], [0, 0, 1, 1], [], []>} : vector<8x8xbf16>, vector<8x32xbf16>, vector<8x32xf32> -> vector<8x32xf32>
    %181 = arith.truncf %180 : vector<8x32xf32> to vector<8x32xbf16>
    %182 = vector.extract_strided_slice %156 {offsets = [0, 0], sizes = [32, 64], strides = [1, 1]} : vector<64x64xbf16> to vector<32x64xbf16>
    %cst_56 = arith.constant dense<0.000000e+00> : vector<8x64xf32>
    %183 = tpu.matmul %181, %182, %cst_56 {dimension_numbers = #tpu.dot_dimension_numbers<[1], [0], [0], [1], [0, 0, 1, 1], [], []>} : vector<8x32xbf16>, vector<32x64xbf16>, vector<8x64xf32> -> vector<8x64xf32>
    %184 = vector.extract_strided_slice %159 {offsets = [0, 32], sizes = [8, 32], strides = [1, 1]} : vector<8x192xf32> to vector<8x32xf32>
    %185 = arith.truncf %184 : vector<8x32xf32> to vector<8x32xbf16>
    %186 = vector.extract_strided_slice %159 {offsets = [0, 96], sizes = [8, 32], strides = [1, 1]} : vector<8x192xf32> to vector<8x32xf32>
    %187 = arith.truncf %186 : vector<8x32xf32> to vector<8x32xbf16>
    %188 = vector.extract_strided_slice %159 {offsets = [0, 160], sizes = [8, 32], strides = [1, 1]} : vector<8x192xf32> to vector<8x32xf32>
    %189 = arith.truncf %188 : vector<8x32xf32> to vector<8x32xbf16>
    %cst_57 = arith.constant dense<0.000000e+00> : vector<8x8xf32>
    %190 = tpu.matmul %185, %187, %cst_57 {dimension_numbers = #tpu.dot_dimension_numbers<[1], [1], [0], [0], [0, 0, 1, 0], [], []>} : vector<8x32xbf16>, vector<8x32xbf16>, vector<8x8xf32> -> vector<8x8xf32>
    %191 = vector.broadcast %18 : vector<1x8xf32> to vector<8x8xf32>
    %192 = arith.addf %190, %191 : vector<8x8xf32>
    %cst_58 = arith.constant dense<0xFF800000> : vector<8xf32>
    %193 = vector.multi_reduction <maximumf>, %192, %cst_58 [1] : vector<8x8xf32> to vector<8xf32>
    %194 = vector.shape_cast %193 : vector<8xf32> to vector<8x1xf32>
    %195 = vector.broadcast %194 : vector<8x1xf32> to vector<8x8xf32>
    %196 = arith.subf %192, %195 : vector<8x8xf32>
    %197 = math.exp %196 : vector<8x8xf32>
    %cst_59 = arith.constant dense<0.000000e+00> : vector<8xf32>
    %198 = vector.multi_reduction <add>, %197, %cst_59 [1] : vector<8x8xf32> to vector<8xf32>
    %199 = vector.shape_cast %198 : vector<8xf32> to vector<8x1xf32>
    %200 = tpu.reciprocal %199 {approx = true} : vector<8x1xf32> -> vector<8x1xf32>
    %201 = vector.broadcast %200 : vector<8x1xf32> to vector<8x8xf32>
    %202 = arith.mulf %197, %201 : vector<8x8xf32>
    %203 = arith.truncf %202 : vector<8x8xf32> to vector<8x8xbf16>
    %cst_60 = arith.constant dense<0.000000e+00> : vector<8x32xf32>
    %204 = tpu.matmul %203, %189, %cst_60 {dimension_numbers = #tpu.dot_dimension_numbers<[1], [0], [0], [1], [0, 0, 1, 1], [], []>} : vector<8x8xbf16>, vector<8x32xbf16>, vector<8x32xf32> -> vector<8x32xf32>
    %205 = arith.truncf %204 : vector<8x32xf32> to vector<8x32xbf16>
    %206 = vector.extract_strided_slice %156 {offsets = [32, 0], sizes = [32, 64], strides = [1, 1]} : vector<64x64xbf16> to vector<32x64xbf16>
    %cst_61 = arith.constant dense<0.000000e+00> : vector<8x64xf32>
    %207 = tpu.matmul %205, %206, %cst_61 {dimension_numbers = #tpu.dot_dimension_numbers<[1], [0], [0], [1], [0, 0, 1, 1], [], []>} : vector<8x32xbf16>, vector<32x64xbf16>, vector<8x64xf32> -> vector<8x64xf32>
    %208 = arith.addf %183, %207 : vector<8x64xf32>
    %209 = arith.addf %208, %143 : vector<8x64xf32>
    %cst_62 = arith.constant dense<0.000000e+00> : vector<8xf32>
    %210 = vector.multi_reduction <add>, %209, %cst_62 [1] : vector<8x64xf32> to vector<8xf32>
    %211 = vector.shape_cast %210 : vector<8xf32> to vector<8x1xf32>
    %cst_63 = arith.constant 6.400000e+01 : f32
    %212 = vector.broadcast %cst_63 : f32 to vector<8x1xf32>
    %213 = arith.divf %211, %212 : vector<8x1xf32>
    %214 = arith.mulf %209, %209 : vector<8x64xf32>
    %cst_64 = arith.constant dense<0.000000e+00> : vector<8xf32>
    %215 = vector.multi_reduction <add>, %214, %cst_64 [1] : vector<8x64xf32> to vector<8xf32>
    %216 = vector.shape_cast %215 : vector<8xf32> to vector<8x1xf32>
    %cst_65 = arith.constant 6.400000e+01 : f32
    %217 = vector.broadcast %cst_65 : f32 to vector<8x1xf32>
    %218 = arith.divf %216, %217 : vector<8x1xf32>
    %219 = arith.mulf %213, %213 : vector<8x1xf32>
    %220 = arith.subf %218, %219 : vector<8x1xf32>
    %cst_66 = arith.constant 0.000000e+00 : f32
    %221 = vector.broadcast %cst_66 : f32 to vector<8x1xf32>
    %222 = arith.maximumf %220, %221 : vector<8x1xf32>
    %223 = vector.broadcast %213 : vector<8x1xf32> to vector<8x64xf32>
    %224 = arith.subf %209, %223 : vector<8x64xf32>
    %cst_67 = arith.constant 9.99999997E-7 : f32
    %225 = vector.broadcast %cst_67 : f32 to vector<8x1xf32>
    %226 = arith.addf %222, %225 : vector<8x1xf32>
    %227 = math.rsqrt %226 : vector<8x1xf32>
    %228 = vector.broadcast %227 : vector<8x1xf32> to vector<8x64xf32>
    %229 = arith.mulf %224, %228 : vector<8x64xf32>
    %230 = vector.broadcast %148 : vector<1x64xf32> to vector<8x64xf32>
    %231 = arith.mulf %229, %230 : vector<8x64xf32>
    %232 = vector.broadcast %149 : vector<1x64xf32> to vector<8x64xf32>
    %233 = arith.addf %231, %232 : vector<8x64xf32>
    %234 = arith.truncf %233 : vector<8x64xf32> to vector<8x64xbf16>
    %cst_68 = arith.constant dense<0.000000e+00> : vector<8x128xf32>
    %235 = tpu.matmul %234, %155, %cst_68 {dimension_numbers = #tpu.dot_dimension_numbers<[1], [0], [0], [1], [0, 0, 1, 1], [], []>} : vector<8x64xbf16>, vector<64x128xbf16>, vector<8x128xf32> -> vector<8x128xf32>
    %236 = vector.broadcast %146 : vector<1x128xf32> to vector<8x128xf32>
    %237 = arith.addf %235, %236 : vector<8x128xf32>
    %cst_69 = arith.constant 0.000000e+00 : f32
    %238 = vector.broadcast %cst_69 : f32 to vector<8x128xf32>
    %239 = arith.maximumf %237, %238 : vector<8x128xf32>
    %240 = arith.truncf %239 : vector<8x128xf32> to vector<8x128xbf16>
    %cst_70 = arith.constant dense<0.000000e+00> : vector<8x64xf32>
    %241 = tpu.matmul %240, %157, %cst_70 {dimension_numbers = #tpu.dot_dimension_numbers<[1], [0], [0], [1], [0, 0, 1, 1], [], []>} : vector<8x128xbf16>, vector<128x64xbf16>, vector<8x64xf32> -> vector<8x64xf32>
    %242 = vector.broadcast %147 : vector<1x64xf32> to vector<8x64xf32>
    %243 = arith.addf %241, %242 : vector<8x64xf32>
    %244 = arith.addf %243, %233 : vector<8x64xf32>
    %cst_71 = arith.constant dense<0.000000e+00> : vector<8xf32>
    %245 = vector.multi_reduction <add>, %244, %cst_71 [1] : vector<8x64xf32> to vector<8xf32>
    %246 = vector.shape_cast %245 : vector<8xf32> to vector<8x1xf32>
    %cst_72 = arith.constant 6.400000e+01 : f32
    %247 = vector.broadcast %cst_72 : f32 to vector<8x1xf32>
    %248 = arith.divf %246, %247 : vector<8x1xf32>
    %249 = arith.mulf %244, %244 : vector<8x64xf32>
    %cst_73 = arith.constant dense<0.000000e+00> : vector<8xf32>
    %250 = vector.multi_reduction <add>, %249, %cst_73 [1] : vector<8x64xf32> to vector<8xf32>
    %251 = vector.shape_cast %250 : vector<8xf32> to vector<8x1xf32>
    %cst_74 = arith.constant 6.400000e+01 : f32
    %252 = vector.broadcast %cst_74 : f32 to vector<8x1xf32>
    %253 = arith.divf %251, %252 : vector<8x1xf32>
    %254 = arith.mulf %248, %248 : vector<8x1xf32>
    %255 = arith.subf %253, %254 : vector<8x1xf32>
    %cst_75 = arith.constant 0.000000e+00 : f32
    %256 = vector.broadcast %cst_75 : f32 to vector<8x1xf32>
    %257 = arith.maximumf %255, %256 : vector<8x1xf32>
    %258 = vector.broadcast %248 : vector<8x1xf32> to vector<8x64xf32>
    %259 = arith.subf %244, %258 : vector<8x64xf32>
    %cst_76 = arith.constant 9.99999997E-7 : f32
    %260 = vector.broadcast %cst_76 : f32 to vector<8x1xf32>
    %261 = arith.addf %257, %260 : vector<8x1xf32>
    %262 = math.rsqrt %261 : vector<8x1xf32>
    %263 = vector.broadcast %262 : vector<8x1xf32> to vector<8x64xf32>
    %264 = arith.mulf %259, %263 : vector<8x64xf32>
    %265 = vector.broadcast %150 : vector<1x64xf32> to vector<8x64xf32>
    %266 = arith.mulf %264, %265 : vector<8x64xf32>
    %267 = vector.broadcast %151 : vector<1x64xf32> to vector<8x64xf32>
    %268 = arith.addf %266, %267 : vector<8x64xf32>
    %c2 = arith.constant 2 : index
    %c0_77 = arith.constant 0 : index
    %c0_78 = arith.constant 0 : index
    %269 = vector.load %arg4[%c2, %c0_77, %c0_78] : memref<4x8x128xf32, #tpu.memory_space<vmem>>, vector<1x8x128xf32>
    %270 = vector.shape_cast %269 : vector<1x8x128xf32> to vector<8x128xf32>
    %271 = vector.extract_strided_slice %270 {offsets = [0, 0], sizes = [1, 128], strides = [1, 1]} : vector<8x128xf32> to vector<1x128xf32>
    %272 = vector.extract_strided_slice %270 {offsets = [1, 0], sizes = [1, 64], strides = [1, 1]} : vector<8x128xf32> to vector<1x64xf32>
    %273 = vector.extract_strided_slice %270 {offsets = [2, 0], sizes = [1, 64], strides = [1, 1]} : vector<8x128xf32> to vector<1x64xf32>
    %274 = vector.extract_strided_slice %270 {offsets = [3, 0], sizes = [1, 64], strides = [1, 1]} : vector<8x128xf32> to vector<1x64xf32>
    %275 = vector.extract_strided_slice %270 {offsets = [4, 0], sizes = [1, 64], strides = [1, 1]} : vector<8x128xf32> to vector<1x64xf32>
    %276 = vector.extract_strided_slice %270 {offsets = [5, 0], sizes = [1, 64], strides = [1, 1]} : vector<8x128xf32> to vector<1x64xf32>
    %c2_79 = arith.constant 2 : index
    %c0_80 = arith.constant 0 : index
    %c0_81 = arith.constant 0 : index
    %277 = vector.load %arg2[%c2_79, %c0_80, %c0_81] : memref<3x64x384xbf16, #tpu.memory_space<vmem>>, vector<1x64x384xbf16>
    %278 = vector.shape_cast %277 : vector<1x64x384xbf16> to vector<64x384xbf16>
    %279 = vector.extract_strided_slice %278 {offsets = [0, 0], sizes = [64, 192], strides = [1, 1]} : vector<64x384xbf16> to vector<64x192xbf16>
    %280 = vector.extract_strided_slice %278 {offsets = [0, 192], sizes = [64, 128], strides = [1, 1]} : vector<64x384xbf16> to vector<64x128xbf16>
    %281 = vector.extract_strided_slice %278 {offsets = [0, 320], sizes = [64, 64], strides = [1, 1]} : vector<64x384xbf16> to vector<64x64xbf16>
    %c0_82 = arith.constant 0 : index
    %c128 = arith.constant 128 : index
    %282 = vector.load %arg3[%c0_82, %c128] : memref<128x384xbf16, #tpu.memory_space<vmem>>, vector<128x64xbf16>
    %283 = arith.truncf %268 : vector<8x64xf32> to vector<8x64xbf16>
    %cst_83 = arith.constant dense<0.000000e+00> : vector<8x192xf32>
    %284 = tpu.matmul %283, %279, %cst_83 {dimension_numbers = #tpu.dot_dimension_numbers<[1], [0], [0], [1], [0, 0, 1, 1], [], []>} : vector<8x64xbf16>, vector<64x192xbf16>, vector<8x192xf32> -> vector<8x192xf32>
    %285 = vector.extract_strided_slice %284 {offsets = [0, 0], sizes = [8, 32], strides = [1, 1]} : vector<8x192xf32> to vector<8x32xf32>
    %286 = arith.truncf %285 : vector<8x32xf32> to vector<8x32xbf16>
    %287 = vector.extract_strided_slice %284 {offsets = [0, 64], sizes = [8, 32], strides = [1, 1]} : vector<8x192xf32> to vector<8x32xf32>
    %288 = arith.truncf %287 : vector<8x32xf32> to vector<8x32xbf16>
    %289 = vector.extract_strided_slice %284 {offsets = [0, 128], sizes = [8, 32], strides = [1, 1]} : vector<8x192xf32> to vector<8x32xf32>
    %290 = arith.truncf %289 : vector<8x32xf32> to vector<8x32xbf16>
    %cst_84 = arith.constant dense<0.000000e+00> : vector<8x8xf32>
    %291 = tpu.matmul %286, %288, %cst_84 {dimension_numbers = #tpu.dot_dimension_numbers<[1], [1], [0], [0], [0, 0, 1, 0], [], []>} : vector<8x32xbf16>, vector<8x32xbf16>, vector<8x8xf32> -> vector<8x8xf32>
    %292 = vector.broadcast %18 : vector<1x8xf32> to vector<8x8xf32>
    %293 = arith.addf %291, %292 : vector<8x8xf32>
    %cst_85 = arith.constant dense<0xFF800000> : vector<8xf32>
    %294 = vector.multi_reduction <maximumf>, %293, %cst_85 [1] : vector<8x8xf32> to vector<8xf32>
    %295 = vector.shape_cast %294 : vector<8xf32> to vector<8x1xf32>
    %296 = vector.broadcast %295 : vector<8x1xf32> to vector<8x8xf32>
    %297 = arith.subf %293, %296 : vector<8x8xf32>
    %298 = math.exp %297 : vector<8x8xf32>
    %cst_86 = arith.constant dense<0.000000e+00> : vector<8xf32>
    %299 = vector.multi_reduction <add>, %298, %cst_86 [1] : vector<8x8xf32> to vector<8xf32>
    %300 = vector.shape_cast %299 : vector<8xf32> to vector<8x1xf32>
    %301 = tpu.reciprocal %300 {approx = true} : vector<8x1xf32> -> vector<8x1xf32>
    %302 = vector.broadcast %301 : vector<8x1xf32> to vector<8x8xf32>
    %303 = arith.mulf %298, %302 : vector<8x8xf32>
    %304 = arith.truncf %303 : vector<8x8xf32> to vector<8x8xbf16>
    %cst_87 = arith.constant dense<0.000000e+00> : vector<8x32xf32>
    %305 = tpu.matmul %304, %290, %cst_87 {dimension_numbers = #tpu.dot_dimension_numbers<[1], [0], [0], [1], [0, 0, 1, 1], [], []>} : vector<8x8xbf16>, vector<8x32xbf16>, vector<8x32xf32> -> vector<8x32xf32>
    %306 = arith.truncf %305 : vector<8x32xf32> to vector<8x32xbf16>
    %307 = vector.extract_strided_slice %281 {offsets = [0, 0], sizes = [32, 64], strides = [1, 1]} : vector<64x64xbf16> to vector<32x64xbf16>
    %cst_88 = arith.constant dense<0.000000e+00> : vector<8x64xf32>
    %308 = tpu.matmul %306, %307, %cst_88 {dimension_numbers = #tpu.dot_dimension_numbers<[1], [0], [0], [1], [0, 0, 1, 1], [], []>} : vector<8x32xbf16>, vector<32x64xbf16>, vector<8x64xf32> -> vector<8x64xf32>
    %309 = vector.extract_strided_slice %284 {offsets = [0, 32], sizes = [8, 32], strides = [1, 1]} : vector<8x192xf32> to vector<8x32xf32>
    %310 = arith.truncf %309 : vector<8x32xf32> to vector<8x32xbf16>
    %311 = vector.extract_strided_slice %284 {offsets = [0, 96], sizes = [8, 32], strides = [1, 1]} : vector<8x192xf32> to vector<8x32xf32>
    %312 = arith.truncf %311 : vector<8x32xf32> to vector<8x32xbf16>
    %313 = vector.extract_strided_slice %284 {offsets = [0, 160], sizes = [8, 32], strides = [1, 1]} : vector<8x192xf32> to vector<8x32xf32>
    %314 = arith.truncf %313 : vector<8x32xf32> to vector<8x32xbf16>
    %cst_89 = arith.constant dense<0.000000e+00> : vector<8x8xf32>
    %315 = tpu.matmul %310, %312, %cst_89 {dimension_numbers = #tpu.dot_dimension_numbers<[1], [1], [0], [0], [0, 0, 1, 0], [], []>} : vector<8x32xbf16>, vector<8x32xbf16>, vector<8x8xf32> -> vector<8x8xf32>
    %316 = vector.broadcast %18 : vector<1x8xf32> to vector<8x8xf32>
    %317 = arith.addf %315, %316 : vector<8x8xf32>
    %cst_90 = arith.constant dense<0xFF800000> : vector<8xf32>
    %318 = vector.multi_reduction <maximumf>, %317, %cst_90 [1] : vector<8x8xf32> to vector<8xf32>
    %319 = vector.shape_cast %318 : vector<8xf32> to vector<8x1xf32>
    %320 = vector.broadcast %319 : vector<8x1xf32> to vector<8x8xf32>
    %321 = arith.subf %317, %320 : vector<8x8xf32>
    %322 = math.exp %321 : vector<8x8xf32>
    %cst_91 = arith.constant dense<0.000000e+00> : vector<8xf32>
    %323 = vector.multi_reduction <add>, %322, %cst_91 [1] : vector<8x8xf32> to vector<8xf32>
    %324 = vector.shape_cast %323 : vector<8xf32> to vector<8x1xf32>
    %325 = tpu.reciprocal %324 {approx = true} : vector<8x1xf32> -> vector<8x1xf32>
    %326 = vector.broadcast %325 : vector<8x1xf32> to vector<8x8xf32>
    %327 = arith.mulf %322, %326 : vector<8x8xf32>
    %328 = arith.truncf %327 : vector<8x8xf32> to vector<8x8xbf16>
    %cst_92 = arith.constant dense<0.000000e+00> : vector<8x32xf32>
    %329 = tpu.matmul %328, %314, %cst_92 {dimension_numbers = #tpu.dot_dimension_numbers<[1], [0], [0], [1], [0, 0, 1, 1], [], []>} : vector<8x8xbf16>, vector<8x32xbf16>, vector<8x32xf32> -> vector<8x32xf32>
    %330 = arith.truncf %329 : vector<8x32xf32> to vector<8x32xbf16>
    %331 = vector.extract_strided_slice %281 {offsets = [32, 0], sizes = [32, 64], strides = [1, 1]} : vector<64x64xbf16> to vector<32x64xbf16>
    %cst_93 = arith.constant dense<0.000000e+00> : vector<8x64xf32>
    %332 = tpu.matmul %330, %331, %cst_93 {dimension_numbers = #tpu.dot_dimension_numbers<[1], [0], [0], [1], [0, 0, 1, 1], [], []>} : vector<8x32xbf16>, vector<32x64xbf16>, vector<8x64xf32> -> vector<8x64xf32>
    %333 = arith.addf %308, %332 : vector<8x64xf32>
    %334 = arith.addf %333, %268 : vector<8x64xf32>
    %cst_94 = arith.constant dense<0.000000e+00> : vector<8xf32>
    %335 = vector.multi_reduction <add>, %334, %cst_94 [1] : vector<8x64xf32> to vector<8xf32>
    %336 = vector.shape_cast %335 : vector<8xf32> to vector<8x1xf32>
    %cst_95 = arith.constant 6.400000e+01 : f32
    %337 = vector.broadcast %cst_95 : f32 to vector<8x1xf32>
    %338 = arith.divf %336, %337 : vector<8x1xf32>
    %339 = arith.mulf %334, %334 : vector<8x64xf32>
    %cst_96 = arith.constant dense<0.000000e+00> : vector<8xf32>
    %340 = vector.multi_reduction <add>, %339, %cst_96 [1] : vector<8x64xf32> to vector<8xf32>
    %341 = vector.shape_cast %340 : vector<8xf32> to vector<8x1xf32>
    %cst_97 = arith.constant 6.400000e+01 : f32
    %342 = vector.broadcast %cst_97 : f32 to vector<8x1xf32>
    %343 = arith.divf %341, %342 : vector<8x1xf32>
    %344 = arith.mulf %338, %338 : vector<8x1xf32>
    %345 = arith.subf %343, %344 : vector<8x1xf32>
    %cst_98 = arith.constant 0.000000e+00 : f32
    %346 = vector.broadcast %cst_98 : f32 to vector<8x1xf32>
    %347 = arith.maximumf %345, %346 : vector<8x1xf32>
    %348 = vector.broadcast %338 : vector<8x1xf32> to vector<8x64xf32>
    %349 = arith.subf %334, %348 : vector<8x64xf32>
    %cst_99 = arith.constant 9.99999997E-7 : f32
    %350 = vector.broadcast %cst_99 : f32 to vector<8x1xf32>
    %351 = arith.addf %347, %350 : vector<8x1xf32>
    %352 = math.rsqrt %351 : vector<8x1xf32>
    %353 = vector.broadcast %352 : vector<8x1xf32> to vector<8x64xf32>
    %354 = arith.mulf %349, %353 : vector<8x64xf32>
    %355 = vector.broadcast %273 : vector<1x64xf32> to vector<8x64xf32>
    %356 = arith.mulf %354, %355 : vector<8x64xf32>
    %357 = vector.broadcast %274 : vector<1x64xf32> to vector<8x64xf32>
    %358 = arith.addf %356, %357 : vector<8x64xf32>
    %359 = arith.truncf %358 : vector<8x64xf32> to vector<8x64xbf16>
    %cst_100 = arith.constant dense<0.000000e+00> : vector<8x128xf32>
    %360 = tpu.matmul %359, %280, %cst_100 {dimension_numbers = #tpu.dot_dimension_numbers<[1], [0], [0], [1], [0, 0, 1, 1], [], []>} : vector<8x64xbf16>, vector<64x128xbf16>, vector<8x128xf32> -> vector<8x128xf32>
    %361 = vector.broadcast %271 : vector<1x128xf32> to vector<8x128xf32>
    %362 = arith.addf %360, %361 : vector<8x128xf32>
    %cst_101 = arith.constant 0.000000e+00 : f32
    %363 = vector.broadcast %cst_101 : f32 to vector<8x128xf32>
    %364 = arith.maximumf %362, %363 : vector<8x128xf32>
    %365 = arith.truncf %364 : vector<8x128xf32> to vector<8x128xbf16>
    %cst_102 = arith.constant dense<0.000000e+00> : vector<8x64xf32>
    %366 = tpu.matmul %365, %282, %cst_102 {dimension_numbers = #tpu.dot_dimension_numbers<[1], [0], [0], [1], [0, 0, 1, 1], [], []>} : vector<8x128xbf16>, vector<128x64xbf16>, vector<8x64xf32> -> vector<8x64xf32>
    %367 = vector.broadcast %272 : vector<1x64xf32> to vector<8x64xf32>
    %368 = arith.addf %366, %367 : vector<8x64xf32>
    %369 = arith.addf %368, %358 : vector<8x64xf32>
    %cst_103 = arith.constant dense<0.000000e+00> : vector<8xf32>
    %370 = vector.multi_reduction <add>, %369, %cst_103 [1] : vector<8x64xf32> to vector<8xf32>
    %371 = vector.shape_cast %370 : vector<8xf32> to vector<8x1xf32>
    %cst_104 = arith.constant 6.400000e+01 : f32
    %372 = vector.broadcast %cst_104 : f32 to vector<8x1xf32>
    %373 = arith.divf %371, %372 : vector<8x1xf32>
    %374 = arith.mulf %369, %369 : vector<8x64xf32>
    %cst_105 = arith.constant dense<0.000000e+00> : vector<8xf32>
    %375 = vector.multi_reduction <add>, %374, %cst_105 [1] : vector<8x64xf32> to vector<8xf32>
    %376 = vector.shape_cast %375 : vector<8xf32> to vector<8x1xf32>
    %cst_106 = arith.constant 6.400000e+01 : f32
    %377 = vector.broadcast %cst_106 : f32 to vector<8x1xf32>
    %378 = arith.divf %376, %377 : vector<8x1xf32>
    %379 = arith.mulf %373, %373 : vector<8x1xf32>
    %380 = arith.subf %378, %379 : vector<8x1xf32>
    %cst_107 = arith.constant 0.000000e+00 : f32
    %381 = vector.broadcast %cst_107 : f32 to vector<8x1xf32>
    %382 = arith.maximumf %380, %381 : vector<8x1xf32>
    %383 = vector.broadcast %373 : vector<8x1xf32> to vector<8x64xf32>
    %384 = arith.subf %369, %383 : vector<8x64xf32>
    %cst_108 = arith.constant 9.99999997E-7 : f32
    %385 = vector.broadcast %cst_108 : f32 to vector<8x1xf32>
    %386 = arith.addf %382, %385 : vector<8x1xf32>
    %387 = math.rsqrt %386 : vector<8x1xf32>
    %388 = vector.broadcast %387 : vector<8x1xf32> to vector<8x64xf32>
    %389 = arith.mulf %384, %388 : vector<8x64xf32>
    %390 = vector.broadcast %275 : vector<1x64xf32> to vector<8x64xf32>
    %391 = arith.mulf %389, %390 : vector<8x64xf32>
    %392 = vector.broadcast %276 : vector<1x64xf32> to vector<8x64xf32>
    %393 = arith.addf %391, %392 : vector<8x64xf32>
    %cst_109 = arith.constant 0.000000e+00 : f32
    %394 = vector.broadcast %cst_109 : f32 to vector<8x64xf32>
    %395 = arith.maximumf %393, %394 : vector<8x64xf32>
    %396 = arith.truncf %395 : vector<8x64xf32> to vector<8x64xbf16>
    %cst_110 = arith.constant dense<0.000000e+00> : vector<8x64xf32>
    %397 = tpu.matmul %396, %6, %cst_110 {dimension_numbers = #tpu.dot_dimension_numbers<[1], [0], [0], [1], [0, 0, 1, 1], [], []>} : vector<8x64xbf16>, vector<64x64xbf16>, vector<8x64xf32> -> vector<8x64xf32>
    %cst_111 = arith.constant 0.000000e+00 : f32
    %398 = vector.broadcast %cst_111 : f32 to vector<8x64xf32>
    %399 = arith.maximumf %397, %398 : vector<8x64xf32>
    %400 = arith.extui %15 : vector<1x8xi1> to vector<1x8xi32>
    %401 = arith.sitofp %400 : vector<1x8xi32> to vector<1x8xf32>
    %402 = arith.truncf %401 : vector<1x8xf32> to vector<1x8xbf16>
    %403 = arith.truncf %393 : vector<8x64xf32> to vector<8x64xbf16>
    %cst_112 = arith.constant dense<0.000000e+00> : vector<1x64xf32>
    %404 = tpu.matmul %402, %403, %cst_112 {dimension_numbers = #tpu.dot_dimension_numbers<[1], [0], [0], [1], [0, 0, 1, 1], [], []>} : vector<1x8xbf16>, vector<8x64xbf16>, vector<1x64xf32> -> vector<1x64xf32>
    %405 = arith.sitofp %0 : i32 to f32
    %cst_113 = arith.constant 1.000000e+00 : f32
    %406 = arith.divf %cst_113, %405 : f32
    %407 = vector.broadcast %406 : f32 to vector<1x64xf32>
    %408 = arith.mulf %404, %407 : vector<1x64xf32>
    %409 = arith.truncf %408 : vector<1x64xf32> to vector<1x64xbf16>
    %cst_114 = arith.constant dense<0.000000e+00> : vector<1x64xf32>
    %410 = tpu.matmul %409, %7, %cst_114 {dimension_numbers = #tpu.dot_dimension_numbers<[1], [0], [0], [1], [0, 0, 1, 1], [], []>} : vector<1x64xbf16>, vector<64x64xbf16>, vector<1x64xf32> -> vector<1x64xf32>
    %411 = arith.addf %410, %4 : vector<1x64xf32>
    %cst_115 = arith.constant 0.000000e+00 : f32
    %412 = vector.broadcast %cst_115 : f32 to vector<1x64xf32>
    %413 = arith.maximumf %411, %412 : vector<1x64xf32>
    %414 = tpu.iota {dimensions = array<i32: 0>} : vector<8x1xi32>
    %c0_i32 = arith.constant 0 : i32
    %415 = vector.broadcast %c0_i32 : i32 to vector<8x1xi32>
    %416 = arith.cmpi eq, %414, %415 : vector<8x1xi32>
    %cst_116 = arith.constant 0.000000e+00 : f32
    %417 = vector.shape_cast %416 : vector<8x1xi1> to vector<8x1xi1>
    %418 = vector.broadcast %417 : vector<8x1xi1> to vector<8x64xi1>
    %419 = vector.shape_cast %413 : vector<1x64xf32> to vector<1x64xf32>
    %420 = vector.broadcast %419 : vector<1x64xf32> to vector<8x64xf32>
    %421 = vector.broadcast %cst_116 : f32 to vector<8x64xf32>
    %422 = arith.select %418, %420, %421 : vector<8x64xi1>, vector<8x64xf32>
    %423 = tpu.concatenate %399, %422 in 1 : vector<8x64xf32>, vector<8x64xf32> -> vector<8x128xf32>
    %c0_117 = arith.constant 0 : index
    %c0_118 = arith.constant 0 : index
    %424 = vector.load %arg5[%c0_117, %c0_118] : memref<8x128xf32, #tpu.memory_space<vmem>>, vector<8x128xf32>
    tpu.vector_store %arg5[%c0_117, %c0_118], %423 {strides = array<i32>} : memref<8x128xf32, #tpu.memory_space<vmem>>, vector<8x128xf32>,
    return
  }
}

</mosaic_0001>

<llo_original>
// kernel: tpu_custom_call.1
$region0: #{tpu_custom_call.1}
  #allocation0 [shape = 'u32[]', space=smem, size = 0x4, offset = 0x4, fixed_abs, tag = 'smem constant byte address 0x4 - core index']
  #allocation1 [shape = 'u32[144,128]{1,0:T(1,128)}', space=vmem, size = 0x12000, scoped, tag = 'internal scratch']
  #allocation2 [shape = 's32[1,1]{1,0:T(1,128)S(6)}', space=smem, size = 0x200, scoped, tag = 'scoped memory for tpu_custom_call.1']
  %s0 = inlined_call_operand.<no memory space> [shape: s32[1,1], index: 0, kind: input, shape index: {}]
  %s1 = inlined_call_operand.hbm [shape: f32[8,8], index: 1, kind: input, shape index: {}]
  %s2 = inlined_call_operand.hbm [shape: bf16[3,64,384], index: 2, kind: input, shape index: {}]
  %s3 = inlined_call_operand.hbm [shape: bf16[128,384], index: 3, kind: input, shape index: {}]
  %s4 = inlined_call_operand.hbm [shape: f32[4,8,128], index: 4, kind: input, shape index: {}]
  %s5 = inlined_call_operand.hbm [shape: f32[8,128], index: 5, kind: output, shape index: {}]
  %s6 = sld [smem:[#allocation0]]
  $region46: #{tpu_custom_call.1} parent=0
    _
  %s8 = ssub.s32 1, %s6
  %s9 = scalar_select 0, %s8, %s6
  %10 = sst [smem:[#allocation2]] %s0
  $region1: #{tpu_custom_call.1} parent=0
    #allocation3 [shape = 'u8[4096]{0}', space=vmem, size = 0x1000, scoped, tag = 'input window, operand 1, single buffered']
    #allocation4 [shape = 's32[1]{0}', space=sflag, size = 0x4, scoped, tag = 'scoped memory for tpu_custom_call.1']
    #allocation5 [shape = 's32[1]{0}', space=sflag, size = 0x4, scoped, tag = 'scoped memory for tpu_custom_call.1']
    #allocation6 [shape = 'u8[147456]{0}', space=vmem, size = 0x24000, scoped, tag = 'input window, operand 2, single buffered']
    #allocation7 [shape = 's32[1]{0}', space=sflag, size = 0x4, scoped, tag = 'scoped memory for tpu_custom_call.1']
    #allocation8 [shape = 'u8[98304]{0}', space=vmem, size = 0x18000, scoped, tag = 'input window, operand 3, single buffered']
    #allocation9 [shape = 'u8[16384]{0}', space=vmem, size = 0x4000, scoped, tag = 'input window, operand 4, single buffered']
    #allocation10 [shape = 's32[1]{0}', space=sflag, size = 0x4, scoped, tag = 'scoped memory for tpu_custom_call.1']
    #allocation11 [shape = 'u8[4096]{0}', space=vmem, size = 0x1000, scoped, tag = 'output window, operand 0, single buffered']
    %11 = vsyncpa [#allocation4], 0
    %12 = vsyncpa [#allocation7], 0
    %13 = vsyncpa [#allocation10], 0
    %14 = vsyncpa [#allocation5], 0
    // Predicated region
    $region2: #{tpu_custom_call.1} parent=1 // pred_check
      _
    $region3: #{tpu_custom_call.1} parent=1 // pred_check_branch
      %16 = sbr.rel (0) target = $region5
    $region4: #{tpu_custom_call.1} parent=1 // pred_region
      _
    $region5: #{tpu_custom_call.1} parent=1 // pred_fallthru
      _
    // Predicated region
    $region6: #{tpu_custom_call.1} parent=1 // pred_check
      _
    $region7: #{tpu_custom_call.1} parent=1 // pred_check_branch
      %18 = sbr.rel (0) target = $region9
    $region8: #{tpu_custom_call.1} parent=1 // pred_region
      %s20 = ssub.s32 128, 128
      %21 = vsyncadd [#allocation4], %s20
      %s23 = sshll.u32 [#allocation3], 4
      %s24 = int_to_ptr.vmem [resolvable:$true] %s23
      %26 = dma.hbm_to_vmem [thread:$0]  %s1, 128, %s24, [#allocation4]
    $region9: #{tpu_custom_call.1} parent=1 // pred_fallthru
      _
    // Predicated region
    $region10: #{tpu_custom_call.1} parent=1 // pred_check
      _
    $region11: #{tpu_custom_call.1} parent=1 // pred_check_branch
      %28 = sbr.rel (0) target = $region13
    $region12: #{tpu_custom_call.1} parent=1 // pred_region
      %s30 = ssub.s32 4608, 4608
      %31 = vsyncadd [#allocation7], %s30
      %s32 = sshll.u32 [#allocation6], 4
      %s33 = int_to_ptr.vmem [resolvable:$true] %s32
      %38 = dma.hbm_to_vmem [thread:$0]  %s2, 4608, %s33, [#allocation7], 192, 192, 12
    $region13: #{tpu_custom_call.1} parent=1 // pred_fallthru
      _
    // Predicated region
    $region14: #{tpu_custom_call.1} parent=1 // pred_check
      _
    $region15: #{tpu_custom_call.1} parent=1 // pred_check_branch
      %40 = sbr.rel (0) target = $region17
    $region16: #{tpu_custom_call.1} parent=1 // pred_region
      %s42 = ssub.s32 3072, 3072
      %43 = vsyncadd [#allocation7], %s42
      %s44 = sshll.u32 [#allocation8], 4
      %s45 = int_to_ptr.vmem [resolvable:$true] %s44
      %50 = dma.hbm_to_vmem [thread:$0]  %s3, 3072, %s45, [#allocation7], 192, 192, 12
    $region17: #{tpu_custom_call.1} parent=1 // pred_fallthru
      _
    // Predicated region
    $region18: #{tpu_custom_call.1} parent=1 // pred_check
      _
    $region19: #{tpu_custom_call.1} parent=1 // pred_check_branch
      %52 = sbr.rel (0) target = $region21
    $region20: #{tpu_custom_call.1} parent=1 // pred_region
      %s54 = ssub.s32 512, 512
      %55 = vsyncadd [#allocation10], %s54
      %s56 = sshll.u32 [#allocation9], 4
      %s57 = int_to_ptr.vmem [resolvable:$true] %s56
      %62 = dma.hbm_to_vmem [thread:$0]  %s4, 512, %s57, [#allocation10], 128, 128, 8
    $region21: #{tpu_custom_call.1} parent=1 // pred_fallthru
      _
    // Predicated region
    $region22: #{tpu_custom_call.1} parent=1 // pred_check
      _
    $region23: #{tpu_custom_call.1} parent=1 // pred_check_branch
      %64 = sbr.rel (0) target = $region25
    $region24: #{tpu_custom_call.1} parent=1 // pred_region
      %65 = dma.done [#allocation4], 128
    $region25: #{tpu_custom_call.1} parent=1 // pred_fallthru
      _
    // Predicated region
    $region26: #{tpu_custom_call.1} parent=1 // pred_check
      _
    $region27: #{tpu_custom_call.1} parent=1 // pred_check_branch
      %67 = sbr.rel (0) target = $region29
    $region28: #{tpu_custom_call.1} parent=1 // pred_region
      %68 = dma.done [#allocation7], 4608
    $region29: #{tpu_custom_call.1} parent=1 // pred_fallthru
      _
    // Predicated region
    $region30: #{tpu_custom_call.1} parent=1 // pred_check
      _
    $region31: #{tpu_custom_call.1} parent=1 // pred_check_branch
      %70 = sbr.rel (0) target = $region33
    $region32: #{tpu_custom_call.1} parent=1 // pred_region
      %71 = dma.done [#allocation7], 3072
    $region33: #{tpu_custom_call.1} parent=1 // pred_fallthru
      _
    // Predicated region
    $region34: #{tpu_custom_call.1} parent=1 // pred_check
      _
    $region35: #{tpu_custom_call.1} parent=1 // pred_check_branch
      %73 = sbr.rel (0) target = $region37
    $region36: #{tpu_custom_call.1} parent=1 // pred_region
      %74 = dma.done [#allocation10], 512
    $region37: #{tpu_custom_call.1} parent=1 // pred_fallthru
      _
    %s76 = sld [smem:[#allocation2]]
    %s77 = scalar_lea.vmem [#allocation9], 24
    %v78 = vld [vmem:[%s77] sm:$0xff]
    %v79 = vld [vmem:[#allocation8 + $0x8] sm:$0xf]
    %v80 = vld [vmem:[#allocation8 + $0x4] sm:$0xf]
    %v81 = vld [vmem:[#allocation8 + $0x10] sm:$0xf]
    %v82 = vld [vmem:[#allocation8 + $0x1c] sm:$0xf]
    %v83 = vld [vmem:[#allocation8 + $0x28] sm:$0xf]
    %v84 = vld [vmem:[#allocation8 + $0x34] sm:$0xf]
    %v85 = vld [vmem:[#allocation8 + $0x40] sm:$0xf]
    %v86 = vld [vmem:[#allocation8 + $0x4c] sm:$0xf]
    %v87 = vld [vmem:[#allocation8 + $0x58] sm:$0xf]
    %v88 = vld [vmem:[#allocation8 + $0x64] sm:$0xf]
    %v89 = vld [vmem:[#allocation8 + $0x70] sm:$0xf]
    %v90 = vld [vmem:[#allocation8 + $0x7c] sm:$0xf]
    %v91 = vld [vmem:[#allocation8 + $0x88] sm:$0xf]
    %v92 = vld [vmem:[#allocation8 + $0x94] sm:$0xf]
    %v93 = vld [vmem:[#allocation8 + $0xa0] sm:$0xf]
    %v94 = vld [vmem:[#allocation8 + $0xac] sm:$0xf]
    %v95 = vld [vmem:[#allocation8 + $0xb8] sm:$0xf]
    %v96 = vld [vmem:[#allocation3] sm:$0xff]
    %v97 = vpack.c.bf16 %v96, %v96
    %v98 = vlaneseq
    %v99 = vshrl.u32 %v98, 7
    %v100 = vsub.s32 0, %v99
    %v101 = vrot.slane %v78, %v100
    %vm102 = vcmask 64512
    %v104 = vsel %vm102, %v97, 0
    %vm106 = vcmask 1043456
    %v108 = vsel %vm106, %v79, 0
    %110 = vmatprep.subr.bf16.mxu0 0
    %111 = vmatpush1.bf16.msra.mxu0 %v108
    %112 = vmatprep.subr.bf16.mxu0 0
    %113 = vmatpush1.bf16.msra.mxu0 0
    %114 = vmatprep.subr.bf16.mxu0 0
    %115 = vmatpush1.bf16.msra.mxu0 0
    %116 = vmatprep.subr.bf16.mxu0 0
    %117 = vmatpush1.bf16.msra.mxu0 0
    %118 = vmatprep.subr.bf16.mxu0 0
    %119 = vmatpush1.bf16.msra.mxu0 0
    %120 = vmatprep.subr.bf16.mxu0 0
    %121 = vmatpush1.bf16.msra.mxu0 0
    %122 = vmatprep.subr.bf16.mxu0 0
    %123 = vmatpush1.bf16.msra.mxu0 0
    %124 = vmatprep.subr.bf16.mxu0 0
    %125 = vmatpush1.bf16.msra.mxu0 0
    %126 = vmatprep.subr.bf16.mxu0 0
    %127 = vmatpush1.bf16.msra.mxu0 0
    %128 = vmatprep.subr.bf16.mxu0 0
    %129 = vmatpush1.bf16.msra.mxu0 0
    %130 = vmatprep.subr.bf16.mxu0 0
    %131 = vmatpush1.bf16.msra.mxu0 0
    %132 = vmatprep.subr.bf16.mxu0 0
    %133 = vmatpush1.bf16.msra.mxu0 0
    %134 = vmatprep.subr.bf16.mxu0 0
    %135 = vmatpush1.bf16.msra.mxu0 0
    %136 = vmatprep.subr.bf16.mxu0 0
    %137 = vmatpush1.bf16.msra.mxu0 0
    %138 = vmatprep.subr.bf16.mxu0 0
    %139 = vmatpush1.bf16.msra.mxu0 0
    %140 = vmatprep.subr.bf16.mxu0 0
    %141 = vmatpush1.bf16.msra.mxu0 0
    %142 = vmatprep.mubr.bf16.mxu0 0
    %143 = vmatmul.mubr.bf16.gmra.mrb[0].mxu0 %v104
    %v144 = vpop.f32.mrb[0].mxu0
    %v145 = vadd.f32 %v101, %v144
    %v146 = vpop.f32.mrb[0].mxu0
    %v147 = vpop.f32.mrb[0].mxu0
    %v148 = vpop.f32.mrb[0].mxu0
    %149 = vdwg.mxu0
    %v150 = vlaneseq
    %v151 = vand.u32 %v150, 127
    %v152 = vstv %s76
    %vm153 = vcmp.lt.s32.totalorder %v151, %v152
    %v154 = vsel %vm153, 0.0, -1e+30
    %v155 = vld [vmem:[#allocation9] sm:$0xff]
    %v156 = vld [vmem:[#allocation6] sm:$0xff]
    %v157 = vld [vmem:[#allocation6 + $0x8] sm:$0xf]
    %v158 = vld [vmem:[#allocation6 + $0xc] sm:$0xff]
    %v159 = vld [vmem:[#allocation6 + $0x14] sm:$0xf]
    %v160 = vld [vmem:[#allocation6 + $0x18] sm:$0xff]
    %v161 = vld [vmem:[#allocation6 + $0x20] sm:$0xf]
    %v162 = vld [vmem:[#allocation6 + $0x24] sm:$0xff]
    %v163 = vld [vmem:[#allocation6 + $0x2c] sm:$0xf]
    %v164 = vld [vmem:[#allocation6 + $0x30] sm:$0xff]
    %v165 = vld [vmem:[#allocation6 + $0x38] sm:$0xf]
    %v166 = vld [vmem:[#allocation6 + $0x3c] sm:$0xff]
    %v167 = vld [vmem:[#allocation6 + $0x44] sm:$0xf]
    %v168 = vld [vmem:[#allocation6 + $0x48] sm:$0xff]
    %v169 = vld [vmem:[#allocation6 + $0x50] sm:$0xf]
    %v170 = vld [vmem:[#allocation6 + $0x54] sm:$0xff]
    %v171 = vld [vmem:[#allocation6 + $0x5c] sm:$0xf]
    %v172 = vld [vmem:[#allocation8] sm:$0xf]
    %v173 = vld [vmem:[#allocation8 + $0xc] sm:$0xf]
    %v174 = vld [vmem:[#allocation8 + $0x18] sm:$0xf]
    %v175 = vld [vmem:[#allocation8 + $0x24] sm:$0xf]
    %v176 = vld [vmem:[#allocation8 + $0x30] sm:$0xf]
    %v177 = vld [vmem:[#allocation8 + $0x3c] sm:$0xf]
    %v178 = vld [vmem:[#allocation8 + $0x48] sm:$0xf]
    %v179 = vld [vmem:[#allocation8 + $0x54] sm:$0xf]
    %v180 = vld [vmem:[#allocation8 + $0x60] sm:$0xf]
    %v181 = vld [vmem:[#allocation8 + $0x6c] sm:$0xf]
    %v182 = vld [vmem:[#allocation8 + $0x78] sm:$0xf]
    %v183 = vld [vmem:[#allocation8 + $0x84] sm:$0xf]
    %v184 = vld [vmem:[#allocation8 + $0x90] sm:$0xf]
    %v185 = vld [vmem:[#allocation8 + $0x9c] sm:$0xf]
    %v186 = vld [vmem:[#allocation8 + $0xa8] sm:$0xf]
    %v187 = vld [vmem:[#allocation8 + $0xb4] sm:$0xf]
    %v188 = vpack.c.bf16 %v145, %v145
    %v197 = vunpack.c.l.b16 %v156
    %v198 = vunpack.c.h.b16 %v156
    %v199 = vunpack.c.l.b16 %v158
    %v200 = vunpack.c.h.b16 %v158
    %v201 = vunpack.c.l.b16 %v160
    %v202 = vunpack.c.h.b16 %v160
    %v203 = vunpack.c.l.b16 %v162
    %v204 = vunpack.c.h.b16 %v162
    %v205 = vunpack.c.l.b16 %v164
    %v206 = vunpack.c.h.b16 %v164
    %v207 = vunpack.c.l.b16 %v166
    %v208 = vunpack.c.h.b16 %v166
    %v209 = vunpack.c.l.b16 %v168
    %v210 = vunpack.c.h.b16 %v168
    %v211 = vunpack.c.l.b16 %v170
    %v212 = vunpack.c.h.b16 %v170
    %v213 = vpack.c.b16 %v199, %v197
    %v214 = vpack.c.b16 %v200, %v198
    %v215 = vpack.c.b16 %v203, %v201
    %v216 = vpack.c.b16 %v204, %v202
    %v217 = vpack.c.b16 %v207, %v205
    %v218 = vpack.c.b16 %v208, %v206
    %v219 = vpack.c.b16 %v211, %v209
    %v220 = vpack.c.b16 %v212, %v210
    %vm229 = vcmask 523264
    %v231 = vsel %vm229, %v188, 0
    %233 = vmatprep.subr.bf16.mxu0 %v214
    %234 = vmatpush1.bf16.msra.mxu0 %v213
    %235 = vmatprep.subr.bf16.mxu0 %v216
    %236 = vmatpush1.bf16.msra.mxu0 %v215
    %237 = vmatprep.subr.bf16.mxu0 %v218
    %238 = vmatpush1.bf16.msra.mxu0 %v217
    %239 = vmatprep.subr.bf16.mxu0 %v220
    %240 = vmatpush1.bf16.msra.mxu0 %v219
    %241 = vmatprep.subr.bf16.mxu0 0
    %242 = vmatpush1.bf16.msra.mxu0 0
    %243 = vmatprep.subr.bf16.mxu0 0
    %244 = vmatpush1.bf16.msra.mxu0 0
    %245 = vmatprep.subr.bf16.mxu0 0
    %246 = vmatpush1.bf16.msra.mxu0 0
    %247 = vmatprep.subr.bf16.mxu0 0
    %248 = vmatpush1.bf16.msra.mxu0 0
    %249 = vmatprep.subr.bf16.mxu0 0
    %250 = vmatpush1.bf16.msra.mxu0 0
    %251 = vmatprep.subr.bf16.mxu0 0
    %252 = vmatpush1.bf16.msra.mxu0 0
    %253 = vmatprep.subr.bf16.mxu0 0
    %254 = vmatpush1.bf16.msra.mxu0 0
    %255 = vmatprep.subr.bf16.mxu0 0
    %256 = vmatpush1.bf16.msra.mxu0 0
    %257 = vmatprep.subr.bf16.mxu0 0
    %258 = vmatpush1.bf16.msra.mxu0 0
    %259 = vmatprep.subr.bf16.mxu0 0
    %260 = vmatpush1.bf16.msra.mxu0 0
    %261 = vmatprep.subr.bf16.mxu0 0
    %262 = vmatpush1.bf16.msra.mxu0 0
    %263 = vmatprep.subr.bf16.mxu0 0
    %264 = vmatpush1.bf16.msra.mxu0 0
    %265 = vmatprep.mubr.bf16.mxu0 0
    %266 = vmatmul.mubr.bf16.gmra.mrb[0].mxu0 %v231
    %v267 = vpop.f32.mrb[0].mxu0
    %v268 = vadd.f32 0.0, %v267
    %v269 = vpop.f32.mrb[0].mxu0
    %v270 = vadd.f32 0.0, %v269
    %v271 = vpop.f32.mrb[0].mxu0
    %v272 = vpop.f32.mrb[0].mxu0
    %273 = vdwg.mxu0
    %v274 = vpack.c.bf16 %v268, %v268
    %v275 = vpack.c.bf16 %v270, %v270
    %277 = vrot.lane.b32.xlu0 %v274, 64
    %v278 = vpop.permute.xlu0 %277
    %vm279 = vcmask 261120
    %v281 = vsel %vm279, %v274, 0
    %v284 = vsel %vm279, %v278, 0
    %286 = vmatprep.subr.bf16.mxu0 0
    %287 = vmatpush1.bf16.xpose.msra.mxu0 %v284
    %288 = vmatprep.subr.bf16.mxu0 0
    %289 = vmatpush1.bf16.xpose.msra.mxu0 0
    %290 = vmatprep.subr.bf16.mxu0 0
    %291 = vmatpush1.bf16.xpose.msra.mxu0 0
    %292 = vmatprep.subr.bf16.mxu0 0
    %293 = vmatpush1.bf16.xpose.msra.mxu0 0
    %294 = vmatprep.subr.bf16.mxu0 0
    %295 = vmatpush1.bf16.xpose.msra.mxu0 0
    %296 = vmatprep.subr.bf16.mxu0 0
    %297 = vmatpush1.bf16.xpose.msra.mxu0 0
    %298 = vmatprep.subr.bf16.mxu0 0
    %299 = vmatpush1.bf16.xpose.msra.mxu0 0
    %300 = vmatprep.subr.bf16.mxu0 0
    %301 = vmatpush1.bf16.xpose.msra.mxu0 0
    %302 = vmatprep.subr.bf16.mxu0 0
    %303 = vmatpush1.bf16.xpose.msra.mxu0 0
    %304 = vmatprep.subr.bf16.mxu0 0
    %305 = vmatpush1.bf16.xpose.msra.mxu0 0
    %306 = vmatprep.subr.bf16.mxu0 0
    %307 = vmatpush1.bf16.xpose.msra.mxu0 0
    %308 = vmatprep.subr.bf16.mxu0 0
    %309 = vmatpush1.bf16.xpose.msra.mxu0 0
    %310 = vmatprep.subr.bf16.mxu0 0
    %311 = vmatpush1.bf16.xpose.msra.mxu0 0
    %312 = vmatprep.subr.bf16.mxu0 0
    %313 = vmatpush1.bf16.xpose.msra.mxu0 0
    %314 = vmatprep.subr.bf16.mxu0 0
    %315 = vmatpush1.bf16.xpose.msra.mxu0 0
    %316 = vmatprep.subr.bf16.mxu0 0
    %317 = vmatpush1.bf16.xpose.msra.mxu0 0
    %318 = vmatprep.mubr.bf16.mxu0 0
    %319 = vmatmul.mubr.bf16.gmra.mrb[0].mxu0 %v281
    %v320 = vpop.f32.mrb[0].mxu0
    %v321 = vadd.f32 %v154, %v320
    %v322 = vpop.f32.mrb[0].mxu0
    %v323 = vpop.f32.mrb[0].mxu0
    %v324 = vpop.f32.mrb[0].mxu0
    %325 = vdwg.mxu0
    %v326 = vsel %vm102, %v321, -inf
    %327 = vmax.xlane.f32.xlu0 %v326
    %v328 = vpop.xlane.xlu0 %327
    %v329 = vsub.f32 %v321, %v328
    %v330 = vmul.f32 %v329, 1.442695
    %v331 = vpow.pop %v330
    %v332 = vsel %vm102, %v331, 0.0
    %333 = vadd.xlane.f32.xlu0 %v332
    %v334 = vpop.xlane.xlu0 %333
    %v335 = vrcp.pop %v334
    %v336 = vmul.f32 %v331, %v335
    %v337 = vpack.c.bf16 %v336, %v336
    %v339 = vsel %vm102, %v337, 0
    %v342 = vsel %vm106, %v275, 0
    %344 = vmatprep.subr.bf16.mxu0 0
    %345 = vmatpush1.bf16.msra.mxu0 %v342
    %346 = vmatprep.subr.bf16.mxu0 0
    %347 = vmatpush1.bf16.msra.mxu0 0
    %348 = vmatprep.subr.bf16.mxu0 0
    %349 = vmatpush1.bf16.msra.mxu0 0
    %350 = vmatprep.subr.bf16.mxu0 0
    %351 = vmatpush1.bf16.msra.mxu0 0
    %352 = vmatprep.subr.bf16.mxu0 0
    %353 = vmatpush1.bf16.msra.mxu0 0
    %354 = vmatprep.subr.bf16.mxu0 0
    %355 = vmatpush1.bf16.msra.mxu0 0
    %356 = vmatprep.subr.bf16.mxu0 0
    %357 = vmatpush1.bf16.msra.mxu0 0
    %358 = vmatprep.subr.bf16.mxu0 0
    %359 = vmatpush1.bf16.msra.mxu0 0
    %360 = vmatprep.subr.bf16.mxu0 0
    %361 = vmatpush1.bf16.msra.mxu0 0
    %362 = vmatprep.subr.bf16.mxu0 0
    %363 = vmatpush1.bf16.msra.mxu0 0
    %364 = vmatprep.subr.bf16.mxu0 0
    %365 = vmatpush1.bf16.msra.mxu0 0
    %366 = vmatprep.subr.bf16.mxu0 0
    %367 = vmatpush1.bf16.msra.mxu0 0
    %368 = vmatprep.subr.bf16.mxu0 0
    %369 = vmatpush1.bf16.msra.mxu0 0
    %370 = vmatprep.subr.bf16.mxu0 0
    %371 = vmatpush1.bf16.msra.mxu0 0
    %372 = vmatprep.subr.bf16.mxu0 0
    %373 = vmatpush1.bf16.msra.mxu0 0
    %374 = vmatprep.subr.bf16.mxu0 0
    %375 = vmatpush1.bf16.msra.mxu0 0
    %376 = vmatprep.mubr.bf16.mxu0 0
    %377 = vmatmul.mubr.bf16.gmra.mrb[0].mxu0 %v339
    %v378 = vpop.f32.mrb[0].mxu0
    %v379 = vadd.f32 0.0, %v378
    %v380 = vpop.f32.mrb[0].mxu0
    %v381 = vpop.f32.mrb[0].mxu0
    %v382 = vpop.f32.mrb[0].mxu0
    %383 = vdwg.mxu0
    %v384 = vpack.c.bf16 %v379, %v379
    %385 = vrot.lane.b32.xlu0 %v274, 96
    %v386 = vpop.permute.xlu0 %385
    %387 = vrot.lane.b32.xlu0 %v274, 32
    %v388 = vpop.permute.xlu0 %387
    %v390 = vsel %vm279, %v386, 0
    %v393 = vsel %vm279, %v388, 0
    %395 = vmatprep.subr.bf16.mxu0 0
    %396 = vmatpush1.bf16.xpose.msra.mxu0 %v393
    %397 = vmatprep.subr.bf16.mxu0 0
    %398 = vmatpush1.bf16.xpose.msra.mxu0 0
    %399 = vmatprep.subr.bf16.mxu0 0
    %400 = vmatpush1.bf16.xpose.msra.mxu0 0
    %401 = vmatprep.subr.bf16.mxu0 0
    %402 = vmatpush1.bf16.xpose.msra.mxu0 0
    %403 = vmatprep.subr.bf16.mxu0 0
    %404 = vmatpush1.bf16.xpose.msra.mxu0 0
    %405 = vmatprep.subr.bf16.mxu0 0
    %406 = vmatpush1.bf16.xpose.msra.mxu0 0
    %407 = vmatprep.subr.bf16.mxu0 0
    %408 = vmatpush1.bf16.xpose.msra.mxu0 0
    %409 = vmatprep.subr.bf16.mxu0 0
    %410 = vmatpush1.bf16.xpose.msra.mxu0 0
    %411 = vmatprep.subr.bf16.mxu0 0
    %412 = vmatpush1.bf16.xpose.msra.mxu0 0
    %413 = vmatprep.subr.bf16.mxu0 0
    %414 = vmatpush1.bf16.xpose.msra.mxu0 0
    %415 = vmatprep.subr.bf16.mxu0 0
    %416 = vmatpush1.bf16.xpose.msra.mxu0 0
    %417 = vmatprep.subr.bf16.mxu0 0
    %418 = vmatpush1.bf16.xpose.msra.mxu0 0
    %419 = vmatprep.subr.bf16.mxu0 0
    %420 = vmatpush1.bf16.xpose.msra.mxu0 0
    %421 = vmatprep.subr.bf16.mxu0 0
    %422 = vmatpush1.bf16.xpose.msra.mxu0 0
    %423 = vmatprep.subr.bf16.mxu0 0
    %424 = vmatpush1.bf16.xpose.msra.mxu0 0
    %425 = vmatprep.subr.bf16.mxu0 0
    %426 = vmatpush1.bf16.xpose.msra.mxu0 0
    %427 = vmatprep.mubr.bf16.mxu0 0
    %428 = vmatmul.mubr.bf16.gmra.mrb[0].mxu0 %v390
    %v429 = vpop.f32.mrb[0].mxu0
    %v430 = vadd.f32 %v154, %v429
    %v431 = vpop.f32.mrb[0].mxu0
    %v432 = vpop.f32.mrb[0].mxu0
    %v433 = vpop.f32.mrb[0].mxu0
    %434 = vdwg.mxu0
    %v435 = vsel %vm102, %v430, -inf
    %436 = vmax.xlane.f32.xlu0 %v435
    %v437 = vpop.xlane.xlu0 %436
    %v438 = vsub.f32 %v430, %v437
    %v439 = vmul.f32 %v438, 1.442695
    %v440 = vpow.pop %v439
    %v441 = vsel %vm102, %v440, 0.0
    %442 = vadd.xlane.f32.xlu0 %v441
    %v443 = vpop.xlane.xlu0 %442
    %v444 = vrcp.pop %v443
    %v445 = vmul.f32 %v440, %v444
    %v446 = vpack.c.bf16 %v445, %v445
    %448 = vrot.lane.b32.xlu0 %v275, 96
    %v449 = vpop.permute.xlu0 %448
    %v451 = vsel %vm102, %v446, 0
    %v454 = vsel %vm106, %v449, 0
    %456 = vmatprep.subr.bf16.mxu0 0
    %457 = vmatpush1.bf16.msra.mxu0 %v454
    %458 = vmatprep.subr.bf16.mxu0 0
    %459 = vmatpush1.bf16.msra.mxu0 0
    %460 = vmatprep.subr.bf16.mxu0 0
    %461 = vmatpush1.bf16.msra.mxu0 0
    %462 = vmatprep.subr.bf16.mxu0 0
    %463 = vmatpush1.bf16.msra.mxu0 0
    %464 = vmatprep.subr.bf16.mxu0 0
    %465 = vmatpush1.bf16.msra.mxu0 0
    %466 = vmatprep.subr.bf16.mxu0 0
    %467 = vmatpush1.bf16.msra.mxu0 0
    %468 = vmatprep.subr.bf16.mxu0 0
    %469 = vmatpush1.bf16.msra.mxu0 0
    %470 = vmatprep.subr.bf16.mxu0 0
    %471 = vmatpush1.bf16.msra.mxu0 0
    %472 = vmatprep.subr.bf16.mxu0 0
    %473 = vmatpush1.bf16.msra.mxu0 0
    %474 = vmatprep.subr.bf16.mxu0 0
    %475 = vmatpush1.bf16.msra.mxu0 0
    %476 = vmatprep.subr.bf16.mxu0 0
    %477 = vmatpush1.bf16.msra.mxu0 0
    %478 = vmatprep.subr.bf16.mxu0 0
    %479 = vmatpush1.bf16.msra.mxu0 0
    %480 = vmatprep.subr.bf16.mxu0 0
    %481 = vmatpush1.bf16.msra.mxu0 0
    %482 = vmatprep.subr.bf16.mxu0 0
    %483 = vmatpush1.bf16.msra.mxu0 0
    %484 = vmatprep.subr.bf16.mxu0 0
    %485 = vmatpush1.bf16.msra.mxu0 0
    %486 = vmatprep.subr.bf16.mxu0 0
    %487 = vmatpush1.bf16.msra.mxu0 0
    %488 = vmatprep.mubr.bf16.mxu0 0
    %489 = vmatmul.mubr.bf16.gmra.mrb[0].mxu0 %v451
    %v490 = vpop.f32.mrb[0].mxu0
    %v491 = vadd.f32 0.0, %v490
    %v492 = vpop.f32.mrb[0].mxu0
    %v493 = vpop.f32.mrb[0].mxu0
    %v494 = vpop.f32.mrb[0].mxu0
    %495 = vdwg.mxu0
    %v496 = vpack.c.bf16 %v491, %v491
    %v501 = vunpack.c.l.b16 %v165
    %v502 = vunpack.c.l.b16 %v167
    %v503 = vunpack.c.l.b16 %v169
    %v504 = vunpack.c.l.b16 %v171
    %v505 = vpack.c.b16 %v502, %v501
    %v506 = vpack.c.b16 %v504, %v503
    %507 = vrot.lane.b32.xlu0 %v505, 64
    %v508 = vpop.permute.xlu0 %507
    %509 = vrot.lane.b32.xlu0 %v506, 64
    %v510 = vpop.permute.xlu0 %509
    %v514 = vsel %vm279, %v496, 0
    %516 = vmatprep.subr.bf16.mxu0 0
    %517 = vmatpush1.bf16.msra.mxu0 %v508
    %518 = vmatprep.subr.bf16.mxu0 0
    %519 = vmatpush1.bf16.msra.mxu0 %v510
    %520 = vmatprep.subr.bf16.mxu0 0
    %521 = vmatpush1.bf16.msra.mxu0 0
    %522 = vmatprep.subr.bf16.mxu0 0
    %523 = vmatpush1.bf16.msra.mxu0 0
    %524 = vmatprep.subr.bf16.mxu0 0
    %525 = vmatpush1.bf16.msra.mxu0 0
    %526 = vmatprep.subr.bf16.mxu0 0
    %527 = vmatpush1.bf16.msra.mxu0 0
    %528 = vmatprep.subr.bf16.mxu0 0
    %529 = vmatpush1.bf16.msra.mxu0 0
    %530 = vmatprep.subr.bf16.mxu0 0
    %531 = vmatpush1.bf16.msra.mxu0 0
    %532 = vmatprep.subr.bf16.mxu0 0
    %533 = vmatpush1.bf16.msra.mxu0 0
    %534 = vmatprep.subr.bf16.mxu0 0
    %535 = vmatpush1.bf16.msra.mxu0 0
    %536 = vmatprep.subr.bf16.mxu0 0
    %537 = vmatpush1.bf16.msra.mxu0 0
    %538 = vmatprep.subr.bf16.mxu0 0
    %539 = vmatpush1.bf16.msra.mxu0 0
    %540 = vmatprep.subr.bf16.mxu0 0
    %541 = vmatpush1.bf16.msra.mxu0 0
    %542 = vmatprep.subr.bf16.mxu0 0
    %543 = vmatpush1.bf16.msra.mxu0 0
    %544 = vmatprep.subr.bf16.mxu0 0
    %545 = vmatpush1.bf16.msra.mxu0 0
    %546 = vmatprep.subr.bf16.mxu0 0
    %547 = vmatpush1.bf16.msra.mxu0 0
    %548 = vmatprep.mubr.bf16.mxu0 0
    %549 = vmatmul.mubr.bf16.gmra.mrb[0].mxu0 %v514
    %v550 = vpop.f32.mrb[0].mxu0
    %v551 = vadd.f32 0.0, %v550
    %v552 = vpop.f32.mrb[0].mxu0
    %v553 = vpop.f32.mrb[0].mxu0
    %v554 = vpop.f32.mrb[0].mxu0
    %555 = vdwg.mxu0
    %v560 = vunpack.c.l.b16 %v157
    %v561 = vunpack.c.l.b16 %v159
    %v562 = vunpack.c.l.b16 %v161
    %v563 = vunpack.c.l.b16 %v163
    %v564 = vpack.c.b16 %v561, %v560
    %v565 = vpack.c.b16 %v563, %v562
    %566 = vrot.lane.b32.xlu0 %v564, 64
    %v567 = vpop.permute.xlu0 %566
    %568 = vrot.lane.b32.xlu0 %v565, 64
    %v569 = vpop.permute.xlu0 %568
    %v573 = vsel %vm279, %v384, 0
    %575 = vmatprep.subr.bf16.mxu0 0
    %576 = vmatpush1.bf16.msra.mxu0 %v567
    %577 = vmatprep.subr.bf16.mxu0 0
    %578 = vmatpush1.bf16.msra.mxu0 %v569
    %579 = vmatprep.subr.bf16.mxu0 0
    %580 = vmatpush1.bf16.msra.mxu0 0
    %581 = vmatprep.subr.bf16.mxu0 0
    %582 = vmatpush1.bf16.msra.mxu0 0
    %583 = vmatprep.subr.bf16.mxu0 0
    %584 = vmatpush1.bf16.msra.mxu0 0
    %585 = vmatprep.subr.bf16.mxu0 0
    %586 = vmatpush1.bf16.msra.mxu0 0
    %587 = vmatprep.subr.bf16.mxu0 0
    %588 = vmatpush1.bf16.msra.mxu0 0
    %589 = vmatprep.subr.bf16.mxu0 0
    %590 = vmatpush1.bf16.msra.mxu0 0
    %591 = vmatprep.subr.bf16.mxu0 0
    %592 = vmatpush1.bf16.msra.mxu0 0
    %593 = vmatprep.subr.bf16.mxu0 0
    %594 = vmatpush1.bf16.msra.mxu0 0
    %595 = vmatprep.subr.bf16.mxu0 0
    %596 = vmatpush1.bf16.msra.mxu0 0
    %597 = vmatprep.subr.bf16.mxu0 0
    %598 = vmatpush1.bf16.msra.mxu0 0
    %599 = vmatprep.subr.bf16.mxu0 0
    %600 = vmatpush1.bf16.msra.mxu0 0
    %601 = vmatprep.subr.bf16.mxu0 0
    %602 = vmatpush1.bf16.msra.mxu0 0
    %603 = vmatprep.subr.bf16.mxu0 0
    %604 = vmatpush1.bf16.msra.mxu0 0
    %605 = vmatprep.subr.bf16.mxu0 0
    %606 = vmatpush1.bf16.msra.mxu0 0
    %607 = vmatprep.mubr.bf16.mxu0 0
    %608 = vmatmul.mubr.bf16.gmra.mrb[0].mxu0 %v573
    %v609 = vpop.f32.mrb[0].mxu0
    %v610 = vadd.f32 %v551, %v609
    %v611 = vpop.f32.mrb[0].mxu0
    %v612 = vpop.f32.mrb[0].mxu0
    %v613 = vpop.f32.mrb[0].mxu0
    %614 = vdwg.mxu0
    %v615 = vadd.f32 %v610, %v145
    %v616 = vsel %vm229, %v615, 0.0
    %617 = vadd.xlane.f32.xlu0 %v616
    %v618 = vpop.xlane.xlu0 %617
    %v619 = vrcp.pop 64.0
    %v620 = vmul.f32 %v618, %v619
    %v621 = vmul.f32 %v615, %v615
    %v622 = vsel %vm229, %v621, 0.0
    %623 = vadd.xlane.f32.xlu0 %v622
    %v624 = vpop.xlane.xlu0 %623
    %v625 = vmul.f32 %v624, %v619
    %v626 = vmul.f32 %v620, %v620
    %v627 = vsub.f32 %v625, %v626
    %v628 = vmax.f32 %v627, 0.0
    %v629 = vsub.f32 %v615, %v620
    %v630 = vadd.f32 %v628, 1e-06
    %v631 = vrsqrt.pop %v630
    %v632 = vmul.f32 %v629, %v631
    %v633 = vlaneseq
    %v634 = vshrl.u32 %v633, 7
    %v635 = vsub.s32 2, %v634
    %v636 = vrot.slane %v155, %v635
    %v637 = vmul.f32 %v632, %v636
    %v638 = vlaneseq
    %v639 = vshrl.u32 %v638, 7
    %v640 = vsub.s32 3, %v639
    %v641 = vrot.slane %v155, %v640
    %v642 = vadd.f32 %v637, %v641
    %v643 = vpack.c.bf16 %v642, %v642
    %v644 = vlaneseq
    %v645 = vshrl.u32 %v644, 7
    %v646 = vsub.s32 0, %v645
    %v647 = vrot.slane %v155, %v646
    %648 = vrot.lane.b32.xlu0 %v214, 64
    %v649 = vpop.permute.xlu0 %648
    %650 = vrot.lane.b32.xlu0 %v216, 64
    %v651 = vpop.permute.xlu0 %650
    %652 = vrot.lane.b32.xlu0 %v218, 64
    %v653 = vpop.permute.xlu0 %652
    %654 = vrot.lane.b32.xlu0 %v220, 64
    %v655 = vpop.permute.xlu0 %654
    %vm656 = vcmask 523264
    %v657 = vsel %vm656, %v649, %v567
    %v658 = vsel %vm656, %v651, %v569
    %v659 = vsel %vm656, %v653, %v508
    %v660 = vsel %vm656, %v655, %v510
    %v666 = vsel %vm229, %v643, 0
    %668 = vmatprep.subr.bf16.mxu0 0
    %669 = vmatpush1.bf16.msra.mxu0 %v657
    %670 = vmatprep.subr.bf16.mxu0 0
    %671 = vmatpush1.bf16.msra.mxu0 %v658
    %672 = vmatprep.subr.bf16.mxu0 0
    %673 = vmatpush1.bf16.msra.mxu0 %v659
    %674 = vmatprep.subr.bf16.mxu0 0
    %675 = vmatpush1.bf16.msra.mxu0 %v660
    %676 = vmatprep.subr.bf16.mxu0 0
    %677 = vmatpush1.bf16.msra.mxu0 0
    %678 = vmatprep.subr.bf16.mxu0 0
    %679 = vmatpush1.bf16.msra.mxu0 0
    %680 = vmatprep.subr.bf16.mxu0 0
    %681 = vmatpush1.bf16.msra.mxu0 0
    %682 = vmatprep.subr.bf16.mxu0 0
    %683 = vmatpush1.bf16.msra.mxu0 0
    %684 = vmatprep.subr.bf16.mxu0 0
    %685 = vmatpush1.bf16.msra.mxu0 0
    %686 = vmatprep.subr.bf16.mxu0 0
    %687 = vmatpush1.bf16.msra.mxu0 0
    %688 = vmatprep.subr.bf16.mxu0 0
    %689 = vmatpush1.bf16.msra.mxu0 0
    %690 = vmatprep.subr.bf16.mxu0 0
    %691 = vmatpush1.bf16.msra.mxu0 0
    %692 = vmatprep.subr.bf16.mxu0 0
    %693 = vmatpush1.bf16.msra.mxu0 0
    %694 = vmatprep.subr.bf16.mxu0 0
    %695 = vmatpush1.bf16.msra.mxu0 0
    %696 = vmatprep.subr.bf16.mxu0 0
    %697 = vmatpush1.bf16.msra.mxu0 0
    %698 = vmatprep.subr.bf16.mxu0 0
    %699 = vmatpush1.bf16.msra.mxu0 0
    %700 = vmatprep.mubr.bf16.mxu0 0
    %701 = vmatmul.mubr.bf16.gmra.mrb[0].mxu0 %v666
    %v702 = vpop.f32.mrb[0].mxu0
    %v703 = vadd.f32 %v647, %v702
    %v704 = vpop.f32.mrb[0].mxu0
    %v705 = vpop.f32.mrb[0].mxu0
    %v706 = vpop.f32.mrb[0].mxu0
    %707 = vdwg.mxu0
    %v708 = vmax.f32 %v703, 0.0
    %v709 = vpack.c.bf16 %v708, %v708
    %v710 = vlaneseq
    %v711 = vshrl.u32 %v710, 7
    %v712 = vsub.s32 1, %v711
    %v713 = vrot.slane %v155, %v712
    %v730 = vunpack.c.l.b16 %v172
    %v731 = vunpack.c.l.b16 %v173
    %v732 = vunpack.c.l.b16 %v174
    %v733 = vunpack.c.l.b16 %v175
    %v734 = vunpack.c.l.b16 %v176
    %v735 = vunpack.c.l.b16 %v177
    %v736 = vunpack.c.l.b16 %v178
    %v737 = vunpack.c.l.b16 %v179
    %v738 = vunpack.c.l.b16 %v180
    %v739 = vunpack.c.l.b16 %v181
    %v740 = vunpack.c.l.b16 %v182
    %v741 = vunpack.c.l.b16 %v183
    %v742 = vunpack.c.l.b16 %v184
    %v743 = vunpack.c.l.b16 %v185
    %v744 = vunpack.c.l.b16 %v186
    %v745 = vunpack.c.l.b16 %v187
    %v746 = vpack.c.b16 %v731, %v730
    %v747 = vpack.c.b16 %v733, %v732
    %v748 = vpack.c.b16 %v735, %v734
    %v749 = vpack.c.b16 %v737, %v736
    %v750 = vpack.c.b16 %v739, %v738
    %v751 = vpack.c.b16 %v741, %v740
    %v752 = vpack.c.b16 %v743, %v742
    %v753 = vpack.c.b16 %v745, %v744
    %762 = vmatprep.subr.bf16.mxu0 0
    %763 = vmatpush1.bf16.msra.mxu0 %v746
    %764 = vmatprep.subr.bf16.mxu0 0
    %765 = vmatpush1.bf16.msra.mxu0 %v747
    %766 = vmatprep.subr.bf16.mxu0 0
    %767 = vmatpush1.bf16.msra.mxu0 %v748
    %768 = vmatprep.subr.bf16.mxu0 0
    %769 = vmatpush1.bf16.msra.mxu0 %v749
    %770 = vmatprep.subr.bf16.mxu0 0
    %771 = vmatpush1.bf16.msra.mxu0 %v750
    %772 = vmatprep.subr.bf16.mxu0 0
    %773 = vmatpush1.bf16.msra.mxu0 %v751
    %774 = vmatprep.subr.bf16.mxu0 0
    %775 = vmatpush1.bf16.msra.mxu0 %v752
    %776 = vmatprep.subr.bf16.mxu0 0
    %777 = vmatpush1.bf16.msra.mxu0 %v753
    %778 = vmatprep.subr.bf16.mxu0 0
    %779 = vmatpush1.bf16.msra.mxu0 0
    %780 = vmatprep.subr.bf16.mxu0 0
    %781 = vmatpush1.bf16.msra.mxu0 0
    %782 = vmatprep.subr.bf16.mxu0 0
    %783 = vmatpush1.bf16.msra.mxu0 0
    %784 = vmatprep.subr.bf16.mxu0 0
    %785 = vmatpush1.bf16.msra.mxu0 0
    %786 = vmatprep.subr.bf16.mxu0 0
    %787 = vmatpush1.bf16.msra.mxu0 0
    %788 = vmatprep.subr.bf16.mxu0 0
    %789 = vmatpush1.bf16.msra.mxu0 0
    %790 = vmatprep.subr.bf16.mxu0 0
    %791 = vmatpush1.bf16.msra.mxu0 0
    %792 = vmatprep.subr.bf16.mxu0 0
    %793 = vmatpush1.bf16.msra.mxu0 0
    %794 = vmatprep.mubr.bf16.mxu0 0
    %795 = vmatmul.mubr.bf16.gmra.mrb[0].mxu0 %v709
    %v796 = vpop.f32.mrb[0].mxu0
    %v797 = vadd.f32 %v713, %v796
    %v798 = vpop.f32.mrb[0].mxu0
    %v799 = vpop.f32.mrb[0].mxu0
    %v800 = vpop.f32.mrb[0].mxu0
    %801 = vdwg.mxu0
    %v802 = vadd.f32 %v797, %v642
    %v803 = vsel %vm229, %v802, 0.0
    %804 = vadd.xlane.f32.xlu0 %v803
    %v805 = vpop.xlane.xlu0 %804
    %v806 = vmul.f32 %v805, %v619
    %v807 = vmul.f32 %v802, %v802
    %v808 = vsel %vm229, %v807, 0.0
    %809 = vadd.xlane.f32.xlu0 %v808
    %v810 = vpop.xlane.xlu0 %809
    %v811 = vmul.f32 %v810, %v619
    %v812 = vmul.f32 %v806, %v806
    %v813 = vsub.f32 %v811, %v812
    %v814 = vmax.f32 %v813, 0.0
    %v815 = vsub.f32 %v802, %v806
    %v816 = vadd.f32 %v814, 1e-06
    %v817 = vrsqrt.pop %v816
    %v818 = vmul.f32 %v815, %v817
    %v819 = vlaneseq
    %v820 = vshrl.u32 %v819, 7
    %v821 = vsub.s32 4, %v820
    %v822 = vrot.slane %v155, %v821
    %v823 = vmul.f32 %v818, %v822
    %v824 = vlaneseq
    %v825 = vshrl.u32 %v824, 7
    %v826 = vsub.s32 5, %v825
    %v827 = vrot.slane %v155, %v826
    %v828 = vadd.f32 %v823, %v827
    %s829 = scalar_lea.vmem [#allocation9], 8
    %v830 = vld [vmem:[%s829] sm:$0xff]
    %s831 = scalar_lea.vmem [#allocation6], 96
    %v832 = vld [vmem:[%s831] sm:$0xff]
    %v833 = vld [vmem:[%s831 + $0x8] sm:$0xf]
    %v834 = vld [vmem:[%s831 + $0xc] sm:$0xff]
    %v835 = vld [vmem:[%s831 + $0x14] sm:$0xf]
    %v836 = vld [vmem:[%s831 + $0x18] sm:$0xff]
    %v837 = vld [vmem:[%s831 + $0x20] sm:$0xf]
    %v838 = vld [vmem:[%s831 + $0x24] sm:$0xff]
    %v839 = vld [vmem:[%s831 + $0x2c] sm:$0xf]
    %v840 = vld [vmem:[%s831 + $0x30] sm:$0xff]
    %v841 = vld [vmem:[%s831 + $0x38] sm:$0xf]
    %v842 = vld [vmem:[%s831 + $0x3c] sm:$0xff]
    %v843 = vld [vmem:[%s831 + $0x44] sm:$0xf]
    %v844 = vld [vmem:[%s831 + $0x48] sm:$0xff]
    %v845 = vld [vmem:[%s831 + $0x50] sm:$0xf]
    %v846 = vld [vmem:[%s831 + $0x54] sm:$0xff]
    %v847 = vld [vmem:[%s831 + $0x5c] sm:$0xf]
    %v848 = vpack.c.bf16 %v828, %v828
    %v857 = vunpack.c.l.b16 %v832
    %v858 = vunpack.c.h.b16 %v832
    %v859 = vunpack.c.l.b16 %v834
    %v860 = vunpack.c.h.b16 %v834
    %v861 = vunpack.c.l.b16 %v836
    %v862 = vunpack.c.h.b16 %v836
    %v863 = vunpack.c.l.b16 %v838
    %v864 = vunpack.c.h.b16 %v838
    %v865 = vunpack.c.l.b16 %v840
    %v866 = vunpack.c.h.b16 %v840
    %v867 = vunpack.c.l.b16 %v842
    %v868 = vunpack.c.h.b16 %v842
    %v869 = vunpack.c.l.b16 %v844
    %v870 = vunpack.c.h.b16 %v844
    %v871 = vunpack.c.l.b16 %v846
    %v872 = vunpack.c.h.b16 %v846
    %v873 = vpack.c.b16 %v859, %v857
    %v874 = vpack.c.b16 %v860, %v858
    %v875 = vpack.c.b16 %v863, %v861
    %v876 = vpack.c.b16 %v864, %v862
    %v877 = vpack.c.b16 %v867, %v865
    %v878 = vpack.c.b16 %v868, %v866
    %v879 = vpack.c.b16 %v871, %v869
    %v880 = vpack.c.b16 %v872, %v870
    %v890 = vsel %vm229, %v848, 0
    %892 = vmatprep.subr.bf16.mxu0 %v874
    %893 = vmatpush1.bf16.msra.mxu0 %v873
    %894 = vmatprep.subr.bf16.mxu0 %v876
    %895 = vmatpush1.bf16.msra.mxu0 %v875
    %896 = vmatprep.subr.bf16.mxu0 %v878
    %897 = vmatpush1.bf16.msra.mxu0 %v877
    %898 = vmatprep.subr.bf16.mxu0 %v880
    %899 = vmatpush1.bf16.msra.mxu0 %v879
    %900 = vmatprep.subr.bf16.mxu0 0
    %901 = vmatpush1.bf16.msra.mxu0 0
    %902 = vmatprep.subr.bf16.mxu0 0
    %903 = vmatpush1.bf16.msra.mxu0 0
    %904 = vmatprep.subr.bf16.mxu0 0
    %905 = vmatpush1.bf16.msra.mxu0 0
    %906 = vmatprep.subr.bf16.mxu0 0
    %907 = vmatpush1.bf16.msra.mxu0 0
    %908 = vmatprep.subr.bf16.mxu0 0
    %909 = vmatpush1.bf16.msra.mxu0 0
    %910 = vmatprep.subr.bf16.mxu0 0
    %911 = vmatpush1.bf16.msra.mxu0 0
    %912 = vmatprep.subr.bf16.mxu0 0
    %913 = vmatpush1.bf16.msra.mxu0 0
    %914 = vmatprep.subr.bf16.mxu0 0
    %915 = vmatpush1.bf16.msra.mxu0 0
    %916 = vmatprep.subr.bf16.mxu0 0
    %917 = vmatpush1.bf16.msra.mxu0 0
    %918 = vmatprep.subr.bf16.mxu0 0
    %919 = vmatpush1.bf16.msra.mxu0 0
    %920 = vmatprep.subr.bf16.mxu0 0
    %921 = vmatpush1.bf16.msra.mxu0 0
    %922 = vmatprep.subr.bf16.mxu0 0
    %923 = vmatpush1.bf16.msra.mxu0 0
    %924 = vmatprep.mubr.bf16.mxu0 0
    %925 = vmatmul.mubr.bf16.gmra.mrb[0].mxu0 %v890
    %v926 = vpop.f32.mrb[0].mxu0
    %v927 = vadd.f32 0.0, %v926
    %v928 = vpop.f32.mrb[0].mxu0
    %v929 = vadd.f32 0.0, %v928
    %v930 = vpop.f32.mrb[0].mxu0
    %v931 = vpop.f32.mrb[0].mxu0
    %932 = vdwg.mxu0
    %v933 = vpack.c.bf16 %v927, %v927
    %v934 = vpack.c.bf16 %v929, %v929
    %936 = vrot.lane.b32.xlu0 %v933, 64
    %v937 = vpop.permute.xlu0 %936
    %v939 = vsel %vm279, %v933, 0
    %v942 = vsel %vm279, %v937, 0
    %944 = vmatprep.subr.bf16.mxu0 0
    %945 = vmatpush1.bf16.xpose.msra.mxu0 %v942
    %946 = vmatprep.subr.bf16.mxu0 0
    %947 = vmatpush1.bf16.xpose.msra.mxu0 0
    %948 = vmatprep.subr.bf16.mxu0 0
    %949 = vmatpush1.bf16.xpose.msra.mxu0 0
    %950 = vmatprep.subr.bf16.mxu0 0
    %951 = vmatpush1.bf16.xpose.msra.mxu0 0
    %952 = vmatprep.subr.bf16.mxu0 0
    %953 = vmatpush1.bf16.xpose.msra.mxu0 0
    %954 = vmatprep.subr.bf16.mxu0 0
    %955 = vmatpush1.bf16.xpose.msra.mxu0 0
    %956 = vmatprep.subr.bf16.mxu0 0
    %957 = vmatpush1.bf16.xpose.msra.mxu0 0
    %958 = vmatprep.subr.bf16.mxu0 0
    %959 = vmatpush1.bf16.xpose.msra.mxu0 0
    %960 = vmatprep.subr.bf16.mxu0 0
    %961 = vmatpush1.bf16.xpose.msra.mxu0 0
    %962 = vmatprep.subr.bf16.mxu0 0
    %963 = vmatpush1.bf16.xpose.msra.mxu0 0
    %964 = vmatprep.subr.bf16.mxu0 0
    %965 = vmatpush1.bf16.xpose.msra.mxu0 0
    %966 = vmatprep.subr.bf16.mxu0 0
    %967 = vmatpush1.bf16.xpose.msra.mxu0 0
    %968 = vmatprep.subr.bf16.mxu0 0
    %969 = vmatpush1.bf16.xpose.msra.mxu0 0
    %970 = vmatprep.subr.bf16.mxu0 0
    %971 = vmatpush1.bf16.xpose.msra.mxu0 0
    %972 = vmatprep.subr.bf16.mxu0 0
    %973 = vmatpush1.bf16.xpose.msra.mxu0 0
    %974 = vmatprep.subr.bf16.mxu0 0
    %975 = vmatpush1.bf16.xpose.msra.mxu0 0
    %976 = vmatprep.mubr.bf16.mxu0 0
    %977 = vmatmul.mubr.bf16.gmra.mrb[0].mxu0 %v939
    %v978 = vpop.f32.mrb[0].mxu0
    %v979 = vadd.f32 %v154, %v978
    %v980 = vpop.f32.mrb[0].mxu0
    %v981 = vpop.f32.mrb[0].mxu0
    %v982 = vpop.f32.mrb[0].mxu0
    %983 = vdwg.mxu0
    %v984 = vsel %vm102, %v979, -inf
    %985 = vmax.xlane.f32.xlu0 %v984
    %v986 = vpop.xlane.xlu0 %985
    %v987 = vsub.f32 %v979, %v986
    %v988 = vmul.f32 %v987, 1.442695
    %v989 = vpow.pop %v988
    %v990 = vsel %vm102, %v989, 0.0
    %991 = vadd.xlane.f32.xlu0 %v990
    %v992 = vpop.xlane.xlu0 %991
    %v993 = vrcp.pop %v992
    %v994 = vmul.f32 %v989, %v993
    %v995 = vpack.c.bf16 %v994, %v994
    %v997 = vsel %vm102, %v995, 0
    %v1000 = vsel %vm106, %v934, 0
    %1002 = vmatprep.subr.bf16.mxu0 0
    %1003 = vmatpush1.bf16.msra.mxu0 %v1000
    %1004 = vmatprep.subr.bf16.mxu0 0
    %1005 = vmatpush1.bf16.msra.mxu0 0
    %1006 = vmatprep.subr.bf16.mxu0 0
    %1007 = vmatpush1.bf16.msra.mxu0 0
    %1008 = vmatprep.subr.bf16.mxu0 0
    %1009 = vmatpush1.bf16.msra.mxu0 0
    %1010 = vmatprep.subr.bf16.mxu0 0
    %1011 = vmatpush1.bf16.msra.mxu0 0
    %1012 = vmatprep.subr.bf16.mxu0 0
    %1013 = vmatpush1.bf16.msra.mxu0 0
    %1014 = vmatprep.subr.bf16.mxu0 0
    %1015 = vmatpush1.bf16.msra.mxu0 0
    %1016 = vmatprep.subr.bf16.mxu0 0
    %1017 = vmatpush1.bf16.msra.mxu0 0
    %1018 = vmatprep.subr.bf16.mxu0 0
    %1019 = vmatpush1.bf16.msra.mxu0 0
    %1020 = vmatprep.subr.bf16.mxu0 0
    %1021 = vmatpush1.bf16.msra.mxu0 0
    %1022 = vmatprep.subr.bf16.mxu0 0
    %1023 = vmatpush1.bf16.msra.mxu0 0
    %1024 = vmatprep.subr.bf16.mxu0 0
    %1025 = vmatpush1.bf16.msra.mxu0 0
    %1026 = vmatprep.subr.bf16.mxu0 0
    %1027 = vmatpush1.bf16.msra.mxu0 0
    %1028 = vmatprep.subr.bf16.mxu0 0
    %1029 = vmatpush1.bf16.msra.mxu0 0
    %1030 = vmatprep.subr.bf16.mxu0 0
    %1031 = vmatpush1.bf16.msra.mxu0 0
    %1032 = vmatprep.subr.bf16.mxu0 0
    %1033 = vmatpush1.bf16.msra.mxu0 0
    %1034 = vmatprep.mubr.bf16.mxu0 0
    %1035 = vmatmul.mubr.bf16.gmra.mrb[0].mxu0 %v997
    %v1036 = vpop.f32.mrb[0].mxu0
    %v1037 = vadd.f32 0.0, %v1036
    %v1038 = vpop.f32.mrb[0].mxu0
    %v1039 = vpop.f32.mrb[0].mxu0
    %v1040 = vpop.f32.mrb[0].mxu0
    %1041 = vdwg.mxu0
    %v1042 = vpack.c.bf16 %v1037, %v1037
    %1043 = vrot.lane.b32.xlu0 %v933, 96
    %v1044 = vpop.permute.xlu0 %1043
    %1045 = vrot.lane.b32.xlu0 %v933, 32
    %v1046 = vpop.permute.xlu0 %1045
    %v1048 = vsel %vm279, %v1044, 0
    %v1051 = vsel %vm279, %v1046, 0
    %1053 = vmatprep.subr.bf16.mxu0 0
    %1054 = vmatpush1.bf16.xpose.msra.mxu0 %v1051
    %1055 = vmatprep.subr.bf16.mxu0 0
    %1056 = vmatpush1.bf16.xpose.msra.mxu0 0
    %1057 = vmatprep.subr.bf16.mxu0 0
    %1058 = vmatpush1.bf16.xpose.msra.mxu0 0
    %1059 = vmatprep.subr.bf16.mxu0 0
    %1060 = vmatpush1.bf16.xpose.msra.mxu0 0
    %1061 = vmatprep.subr.bf16.mxu0 0
    %1062 = vmatpush1.bf16.xpose.msra.mxu0 0
    %1063 = vmatprep.subr.bf16.mxu0 0
    %1064 = vmatpush1.bf16.xpose.msra.mxu0 0
    %1065 = vmatprep.subr.bf16.mxu0 0
    %1066 = vmatpush1.bf16.xpose.msra.mxu0 0
    %1067 = vmatprep.subr.bf16.mxu0 0
    %1068 = vmatpush1.bf16.xpose.msra.mxu0 0
    %1069 = vmatprep.subr.bf16.mxu0 0
    %1070 = vmatpush1.bf16.xpose.msra.mxu0 0
    %1071 = vmatprep.subr.bf16.mxu0 0
    %1072 = vmatpush1.bf16.xpose.msra.mxu0 0
    %1073 = vmatprep.subr.bf16.mxu0 0
    %1074 = vmatpush1.bf16.xpose.msra.mxu0 0
    %1075 = vmatprep.subr.bf16.mxu0 0
    %1076 = vmatpush1.bf16.xpose.msra.mxu0 0
    %1077 = vmatprep.subr.bf16.mxu0 0
    %1078 = vmatpush1.bf16.xpose.msra.mxu0 0
    %1079 = vmatprep.subr.bf16.mxu0 0
    %1080 = vmatpush1.bf16.xpose.msra.mxu0 0
    %1081 = vmatprep.subr.bf16.mxu0 0
    %1082 = vmatpush1.bf16.xpose.msra.mxu0 0
    %1083 = vmatprep.subr.bf16.mxu0 0
    %1084 = vmatpush1.bf16.xpose.msra.mxu0 0
    %1085 = vmatprep.mubr.bf16.mxu0 0
    %1086 = vmatmul.mubr.bf16.gmra.mrb[0].mxu0 %v1048
    %v1087 = vpop.f32.mrb[0].mxu0
    %v1088 = vadd.f32 %v154, %v1087
    %v1089 = vpop.f32.mrb[0].mxu0
    %v1090 = vpop.f32.mrb[0].mxu0
    %v1091 = vpop.f32.mrb[0].mxu0
    %1092 = vdwg.mxu0
    %v1093 = vsel %vm102, %v1088, -inf
    %1094 = vmax.xlane.f32.xlu0 %v1093
    %v1095 = vpop.xlane.xlu0 %1094
    %v1096 = vsub.f32 %v1088, %v1095
    %v1097 = vmul.f32 %v1096, 1.442695
    %v1098 = vpow.pop %v1097
    %v1099 = vsel %vm102, %v1098, 0.0
    %1100 = vadd.xlane.f32.xlu0 %v1099
    %v1101 = vpop.xlane.xlu0 %1100
    %v1102 = vrcp.pop %v1101
    %v1103 = vmul.f32 %v1098, %v1102
    %v1104 = vpack.c.bf16 %v1103, %v1103
    %1106 = vrot.lane.b32.xlu0 %v934, 96
    %v1107 = vpop.permute.xlu0 %1106
    %v1109 = vsel %vm102, %v1104, 0
    %v1112 = vsel %vm106, %v1107, 0
    %1114 = vmatprep.subr.bf16.mxu0 0
    %1115 = vmatpush1.bf16.msra.mxu0 %v1112
    %1116 = vmatprep.subr.bf16.mxu0 0
    %1117 = vmatpush1.bf16.msra.mxu0 0
    %1118 = vmatprep.subr.bf16.mxu0 0
    %1119 = vmatpush1.bf16.msra.mxu0 0
    %1120 = vmatprep.subr.bf16.mxu0 0
    %1121 = vmatpush1.bf16.msra.mxu0 0
    %1122 = vmatprep.subr.bf16.mxu0 0
    %1123 = vmatpush1.bf16.msra.mxu0 0
    %1124 = vmatprep.subr.bf16.mxu0 0
    %1125 = vmatpush1.bf16.msra.mxu0 0
    %1126 = vmatprep.subr.bf16.mxu0 0
    %1127 = vmatpush1.bf16.msra.mxu0 0
    %1128 = vmatprep.subr.bf16.mxu0 0
    %1129 = vmatpush1.bf16.msra.mxu0 0
    %1130 = vmatprep.subr.bf16.mxu0 0
    %1131 = vmatpush1.bf16.msra.mxu0 0
    %1132 = vmatprep.subr.bf16.mxu0 0
    %1133 = vmatpush1.bf16.msra.mxu0 0
    %1134 = vmatprep.subr.bf16.mxu0 0
    %1135 = vmatpush1.bf16.msra.mxu0 0
    %1136 = vmatprep.subr.bf16.mxu0 0
    %1137 = vmatpush1.bf16.msra.mxu0 0
    %1138 = vmatprep.subr.bf16.mxu0 0
    %1139 = vmatpush1.bf16.msra.mxu0 0
    %1140 = vmatprep.subr.bf16.mxu0 0
    %1141 = vmatpush1.bf16.msra.mxu0 0
    %1142 = vmatprep.subr.bf16.mxu0 0
    %1143 = vmatpush1.bf16.msra.mxu0 0
    %1144 = vmatprep.subr.bf16.mxu0 0
    %1145 = vmatpush1.bf16.msra.mxu0 0
    %1146 = vmatprep.mubr.bf16.mxu0 0
    %1147 = vmatmul.mubr.bf16.gmra.mrb[0].mxu0 %v1109
    %v1148 = vpop.f32.mrb[0].mxu0
    %v1149 = vadd.f32 0.0, %v1148
    %v1150 = vpop.f32.mrb[0].mxu0
    %v1151 = vpop.f32.mrb[0].mxu0
    %v1152 = vpop.f32.mrb[0].mxu0
    %1153 = vdwg.mxu0
    %v1154 = vpack.c.bf16 %v1149, %v1149
    %v1159 = vunpack.c.l.b16 %v841
    %v1160 = vunpack.c.l.b16 %v843
    %v1161 = vunpack.c.l.b16 %v845
    %v1162 = vunpack.c.l.b16 %v847
    %v1163 = vpack.c.b16 %v1160, %v1159
    %v1164 = vpack.c.b16 %v1162, %v1161
    %1165 = vrot.lane.b32.xlu0 %v1163, 64
    %v1166 = vpop.permute.xlu0 %1165
    %1167 = vrot.lane.b32.xlu0 %v1164, 64
    %v1168 = vpop.permute.xlu0 %1167
    %v1172 = vsel %vm279, %v1154, 0
    %1174 = vmatprep.subr.bf16.mxu0 0
    %1175 = vmatpush1.bf16.msra.mxu0 %v1166
    %1176 = vmatprep.subr.bf16.mxu0 0
    %1177 = vmatpush1.bf16.msra.mxu0 %v1168
    %1178 = vmatprep.subr.bf16.mxu0 0
    %1179 = vmatpush1.bf16.msra.mxu0 0
    %1180 = vmatprep.subr.bf16.mxu0 0
    %1181 = vmatpush1.bf16.msra.mxu0 0
    %1182 = vmatprep.subr.bf16.mxu0 0
    %1183 = vmatpush1.bf16.msra.mxu0 0
    %1184 = vmatprep.subr.bf16.mxu0 0
    %1185 = vmatpush1.bf16.msra.mxu0 0
    %1186 = vmatprep.subr.bf16.mxu0 0
    %1187 = vmatpush1.bf16.msra.mxu0 0
    %1188 = vmatprep.subr.bf16.mxu0 0
    %1189 = vmatpush1.bf16.msra.mxu0 0
    %1190 = vmatprep.subr.bf16.mxu0 0
    %1191 = vmatpush1.bf16.msra.mxu0 0
    %1192 = vmatprep.subr.bf16.mxu0 0
    %1193 = vmatpush1.bf16.msra.mxu0 0
    %1194 = vmatprep.subr.bf16.mxu0 0
    %1195 = vmatpush1.bf16.msra.mxu0 0
    %1196 = vmatprep.subr.bf16.mxu0 0
    %1197 = vmatpush1.bf16.msra.mxu0 0
    %1198 = vmatprep.subr.bf16.mxu0 0
    %1199 = vmatpush1.bf16.msra.mxu0 0
    %1200 = vmatprep.subr.bf16.mxu0 0
    %1201 = vmatpush1.bf16.msra.mxu0 0
    %1202 = vmatprep.subr.bf16.mxu0 0
    %1203 = vmatpush1.bf16.msra.mxu0 0
    %1204 = vmatprep.subr.bf16.mxu0 0
    %1205 = vmatpush1.bf16.msra.mxu0 0
    %1206 = vmatprep.mubr.bf16.mxu0 0
    %1207 = vmatmul.mubr.bf16.gmra.mrb[0].mxu0 %v1172
    %v1208 = vpop.f32.mrb[0].mxu0
    %v1209 = vadd.f32 0.0, %v1208
    %v1210 = vpop.f32.mrb[0].mxu0
    %v1211 = vpop.f32.mrb[0].mxu0
    %v1212 = vpop.f32.mrb[0].mxu0
    %1213 = vdwg.mxu0
    %v1218 = vunpack.c.l.b16 %v833
    %v1219 = vunpack.c.l.b16 %v835
    %v1220 = vunpack.c.l.b16 %v837
    %v1221 = vunpack.c.l.b16 %v839
    %v1222 = vpack.c.b16 %v1219, %v1218
    %v1223 = vpack.c.b16 %v1221, %v1220
    %1224 = vrot.lane.b32.xlu0 %v1222, 64
    %v1225 = vpop.permute.xlu0 %1224
    %1226 = vrot.lane.b32.xlu0 %v1223, 64
    %v1227 = vpop.permute.xlu0 %1226
    %v1231 = vsel %vm279, %v1042, 0
    %1233 = vmatprep.subr.bf16.mxu0 0
    %1234 = vmatpush1.bf16.msra.mxu0 %v1225
    %1235 = vmatprep.subr.bf16.mxu0 0
    %1236 = vmatpush1.bf16.msra.mxu0 %v1227
    %1237 = vmatprep.subr.bf16.mxu0 0
    %1238 = vmatpush1.bf16.msra.mxu0 0
    %1239 = vmatprep.subr.bf16.mxu0 0
    %1240 = vmatpush1.bf16.msra.mxu0 0
    %1241 = vmatprep.subr.bf16.mxu0 0
    %1242 = vmatpush1.bf16.msra.mxu0 0
    %1243 = vmatprep.subr.bf16.mxu0 0
    %1244 = vmatpush1.bf16.msra.mxu0 0
    %1245 = vmatprep.subr.bf16.mxu0 0
    %1246 = vmatpush1.bf16.msra.mxu0 0
    %1247 = vmatprep.subr.bf16.mxu0 0
    %1248 = vmatpush1.bf16.msra.mxu0 0
    %1249 = vmatprep.subr.bf16.mxu0 0
    %1250 = vmatpush1.bf16.msra.mxu0 0
    %1251 = vmatprep.subr.bf16.mxu0 0
    %1252 = vmatpush1.bf16.msra.mxu0 0
    %1253 = vmatprep.subr.bf16.mxu0 0
    %1254 = vmatpush1.bf16.msra.mxu0 0
    %1255 = vmatprep.subr.bf16.mxu0 0
    %1256 = vmatpush1.bf16.msra.mxu0 0
    %1257 = vmatprep.subr.bf16.mxu0 0
    %1258 = vmatpush1.bf16.msra.mxu0 0
    %1259 = vmatprep.subr.bf16.mxu0 0
    %1260 = vmatpush1.bf16.msra.mxu0 0
    %1261 = vmatprep.subr.bf16.mxu0 0
    %1262 = vmatpush1.bf16.msra.mxu0 0
    %1263 = vmatprep.subr.bf16.mxu0 0
    %1264 = vmatpush1.bf16.msra.mxu0 0
    %1265 = vmatprep.mubr.bf16.mxu0 0
    %1266 = vmatmul.mubr.bf16.gmra.mrb[0].mxu0 %v1231
    %v1267 = vpop.f32.mrb[0].mxu0
    %v1268 = vadd.f32 %v1209, %v1267
    %v1269 = vpop.f32.mrb[0].mxu0
    %v1270 = vpop.f32.mrb[0].mxu0
    %v1271 = vpop.f32.mrb[0].mxu0
    %1272 = vdwg.mxu0
    %v1273 = vadd.f32 %v1268, %v828
    %v1274 = vsel %vm229, %v1273, 0.0
    %1275 = vadd.xlane.f32.xlu0 %v1274
    %v1276 = vpop.xlane.xlu0 %1275
    %v1277 = vmul.f32 %v1276, %v619
    %v1278 = vmul.f32 %v1273, %v1273
    %v1279 = vsel %vm229, %v1278, 0.0
    %1280 = vadd.xlane.f32.xlu0 %v1279
    %v1281 = vpop.xlane.xlu0 %1280
    %v1282 = vmul.f32 %v1281, %v619
    %v1283 = vmul.f32 %v1277, %v1277
    %v1284 = vsub.f32 %v1282, %v1283
    %v1285 = vmax.f32 %v1284, 0.0
    %v1286 = vsub.f32 %v1273, %v1277
    %v1287 = vadd.f32 %v1285, 1e-06
    %v1288 = vrsqrt.pop %v1287
    %v1289 = vmul.f32 %v1286, %v1288
    %v1290 = vlaneseq
    %v1291 = vshrl.u32 %v1290, 7
    %v1292 = vsub.s32 2, %v1291
    %v1293 = vrot.slane %v830, %v1292
    %v1294 = vmul.f32 %v1289, %v1293
    %v1295 = vlaneseq
    %v1296 = vshrl.u32 %v1295, 7
    %v1297 = vsub.s32 3, %v1296
    %v1298 = vrot.slane %v830, %v1297
    %v1299 = vadd.f32 %v1294, %v1298
    %v1300 = vpack.c.bf16 %v1299, %v1299
    %v1301 = vlaneseq
    %v1302 = vshrl.u32 %v1301, 7
    %v1303 = vsub.s32 0, %v1302
    %v1304 = vrot.slane %v830, %v1303
    %1305 = vrot.lane.b32.xlu0 %v874, 64
    %v1306 = vpop.permute.xlu0 %1305
    %1307 = vrot.lane.b32.xlu0 %v876, 64
    %v1308 = vpop.permute.xlu0 %1307
    %1309 = vrot.lane.b32.xlu0 %v878, 64
    %v1310 = vpop.permute.xlu0 %1309
    %1311 = vrot.lane.b32.xlu0 %v880, 64
    %v1312 = vpop.permute.xlu0 %1311
    %v1313 = vsel %vm656, %v1306, %v1225
    %v1314 = vsel %vm656, %v1308, %v1227
    %v1315 = vsel %vm656, %v1310, %v1166
    %v1316 = vsel %vm656, %v1312, %v1168
    %v1322 = vsel %vm229, %v1300, 0
    %1324 = vmatprep.subr.bf16.mxu0 0
    %1325 = vmatpush1.bf16.msra.mxu0 %v1313
    %1326 = vmatprep.subr.bf16.mxu0 0
    %1327 = vmatpush1.bf16.msra.mxu0 %v1314
    %1328 = vmatprep.subr.bf16.mxu0 0
    %1329 = vmatpush1.bf16.msra.mxu0 %v1315
    %1330 = vmatprep.subr.bf16.mxu0 0
    %1331 = vmatpush1.bf16.msra.mxu0 %v1316
    %1332 = vmatprep.subr.bf16.mxu0 0
    %1333 = vmatpush1.bf16.msra.mxu0 0
    %1334 = vmatprep.subr.bf16.mxu0 0
    %1335 = vmatpush1.bf16.msra.mxu0 0
    %1336 = vmatprep.subr.bf16.mxu0 0
    %1337 = vmatpush1.bf16.msra.mxu0 0
    %1338 = vmatprep.subr.bf16.mxu0 0
    %1339 = vmatpush1.bf16.msra.mxu0 0
    %1340 = vmatprep.subr.bf16.mxu0 0
    %1341 = vmatpush1.bf16.msra.mxu0 0
    %1342 = vmatprep.subr.bf16.mxu0 0
    %1343 = vmatpush1.bf16.msra.mxu0 0
    %1344 = vmatprep.subr.bf16.mxu0 0
    %1345 = vmatpush1.bf16.msra.mxu0 0
    %1346 = vmatprep.subr.bf16.mxu0 0
    %1347 = vmatpush1.bf16.msra.mxu0 0
    %1348 = vmatprep.subr.bf16.mxu0 0
    %1349 = vmatpush1.bf16.msra.mxu0 0
    %1350 = vmatprep.subr.bf16.mxu0 0
    %1351 = vmatpush1.bf16.msra.mxu0 0
    %1352 = vmatprep.subr.bf16.mxu0 0
    %1353 = vmatpush1.bf16.msra.mxu0 0
    %1354 = vmatprep.subr.bf16.mxu0 0
    %1355 = vmatpush1.bf16.msra.mxu0 0
    %1356 = vmatprep.mubr.bf16.mxu0 0
    %1357 = vmatmul.mubr.bf16.gmra.mrb[0].mxu0 %v1322
    %v1358 = vpop.f32.mrb[0].mxu0
    %v1359 = vadd.f32 %v1304, %v1358
    %v1360 = vpop.f32.mrb[0].mxu0
    %v1361 = vpop.f32.mrb[0].mxu0
    %v1362 = vpop.f32.mrb[0].mxu0
    %1363 = vdwg.mxu0
    %v1364 = vmax.f32 %v1359, 0.0
    %v1365 = vpack.c.bf16 %v1364, %v1364
    %v1366 = vlaneseq
    %v1367 = vshrl.u32 %v1366, 7
    %v1368 = vsub.s32 1, %v1367
    %v1369 = vrot.slane %v830, %v1368
    %1370 = vrot.lane.b32.xlu0 %v746, 64
    %v1371 = vpop.permute.xlu0 %1370
    %1372 = vrot.lane.b32.xlu0 %v747, 64
    %v1373 = vpop.permute.xlu0 %1372
    %1374 = vrot.lane.b32.xlu0 %v748, 64
    %v1375 = vpop.permute.xlu0 %1374
    %1376 = vrot.lane.b32.xlu0 %v749, 64
    %v1377 = vpop.permute.xlu0 %1376
    %1378 = vrot.lane.b32.xlu0 %v750, 64
    %v1379 = vpop.permute.xlu0 %1378
    %1380 = vrot.lane.b32.xlu0 %v751, 64
    %v1381 = vpop.permute.xlu0 %1380
    %1382 = vrot.lane.b32.xlu0 %v752, 64
    %v1383 = vpop.permute.xlu0 %1382
    %1384 = vrot.lane.b32.xlu0 %v753, 64
    %v1385 = vpop.permute.xlu0 %1384
    %1394 = vmatprep.subr.bf16.mxu0 0
    %1395 = vmatpush1.bf16.msra.mxu0 %v1371
    %1396 = vmatprep.subr.bf16.mxu0 0
    %1397 = vmatpush1.bf16.msra.mxu0 %v1373
    %1398 = vmatprep.subr.bf16.mxu0 0
    %1399 = vmatpush1.bf16.msra.mxu0 %v1375
    %1400 = vmatprep.subr.bf16.mxu0 0
    %1401 = vmatpush1.bf16.msra.mxu0 %v1377
    %1402 = vmatprep.subr.bf16.mxu0 0
    %1403 = vmatpush1.bf16.msra.mxu0 %v1379
    %1404 = vmatprep.subr.bf16.mxu0 0
    %1405 = vmatpush1.bf16.msra.mxu0 %v1381
    %1406 = vmatprep.subr.bf16.mxu0 0
    %1407 = vmatpush1.bf16.msra.mxu0 %v1383
    %1408 = vmatprep.subr.bf16.mxu0 0
    %1409 = vmatpush1.bf16.msra.mxu0 %v1385
    %1410 = vmatprep.subr.bf16.mxu0 0
    %1411 = vmatpush1.bf16.msra.mxu0 0
    %1412 = vmatprep.subr.bf16.mxu0 0
    %1413 = vmatpush1.bf16.msra.mxu0 0
    %1414 = vmatprep.subr.bf16.mxu0 0
    %1415 = vmatpush1.bf16.msra.mxu0 0
    %1416 = vmatprep.subr.bf16.mxu0 0
    %1417 = vmatpush1.bf16.msra.mxu0 0
    %1418 = vmatprep.subr.bf16.mxu0 0
    %1419 = vmatpush1.bf16.msra.mxu0 0
    %1420 = vmatprep.subr.bf16.mxu0 0
    %1421 = vmatpush1.bf16.msra.mxu0 0
    %1422 = vmatprep.subr.bf16.mxu0 0
    %1423 = vmatpush1.bf16.msra.mxu0 0
    %1424 = vmatprep.subr.bf16.mxu0 0
    %1425 = vmatpush1.bf16.msra.mxu0 0
    %1426 = vmatprep.mubr.bf16.mxu0 0
    %1427 = vmatmul.mubr.bf16.gmra.mrb[0].mxu0 %v1365
    %v1428 = vpop.f32.mrb[0].mxu0
    %v1429 = vadd.f32 %v1369, %v1428
    %v1430 = vpop.f32.mrb[0].mxu0
    %v1431 = vpop.f32.mrb[0].mxu0
    %v1432 = vpop.f32.mrb[0].mxu0
    %1433 = vdwg.mxu0
    %v1434 = vadd.f32 %v1429, %v1299
    %v1435 = vsel %vm229, %v1434, 0.0
    %1436 = vadd.xlane.f32.xlu0 %v1435
    %v1437 = vpop.xlane.xlu0 %1436
    %v1438 = vmul.f32 %v1437, %v619
    %v1439 = vmul.f32 %v1434, %v1434
    %v1440 = vsel %vm229, %v1439, 0.0
    %1441 = vadd.xlane.f32.xlu0 %v1440
    %v1442 = vpop.xlane.xlu0 %1441
    %v1443 = vmul.f32 %v1442, %v619
    %v1444 = vmul.f32 %v1438, %v1438
    %v1445 = vsub.f32 %v1443, %v1444
    %v1446 = vmax.f32 %v1445, 0.0
    %v1447 = vsub.f32 %v1434, %v1438
    %v1448 = vadd.f32 %v1446, 1e-06
    %v1449 = vrsqrt.pop %v1448
    %v1450 = vmul.f32 %v1447, %v1449
    %v1451 = vlaneseq
    %v1452 = vshrl.u32 %v1451, 7
    %v1453 = vsub.s32 4, %v1452
    %v1454 = vrot.slane %v830, %v1453
    %v1455 = vmul.f32 %v1450, %v1454
    %v1456 = vlaneseq
    %v1457 = vshrl.u32 %v1456, 7
    %v1458 = vsub.s32 5, %v1457
    %v1459 = vrot.slane %v830, %v1458
    %v1460 = vadd.f32 %v1455, %v1459
    %s1461 = scalar_lea.vmem [#allocation9], 16
    %v1462 = vld [vmem:[%s1461] sm:$0xff]
    %s1463 = scalar_lea.vmem [#allocation6], 192
    %v1464 = vld [vmem:[%s1463] sm:$0xff]
    %v1465 = vld [vmem:[%s1463 + $0x8] sm:$0xf]
    %v1466 = vld [vmem:[%s1463 + $0xc] sm:$0xff]
    %v1467 = vld [vmem:[%s1463 + $0x14] sm:$0xf]
    %v1468 = vld [vmem:[%s1463 + $0x18] sm:$0xff]
    %v1469 = vld [vmem:[%s1463 + $0x20] sm:$0xf]
    %v1470 = vld [vmem:[%s1463 + $0x24] sm:$0xff]
    %v1471 = vld [vmem:[%s1463 + $0x2c] sm:$0xf]
    %v1472 = vld [vmem:[%s1463 + $0x30] sm:$0xff]
    %v1473 = vld [vmem:[%s1463 + $0x38] sm:$0xf]
    %v1474 = vld [vmem:[%s1463 + $0x3c] sm:$0xff]
    %v1475 = vld [vmem:[%s1463 + $0x44] sm:$0xf]
    %v1476 = vld [vmem:[%s1463 + $0x48] sm:$0xff]
    %v1477 = vld [vmem:[%s1463 + $0x50] sm:$0xf]
    %v1478 = vld [vmem:[%s1463 + $0x54] sm:$0xff]
    %v1479 = vld [vmem:[%s1463 + $0x5c] sm:$0xf]
    %v1480 = vld [vmem:[#allocation8 + $0x4] sm:$0xf]
    %v1481 = vld [vmem:[#allocation8 + $0x10] sm:$0xf]
    %v1482 = vld [vmem:[#allocation8 + $0x1c] sm:$0xf]
    %v1483 = vld [vmem:[#allocation8 + $0x28] sm:$0xf]
    %v1484 = vld [vmem:[#allocation8 + $0x34] sm:$0xf]
    %v1485 = vld [vmem:[#allocation8 + $0x40] sm:$0xf]
    %v1486 = vld [vmem:[#allocation8 + $0x4c] sm:$0xf]
    %v1487 = vld [vmem:[#allocation8 + $0x58] sm:$0xf]
    %v1488 = vpack.c.bf16 %v1460, %v1460
    %v1497 = vunpack.c.l.b16 %v1464
    %v1498 = vunpack.c.h.b16 %v1464
    %v1499 = vunpack.c.l.b16 %v1466
    %v1500 = vunpack.c.h.b16 %v1466
    %v1501 = vunpack.c.l.b16 %v1468
    %v1502 = vunpack.c.h.b16 %v1468
    %v1503 = vunpack.c.l.b16 %v1470
    %v1504 = vunpack.c.h.b16 %v1470
    %v1505 = vunpack.c.l.b16 %v1472
    %v1506 = vunpack.c.h.b16 %v1472
    %v1507 = vunpack.c.l.b16 %v1474
    %v1508 = vunpack.c.h.b16 %v1474
    %v1509 = vunpack.c.l.b16 %v1476
    %v1510 = vunpack.c.h.b16 %v1476
    %v1511 = vunpack.c.l.b16 %v1478
    %v1512 = vunpack.c.h.b16 %v1478
    %v1513 = vpack.c.b16 %v1499, %v1497
    %v1514 = vpack.c.b16 %v1500, %v1498
    %v1515 = vpack.c.b16 %v1503, %v1501
    %v1516 = vpack.c.b16 %v1504, %v1502
    %v1517 = vpack.c.b16 %v1507, %v1505
    %v1518 = vpack.c.b16 %v1508, %v1506
    %v1519 = vpack.c.b16 %v1511, %v1509
    %v1520 = vpack.c.b16 %v1512, %v1510
    %v1530 = vsel %vm229, %v1488, 0
    %1532 = vmatprep.subr.bf16.mxu0 %v1514
    %1533 = vmatpush1.bf16.msra.mxu0 %v1513
    %1534 = vmatprep.subr.bf16.mxu0 %v1516
    %1535 = vmatpush1.bf16.msra.mxu0 %v1515
    %1536 = vmatprep.subr.bf16.mxu0 %v1518
    %1537 = vmatpush1.bf16.msra.mxu0 %v1517
    %1538 = vmatprep.subr.bf16.mxu0 %v1520
    %1539 = vmatpush1.bf16.msra.mxu0 %v1519
    %1540 = vmatprep.subr.bf16.mxu0 0
    %1541 = vmatpush1.bf16.msra.mxu0 0
    %1542 = vmatprep.subr.bf16.mxu0 0
    %1543 = vmatpush1.bf16.msra.mxu0 0
    %1544 = vmatprep.subr.bf16.mxu0 0
    %1545 = vmatpush1.bf16.msra.mxu0 0
    %1546 = vmatprep.subr.bf16.mxu0 0
    %1547 = vmatpush1.bf16.msra.mxu0 0
    %1548 = vmatprep.subr.bf16.mxu0 0
    %1549 = vmatpush1.bf16.msra.mxu0 0
    %1550 = vmatprep.subr.bf16.mxu0 0
    %1551 = vmatpush1.bf16.msra.mxu0 0
    %1552 = vmatprep.subr.bf16.mxu0 0
    %1553 = vmatpush1.bf16.msra.mxu0 0
    %1554 = vmatprep.subr.bf16.mxu0 0
    %1555 = vmatpush1.bf16.msra.mxu0 0
    %1556 = vmatprep.subr.bf16.mxu0 0
    %1557 = vmatpush1.bf16.msra.mxu0 0
    %1558 = vmatprep.subr.bf16.mxu0 0
    %1559 = vmatpush1.bf16.msra.mxu0 0
    %1560 = vmatprep.subr.bf16.mxu0 0
    %1561 = vmatpush1.bf16.msra.mxu0 0
    %1562 = vmatprep.subr.bf16.mxu0 0
    %1563 = vmatpush1.bf16.msra.mxu0 0
    %1564 = vmatprep.mubr.bf16.mxu0 0
    %1565 = vmatmul.mubr.bf16.gmra.mrb[0].mxu0 %v1530
    %v1566 = vpop.f32.mrb[0].mxu0
    %v1567 = vadd.f32 0.0, %v1566
    %v1568 = vpop.f32.mrb[0].mxu0
    %v1569 = vadd.f32 0.0, %v1568
    %v1570 = vpop.f32.mrb[0].mxu0
    %v1571 = vpop.f32.mrb[0].mxu0
    %1572 = vdwg.mxu0
    %v1573 = vpack.c.bf16 %v1567, %v1567
    %v1574 = vpack.c.bf16 %v1569, %v1569
    %1576 = vrot.lane.b32.xlu0 %v1573, 64
    %v1577 = vpop.permute.xlu0 %1576
    %v1579 = vsel %vm279, %v1573, 0
    %v1582 = vsel %vm279, %v1577, 0
    %1584 = vmatprep.subr.bf16.mxu0 0
    %1585 = vmatpush1.bf16.xpose.msra.mxu0 %v1582
    %1586 = vmatprep.subr.bf16.mxu0 0
    %1587 = vmatpush1.bf16.xpose.msra.mxu0 0
    %1588 = vmatprep.subr.bf16.mxu0 0
    %1589 = vmatpush1.bf16.xpose.msra.mxu0 0
    %1590 = vmatprep.subr.bf16.mxu0 0
    %1591 = vmatpush1.bf16.xpose.msra.mxu0 0
    %1592 = vmatprep.subr.bf16.mxu0 0
    %1593 = vmatpush1.bf16.xpose.msra.mxu0 0
    %1594 = vmatprep.subr.bf16.mxu0 0
    %1595 = vmatpush1.bf16.xpose.msra.mxu0 0
    %1596 = vmatprep.subr.bf16.mxu0 0
    %1597 = vmatpush1.bf16.xpose.msra.mxu0 0
    %1598 = vmatprep.subr.bf16.mxu0 0
    %1599 = vmatpush1.bf16.xpose.msra.mxu0 0
    %1600 = vmatprep.subr.bf16.mxu0 0
    %1601 = vmatpush1.bf16.xpose.msra.mxu0 0
    %1602 = vmatprep.subr.bf16.mxu0 0
    %1603 = vmatpush1.bf16.xpose.msra.mxu0 0
    %1604 = vmatprep.subr.bf16.mxu0 0
    %1605 = vmatpush1.bf16.xpose.msra.mxu0 0
    %1606 = vmatprep.subr.bf16.mxu0 0
    %1607 = vmatpush1.bf16.xpose.msra.mxu0 0
    %1608 = vmatprep.subr.bf16.mxu0 0
    %1609 = vmatpush1.bf16.xpose.msra.mxu0 0
    %1610 = vmatprep.subr.bf16.mxu0 0
    %1611 = vmatpush1.bf16.xpose.msra.mxu0 0
    %1612 = vmatprep.subr.bf16.mxu0 0
    %1613 = vmatpush1.bf16.xpose.msra.mxu0 0
    %1614 = vmatprep.subr.bf16.mxu0 0
    %1615 = vmatpush1.bf16.xpose.msra.mxu0 0
    %1616 = vmatprep.mubr.bf16.mxu0 0
    %1617 = vmatmul.mubr.bf16.gmra.mrb[0].mxu0 %v1579
    %v1618 = vpop.f32.mrb[0].mxu0
    %v1619 = vadd.f32 %v154, %v1618
    %v1620 = vpop.f32.mrb[0].mxu0
    %v1621 = vpop.f32.mrb[0].mxu0
    %v1622 = vpop.f32.mrb[0].mxu0
    %1623 = vdwg.mxu0
    %v1624 = vsel %vm102, %v1619, -inf
    %1625 = vmax.xlane.f32.xlu0 %v1624
    %v1626 = vpop.xlane.xlu0 %1625
    %v1627 = vsub.f32 %v1619, %v1626
    %v1628 = vmul.f32 %v1627, 1.442695
    %v1629 = vpow.pop %v1628
    %v1630 = vsel %vm102, %v1629, 0.0
    %1631 = vadd.xlane.f32.xlu0 %v1630
    %v1632 = vpop.xlane.xlu0 %1631
    %v1633 = vrcp.pop %v1632
    %v1634 = vmul.f32 %v1629, %v1633
    %v1635 = vpack.c.bf16 %v1634, %v1634
    %v1637 = vsel %vm102, %v1635, 0
    %v1640 = vsel %vm106, %v1574, 0
    %1642 = vmatprep.subr.bf16.mxu0 0
    %1643 = vmatpush1.bf16.msra.mxu0 %v1640
    %1644 = vmatprep.subr.bf16.mxu0 0
    %1645 = vmatpush1.bf16.msra.mxu0 0
    %1646 = vmatprep.subr.bf16.mxu0 0
    %1647 = vmatpush1.bf16.msra.mxu0 0
    %1648 = vmatprep.subr.bf16.mxu0 0
    %1649 = vmatpush1.bf16.msra.mxu0 0
    %1650 = vmatprep.subr.bf16.mxu0 0
    %1651 = vmatpush1.bf16.msra.mxu0 0
    %1652 = vmatprep.subr.bf16.mxu0 0
    %1653 = vmatpush1.bf16.msra.mxu0 0
    %1654 = vmatprep.subr.bf16.mxu0 0
    %1655 = vmatpush1.bf16.msra.mxu0 0
    %1656 = vmatprep.subr.bf16.mxu0 0
    %1657 = vmatpush1.bf16.msra.mxu0 0
    %1658 = vmatprep.subr.bf16.mxu0 0
    %1659 = vmatpush1.bf16.msra.mxu0 0
    %1660 = vmatprep.subr.bf16.mxu0 0
    %1661 = vmatpush1.bf16.msra.mxu0 0
    %1662 = vmatprep.subr.bf16.mxu0 0
    %1663 = vmatpush1.bf16.msra.mxu0 0
    %1664 = vmatprep.subr.bf16.mxu0 0
    %1665 = vmatpush1.bf16.msra.mxu0 0
    %1666 = vmatprep.subr.bf16.mxu0 0
    %1667 = vmatpush1.bf16.msra.mxu0 0
    %1668 = vmatprep.subr.bf16.mxu0 0
    %1669 = vmatpush1.bf16.msra.mxu0 0
    %1670 = vmatprep.subr.bf16.mxu0 0
    %1671 = vmatpush1.bf16.msra.mxu0 0
    %1672 = vmatprep.subr.bf16.mxu0 0
    %1673 = vmatpush1.bf16.msra.mxu0 0
    %1674 = vmatprep.mubr.bf16.mxu0 0
    %1675 = vmatmul.mubr.bf16.gmra.mrb[0].mxu0 %v1637
    %v1676 = vpop.f32.mrb[0].mxu0
    %v1677 = vadd.f32 0.0, %v1676
    %v1678 = vpop.f32.mrb[0].mxu0
    %v1679 = vpop.f32.mrb[0].mxu0
    %v1680 = vpop.f32.mrb[0].mxu0
    %1681 = vdwg.mxu0
    %v1682 = vpack.c.bf16 %v1677, %v1677
    %1683 = vrot.lane.b32.xlu0 %v1573, 96
    %v1684 = vpop.permute.xlu0 %1683
    %1685 = vrot.lane.b32.xlu0 %v1573, 32
    %v1686 = vpop.permute.xlu0 %1685
    %v1688 = vsel %vm279, %v1684, 0
    %v1691 = vsel %vm279, %v1686, 0
    %1693 = vmatprep.subr.bf16.mxu0 0
    %1694 = vmatpush1.bf16.xpose.msra.mxu0 %v1691
    %1695 = vmatprep.subr.bf16.mxu0 0
    %1696 = vmatpush1.bf16.xpose.msra.mxu0 0
    %1697 = vmatprep.subr.bf16.mxu0 0
    %1698 = vmatpush1.bf16.xpose.msra.mxu0 0
    %1699 = vmatprep.subr.bf16.mxu0 0
    %1700 = vmatpush1.bf16.xpose.msra.mxu0 0
    %1701 = vmatprep.subr.bf16.mxu0 0
    %1702 = vmatpush1.bf16.xpose.msra.mxu0 0
    %1703 = vmatprep.subr.bf16.mxu0 0
    %1704 = vmatpush1.bf16.xpose.msra.mxu0 0
    %1705 = vmatprep.subr.bf16.mxu0 0
    %1706 = vmatpush1.bf16.xpose.msra.mxu0 0
    %1707 = vmatprep.subr.bf16.mxu0 0
    %1708 = vmatpush1.bf16.xpose.msra.mxu0 0
    %1709 = vmatprep.subr.bf16.mxu0 0
    %1710 = vmatpush1.bf16.xpose.msra.mxu0 0
    %1711 = vmatprep.subr.bf16.mxu0 0
    %1712 = vmatpush1.bf16.xpose.msra.mxu0 0
    %1713 = vmatprep.subr.bf16.mxu0 0
    %1714 = vmatpush1.bf16.xpose.msra.mxu0 0
    %1715 = vmatprep.subr.bf16.mxu0 0
    %1716 = vmatpush1.bf16.xpose.msra.mxu0 0
    %1717 = vmatprep.subr.bf16.mxu0 0
    %1718 = vmatpush1.bf16.xpose.msra.mxu0 0
    %1719 = vmatprep.subr.bf16.mxu0 0
    %1720 = vmatpush1.bf16.xpose.msra.mxu0 0
    %1721 = vmatprep.subr.bf16.mxu0 0
    %1722 = vmatpush1.bf16.xpose.msra.mxu0 0
    %1723 = vmatprep.subr.bf16.mxu0 0
    %1724 = vmatpush1.bf16.xpose.msra.mxu0 0
    %1725 = vmatprep.mubr.bf16.mxu0 0
    %1726 = vmatmul.mubr.bf16.gmra.mrb[0].mxu0 %v1688
    %v1727 = vpop.f32.mrb[0].mxu0
    %v1728 = vadd.f32 %v154, %v1727
    %v1729 = vpop.f32.mrb[0].mxu0
    %v1730 = vpop.f32.mrb[0].mxu0
    %v1731 = vpop.f32.mrb[0].mxu0
    %1732 = vdwg.mxu0
    %v1733 = vsel %vm102, %v1728, -inf
    %1734 = vmax.xlane.f32.xlu0 %v1733
    %v1735 = vpop.xlane.xlu0 %1734
    %v1736 = vsub.f32 %v1728, %v1735
    %v1737 = vmul.f32 %v1736, 1.442695
    %v1738 = vpow.pop %v1737
    %v1739 = vsel %vm102, %v1738, 0.0
    %1740 = vadd.xlane.f32.xlu0 %v1739
    %v1741 = vpop.xlane.xlu0 %1740
    %v1742 = vrcp.pop %v1741
    %v1743 = vmul.f32 %v1738, %v1742
    %v1744 = vpack.c.bf16 %v1743, %v1743
    %1746 = vrot.lane.b32.xlu0 %v1574, 96
    %v1747 = vpop.permute.xlu0 %1746
    %v1749 = vsel %vm102, %v1744, 0
    %v1752 = vsel %vm106, %v1747, 0
    %1754 = vmatprep.subr.bf16.mxu0 0
    %1755 = vmatpush1.bf16.msra.mxu0 %v1752
    %1756 = vmatprep.subr.bf16.mxu0 0
    %1757 = vmatpush1.bf16.msra.mxu0 0
    %1758 = vmatprep.subr.bf16.mxu0 0
    %1759 = vmatpush1.bf16.msra.mxu0 0
    %1760 = vmatprep.subr.bf16.mxu0 0
    %1761 = vmatpush1.bf16.msra.mxu0 0
    %1762 = vmatprep.subr.bf16.mxu0 0
    %1763 = vmatpush1.bf16.msra.mxu0 0
    %1764 = vmatprep.subr.bf16.mxu0 0
    %1765 = vmatpush1.bf16.msra.mxu0 0
    %1766 = vmatprep.subr.bf16.mxu0 0
    %1767 = vmatpush1.bf16.msra.mxu0 0
    %1768 = vmatprep.subr.bf16.mxu0 0
    %1769 = vmatpush1.bf16.msra.mxu0 0
    %1770 = vmatprep.subr.bf16.mxu0 0
    %1771 = vmatpush1.bf16.msra.mxu0 0
    %1772 = vmatprep.subr.bf16.mxu0 0
    %1773 = vmatpush1.bf16.msra.mxu0 0
    %1774 = vmatprep.subr.bf16.mxu0 0
    %1775 = vmatpush1.bf16.msra.mxu0 0
    %1776 = vmatprep.subr.bf16.mxu0 0
    %1777 = vmatpush1.bf16.msra.mxu0 0
    %1778 = vmatprep.subr.bf16.mxu0 0
    %1779 = vmatpush1.bf16.msra.mxu0 0
    %1780 = vmatprep.subr.bf16.mxu0 0
    %1781 = vmatpush1.bf16.msra.mxu0 0
    %1782 = vmatprep.subr.bf16.mxu0 0
    %1783 = vmatpush1.bf16.msra.mxu0 0
    %1784 = vmatprep.subr.bf16.mxu0 0
    %1785 = vmatpush1.bf16.msra.mxu0 0
    %1786 = vmatprep.mubr.bf16.mxu0 0
    %1787 = vmatmul.mubr.bf16.gmra.mrb[0].mxu0 %v1749
    %v1788 = vpop.f32.mrb[0].mxu0
    %v1789 = vadd.f32 0.0, %v1788
    %v1790 = vpop.f32.mrb[0].mxu0
    %v1791 = vpop.f32.mrb[0].mxu0
    %v1792 = vpop.f32.mrb[0].mxu0
    %1793 = vdwg.mxu0
    %v1794 = vpack.c.bf16 %v1789, %v1789
    %v1799 = vunpack.c.l.b16 %v1473
    %v1800 = vunpack.c.l.b16 %v1475
    %v1801 = vunpack.c.l.b16 %v1477
    %v1802 = vunpack.c.l.b16 %v1479
    %v1803 = vpack.c.b16 %v1800, %v1799
    %v1804 = vpack.c.b16 %v1802, %v1801
    %1805 = vrot.lane.b32.xlu0 %v1803, 64
    %v1806 = vpop.permute.xlu0 %1805
    %1807 = vrot.lane.b32.xlu0 %v1804, 64
    %v1808 = vpop.permute.xlu0 %1807
    %v1812 = vsel %vm279, %v1794, 0
    %1814 = vmatprep.subr.bf16.mxu0 0
    %1815 = vmatpush1.bf16.msra.mxu0 %v1806
    %1816 = vmatprep.subr.bf16.mxu0 0
    %1817 = vmatpush1.bf16.msra.mxu0 %v1808
    %1818 = vmatprep.subr.bf16.mxu0 0
    %1819 = vmatpush1.bf16.msra.mxu0 0
    %1820 = vmatprep.subr.bf16.mxu0 0
    %1821 = vmatpush1.bf16.msra.mxu0 0
    %1822 = vmatprep.subr.bf16.mxu0 0
    %1823 = vmatpush1.bf16.msra.mxu0 0
    %1824 = vmatprep.subr.bf16.mxu0 0
    %1825 = vmatpush1.bf16.msra.mxu0 0
    %1826 = vmatprep.subr.bf16.mxu0 0
    %1827 = vmatpush1.bf16.msra.mxu0 0
    %1828 = vmatprep.subr.bf16.mxu0 0
    %1829 = vmatpush1.bf16.msra.mxu0 0
    %1830 = vmatprep.subr.bf16.mxu0 0
    %1831 = vmatpush1.bf16.msra.mxu0 0
    %1832 = vmatprep.subr.bf16.mxu0 0
    %1833 = vmatpush1.bf16.msra.mxu0 0
    %1834 = vmatprep.subr.bf16.mxu0 0
    %1835 = vmatpush1.bf16.msra.mxu0 0
    %1836 = vmatprep.subr.bf16.mxu0 0
    %1837 = vmatpush1.bf16.msra.mxu0 0
    %1838 = vmatprep.subr.bf16.mxu0 0
    %1839 = vmatpush1.bf16.msra.mxu0 0
    %1840 = vmatprep.subr.bf16.mxu0 0
    %1841 = vmatpush1.bf16.msra.mxu0 0
    %1842 = vmatprep.subr.bf16.mxu0 0
    %1843 = vmatpush1.bf16.msra.mxu0 0
    %1844 = vmatprep.subr.bf16.mxu0 0
    %1845 = vmatpush1.bf16.msra.mxu0 0
    %1846 = vmatprep.mubr.bf16.mxu0 0
    %1847 = vmatmul.mubr.bf16.gmra.mrb[0].mxu0 %v1812
    %v1848 = vpop.f32.mrb[0].mxu0
    %v1849 = vadd.f32 0.0, %v1848
    %v1850 = vpop.f32.mrb[0].mxu0
    %v1851 = vpop.f32.mrb[0].mxu0
    %v1852 = vpop.f32.mrb[0].mxu0
    %1853 = vdwg.mxu0
    %v1858 = vunpack.c.l.b16 %v1465
    %v1859 = vunpack.c.l.b16 %v1467
    %v1860 = vunpack.c.l.b16 %v1469
    %v1861 = vunpack.c.l.b16 %v1471
    %v1862 = vpack.c.b16 %v1859, %v1858
    %v1863 = vpack.c.b16 %v1861, %v1860
    %1864 = vrot.lane.b32.xlu0 %v1862, 64
    %v1865 = vpop.permute.xlu0 %1864
    %1866 = vrot.lane.b32.xlu0 %v1863, 64
    %v1867 = vpop.permute.xlu0 %1866
    %v1871 = vsel %vm279, %v1682, 0
    %1873 = vmatprep.subr.bf16.mxu0 0
    %1874 = vmatpush1.bf16.msra.mxu0 %v1865
    %1875 = vmatprep.subr.bf16.mxu0 0
    %1876 = vmatpush1.bf16.msra.mxu0 %v1867
    %1877 = vmatprep.subr.bf16.mxu0 0
    %1878 = vmatpush1.bf16.msra.mxu0 0
    %1879 = vmatprep.subr.bf16.mxu0 0
    %1880 = vmatpush1.bf16.msra.mxu0 0
    %1881 = vmatprep.subr.bf16.mxu0 0
    %1882 = vmatpush1.bf16.msra.mxu0 0
    %1883 = vmatprep.subr.bf16.mxu0 0
    %1884 = vmatpush1.bf16.msra.mxu0 0
    %1885 = vmatprep.subr.bf16.mxu0 0
    %1886 = vmatpush1.bf16.msra.mxu0 0
    %1887 = vmatprep.subr.bf16.mxu0 0
    %1888 = vmatpush1.bf16.msra.mxu0 0
    %1889 = vmatprep.subr.bf16.mxu0 0
    %1890 = vmatpush1.bf16.msra.mxu0 0
    %1891 = vmatprep.subr.bf16.mxu0 0
    %1892 = vmatpush1.bf16.msra.mxu0 0
    %1893 = vmatprep.subr.bf16.mxu0 0
    %1894 = vmatpush1.bf16.msra.mxu0 0
    %1895 = vmatprep.subr.bf16.mxu0 0
    %1896 = vmatpush1.bf16.msra.mxu0 0
    %1897 = vmatprep.subr.bf16.mxu0 0
    %1898 = vmatpush1.bf16.msra.mxu0 0
    %1899 = vmatprep.subr.bf16.mxu0 0
    %1900 = vmatpush1.bf16.msra.mxu0 0
    %1901 = vmatprep.subr.bf16.mxu0 0
    %1902 = vmatpush1.bf16.msra.mxu0 0
    %1903 = vmatprep.subr.bf16.mxu0 0
    %1904 = vmatpush1.bf16.msra.mxu0 0
    %1905 = vmatprep.mubr.bf16.mxu0 0
    %1906 = vmatmul.mubr.bf16.gmra.mrb[0].mxu0 %v1871
    %v1907 = vpop.f32.mrb[0].mxu0
    %v1908 = vadd.f32 %v1849, %v1907
    %v1909 = vpop.f32.mrb[0].mxu0
    %v1910 = vpop.f32.mrb[0].mxu0
    %v1911 = vpop.f32.mrb[0].mxu0
    %1912 = vdwg.mxu0
    %v1913 = vadd.f32 %v1908, %v1460
    %v1914 = vsel %vm229, %v1913, 0.0
    %1915 = vadd.xlane.f32.xlu0 %v1914
    %v1916 = vpop.xlane.xlu0 %1915
    %v1917 = vmul.f32 %v1916, %v619
    %v1918 = vmul.f32 %v1913, %v1913
    %v1919 = vsel %vm229, %v1918, 0.0
    %1920 = vadd.xlane.f32.xlu0 %v1919
    %v1921 = vpop.xlane.xlu0 %1920
    %v1922 = vmul.f32 %v1921, %v619
    %v1923 = vmul.f32 %v1917, %v1917
    %v1924 = vsub.f32 %v1922, %v1923
    %v1925 = vmax.f32 %v1924, 0.0
    %v1926 = vsub.f32 %v1913, %v1917
    %v1927 = vadd.f32 %v1925, 1e-06
    %v1928 = vrsqrt.pop %v1927
    %v1929 = vmul.f32 %v1926, %v1928
    %v1930 = vlaneseq
    %v1931 = vshrl.u32 %v1930, 7
    %v1932 = vsub.s32 2, %v1931
    %v1933 = vrot.slane %v1462, %v1932
    %v1934 = vmul.f32 %v1929, %v1933
    %v1935 = vlaneseq
    %v1936 = vshrl.u32 %v1935, 7
    %v1937 = vsub.s32 3, %v1936
    %v1938 = vrot.slane %v1462, %v1937
    %v1939 = vadd.f32 %v1934, %v1938
    %v1940 = vpack.c.bf16 %v1939, %v1939
    %v1941 = vlaneseq
    %v1942 = vshrl.u32 %v1941, 7
    %v1943 = vsub.s32 0, %v1942
    %v1944 = vrot.slane %v1462, %v1943
    %1945 = vrot.lane.b32.xlu0 %v1514, 64
    %v1946 = vpop.permute.xlu0 %1945
    %1947 = vrot.lane.b32.xlu0 %v1516, 64
    %v1948 = vpop.permute.xlu0 %1947
    %1949 = vrot.lane.b32.xlu0 %v1518, 64
    %v1950 = vpop.permute.xlu0 %1949
    %1951 = vrot.lane.b32.xlu0 %v1520, 64
    %v1952 = vpop.permute.xlu0 %1951
    %v1953 = vsel %vm656, %v1946, %v1865
    %v1954 = vsel %vm656, %v1948, %v1867
    %v1955 = vsel %vm656, %v1950, %v1806
    %v1956 = vsel %vm656, %v1952, %v1808
    %v1962 = vsel %vm229, %v1940, 0
    %1964 = vmatprep.subr.bf16.mxu0 0
    %1965 = vmatpush1.bf16.msra.mxu0 %v1953
    %1966 = vmatprep.subr.bf16.mxu0 0
    %1967 = vmatpush1.bf16.msra.mxu0 %v1954
    %1968 = vmatprep.subr.bf16.mxu0 0
    %1969 = vmatpush1.bf16.msra.mxu0 %v1955
    %1970 = vmatprep.subr.bf16.mxu0 0
    %1971 = vmatpush1.bf16.msra.mxu0 %v1956
    %1972 = vmatprep.subr.bf16.mxu0 0
    %1973 = vmatpush1.bf16.msra.mxu0 0
    %1974 = vmatprep.subr.bf16.mxu0 0
    %1975 = vmatpush1.bf16.msra.mxu0 0
    %1976 = vmatprep.subr.bf16.mxu0 0
    %1977 = vmatpush1.bf16.msra.mxu0 0
    %1978 = vmatprep.subr.bf16.mxu0 0
    %1979 = vmatpush1.bf16.msra.mxu0 0
    %1980 = vmatprep.subr.bf16.mxu0 0
    %1981 = vmatpush1.bf16.msra.mxu0 0
    %1982 = vmatprep.subr.bf16.mxu0 0
    %1983 = vmatpush1.bf16.msra.mxu0 0
    %1984 = vmatprep.subr.bf16.mxu0 0
    %1985 = vmatpush1.bf16.msra.mxu0 0
    %1986 = vmatprep.subr.bf16.mxu0 0
    %1987 = vmatpush1.bf16.msra.mxu0 0
    %1988 = vmatprep.subr.bf16.mxu0 0
    %1989 = vmatpush1.bf16.msra.mxu0 0
    %1990 = vmatprep.subr.bf16.mxu0 0
    %1991 = vmatpush1.bf16.msra.mxu0 0
    %1992 = vmatprep.subr.bf16.mxu0 0
    %1993 = vmatpush1.bf16.msra.mxu0 0
    %1994 = vmatprep.subr.bf16.mxu0 0
    %1995 = vmatpush1.bf16.msra.mxu0 0
    %1996 = vmatprep.mubr.bf16.mxu0 0
    %1997 = vmatmul.mubr.bf16.gmra.mrb[0].mxu0 %v1962
    %v1998 = vpop.f32.mrb[0].mxu0
    %v1999 = vadd.f32 %v1944, %v1998
    %v2000 = vpop.f32.mrb[0].mxu0
    %v2001 = vpop.f32.mrb[0].mxu0
    %v2002 = vpop.f32.mrb[0].mxu0
    %2003 = vdwg.mxu0
    %v2004 = vmax.f32 %v1999, 0.0
    %v2005 = vpack.c.bf16 %v2004, %v2004
    %v2006 = vlaneseq
    %v2007 = vshrl.u32 %v2006, 7
    %v2008 = vsub.s32 1, %v2007
    %v2009 = vrot.slane %v1462, %v2008
    %v2026 = vunpack.c.l.b16 %v1480
    %v2027 = vunpack.c.l.b16 %v1481
    %v2028 = vunpack.c.l.b16 %v1482
    %v2029 = vunpack.c.l.b16 %v1483
    %v2030 = vunpack.c.l.b16 %v1484
    %v2031 = vunpack.c.l.b16 %v1485
    %v2032 = vunpack.c.l.b16 %v1486
    %v2033 = vunpack.c.l.b16 %v1487
    %v2034 = vunpack.c.l.b16 %v88
    %v2035 = vunpack.c.l.b16 %v89
    %v2036 = vunpack.c.l.b16 %v90
    %v2037 = vunpack.c.l.b16 %v91
    %v2038 = vunpack.c.l.b16 %v92
    %v2039 = vunpack.c.l.b16 %v93
    %v2040 = vunpack.c.l.b16 %v94
    %v2041 = vunpack.c.l.b16 %v95
    %v2042 = vpack.c.b16 %v2027, %v2026
    %v2043 = vpack.c.b16 %v2029, %v2028
    %v2044 = vpack.c.b16 %v2031, %v2030
    %v2045 = vpack.c.b16 %v2033, %v2032
    %v2046 = vpack.c.b16 %v2035, %v2034
    %v2047 = vpack.c.b16 %v2037, %v2036
    %v2048 = vpack.c.b16 %v2039, %v2038
    %v2049 = vpack.c.b16 %v2041, %v2040
    %2058 = vmatprep.subr.bf16.mxu0 0
    %2059 = vmatpush1.bf16.msra.mxu0 %v2042
    %2060 = vmatprep.subr.bf16.mxu0 0
    %2061 = vmatpush1.bf16.msra.mxu0 %v2043
    %2062 = vmatprep.subr.bf16.mxu0 0
    %2063 = vmatpush1.bf16.msra.mxu0 %v2044
    %2064 = vmatprep.subr.bf16.mxu0 0
    %2065 = vmatpush1.bf16.msra.mxu0 %v2045
    %2066 = vmatprep.subr.bf16.mxu0 0
    %2067 = vmatpush1.bf16.msra.mxu0 %v2046
    %2068 = vmatprep.subr.bf16.mxu0 0
    %2069 = vmatpush1.bf16.msra.mxu0 %v2047
    %2070 = vmatprep.subr.bf16.mxu0 0
    %2071 = vmatpush1.bf16.msra.mxu0 %v2048
    %2072 = vmatprep.subr.bf16.mxu0 0
    %2073 = vmatpush1.bf16.msra.mxu0 %v2049
    %2074 = vmatprep.subr.bf16.mxu0 0
    %2075 = vmatpush1.bf16.msra.mxu0 0
    %2076 = vmatprep.subr.bf16.mxu0 0
    %2077 = vmatpush1.bf16.msra.mxu0 0
    %2078 = vmatprep.subr.bf16.mxu0 0
    %2079 = vmatpush1.bf16.msra.mxu0 0
    %2080 = vmatprep.subr.bf16.mxu0 0
    %2081 = vmatpush1.bf16.msra.mxu0 0
    %2082 = vmatprep.subr.bf16.mxu0 0
    %2083 = vmatpush1.bf16.msra.mxu0 0
    %2084 = vmatprep.subr.bf16.mxu0 0
    %2085 = vmatpush1.bf16.msra.mxu0 0
    %2086 = vmatprep.subr.bf16.mxu0 0
    %2087 = vmatpush1.bf16.msra.mxu0 0
    %2088 = vmatprep.subr.bf16.mxu0 0
    %2089 = vmatpush1.bf16.msra.mxu0 0
    %2090 = vmatprep.mubr.bf16.mxu0 0
    %2091 = vmatmul.mubr.bf16.gmra.mrb[0].mxu0 %v2005
    %v2092 = vpop.f32.mrb[0].mxu0
    %v2093 = vadd.f32 %v2009, %v2092
    %v2094 = vpop.f32.mrb[0].mxu0
    %v2095 = vpop.f32.mrb[0].mxu0
    %v2096 = vpop.f32.mrb[0].mxu0
    %2097 = vdwg.mxu0
    %v2098 = vadd.f32 %v2093, %v1939
    %v2099 = vsel %vm229, %v2098, 0.0
    %2100 = vadd.xlane.f32.xlu0 %v2099
    %v2101 = vpop.xlane.xlu0 %2100
    %v2102 = vmul.f32 %v2101, %v619
    %v2103 = vmul.f32 %v2098, %v2098
    %v2104 = vsel %vm229, %v2103, 0.0
    %2105 = vadd.xlane.f32.xlu0 %v2104
    %v2106 = vpop.xlane.xlu0 %2105
    %v2107 = vmul.f32 %v2106, %v619
    %v2108 = vmul.f32 %v2102, %v2102
    %v2109 = vsub.f32 %v2107, %v2108
    %v2110 = vmax.f32 %v2109, 0.0
    %v2111 = vsub.f32 %v2098, %v2102
    %v2112 = vadd.f32 %v2110, 1e-06
    %v2113 = vrsqrt.pop %v2112
    %v2114 = vmul.f32 %v2111, %v2113
    %v2115 = vlaneseq
    %v2116 = vshrl.u32 %v2115, 7
    %v2117 = vsub.s32 4, %v2116
    %v2118 = vrot.slane %v1462, %v2117
    %v2119 = vmul.f32 %v2114, %v2118
    %v2120 = vlaneseq
    %v2121 = vshrl.u32 %v2120, 7
    %v2122 = vsub.s32 5, %v2121
    %v2123 = vrot.slane %v1462, %v2122
    %v2124 = vadd.f32 %v2119, %v2123
    %v2125 = vmax.f32 %v2124, 0.0
    %v2126 = vpack.c.bf16 %v2125, %v2125
    %v2135 = vunpack.c.l.b16 %v80
    %v2136 = vunpack.c.l.b16 %v81
    %v2137 = vunpack.c.l.b16 %v82
    %v2138 = vunpack.c.l.b16 %v83
    %v2139 = vunpack.c.l.b16 %v84
    %v2140 = vunpack.c.l.b16 %v85
    %v2141 = vunpack.c.l.b16 %v86
    %v2142 = vunpack.c.l.b16 %v87
    %v2143 = vpack.c.b16 %v2136, %v2135
    %v2144 = vpack.c.b16 %v2138, %v2137
    %v2145 = vpack.c.b16 %v2140, %v2139
    %v2146 = vpack.c.b16 %v2142, %v2141
    %2147 = vrot.lane.b32.xlu0 %v2143, 64
    %v2148 = vpop.permute.xlu0 %2147
    %2149 = vrot.lane.b32.xlu0 %v2144, 64
    %v2150 = vpop.permute.xlu0 %2149
    %2151 = vrot.lane.b32.xlu0 %v2145, 64
    %v2152 = vpop.permute.xlu0 %2151
    %2153 = vrot.lane.b32.xlu0 %v2146, 64
    %v2154 = vpop.permute.xlu0 %2153
    %v2160 = vsel %vm229, %v2126, 0
    %2162 = vmatprep.subr.bf16.mxu0 0
    %2163 = vmatpush1.bf16.msra.mxu0 %v2148
    %2164 = vmatprep.subr.bf16.mxu0 0
    %2165 = vmatpush1.bf16.msra.mxu0 %v2150
    %2166 = vmatprep.subr.bf16.mxu0 0
    %2167 = vmatpush1.bf16.msra.mxu0 %v2152
    %2168 = vmatprep.subr.bf16.mxu0 0
    %2169 = vmatpush1.bf16.msra.mxu0 %v2154
    %2170 = vmatprep.subr.bf16.mxu0 0
    %2171 = vmatpush1.bf16.msra.mxu0 0
    %2172 = vmatprep.subr.bf16.mxu0 0
    %2173 = vmatpush1.bf16.msra.mxu0 0
    %2174 = vmatprep.subr.bf16.mxu0 0
    %2175 = vmatpush1.bf16.msra.mxu0 0
    %2176 = vmatprep.subr.bf16.mxu0 0
    %2177 = vmatpush1.bf16.msra.mxu0 0
    %2178 = vmatprep.subr.bf16.mxu0 0
    %2179 = vmatpush1.bf16.msra.mxu0 0
    %2180 = vmatprep.subr.bf16.mxu0 0
    %2181 = vmatpush1.bf16.msra.mxu0 0
    %2182 = vmatprep.subr.bf16.mxu0 0
    %2183 = vmatpush1.bf16.msra.mxu0 0
    %2184 = vmatprep.subr.bf16.mxu0 0
    %2185 = vmatpush1.bf16.msra.mxu0 0
    %2186 = vmatprep.subr.bf16.mxu0 0
    %2187 = vmatpush1.bf16.msra.mxu0 0
    %2188 = vmatprep.subr.bf16.mxu0 0
    %2189 = vmatpush1.bf16.msra.mxu0 0
    %2190 = vmatprep.subr.bf16.mxu0 0
    %2191 = vmatpush1.bf16.msra.mxu0 0
    %2192 = vmatprep.subr.bf16.mxu0 0
    %2193 = vmatpush1.bf16.msra.mxu0 0
    %2194 = vmatprep.mubr.bf16.mxu0 0
    %2195 = vmatmul.mubr.bf16.gmra.mrb[0].mxu0 %v2160
    %v2196 = vpop.f32.mrb[0].mxu0
    %v2197 = vadd.f32 0.0, %v2196
    %v2198 = vpop.f32.mrb[0].mxu0
    %v2199 = vpop.f32.mrb[0].mxu0
    %v2200 = vpop.f32.mrb[0].mxu0
    %2201 = vdwg.mxu0
    %v2202 = vmax.f32 %v2197, 0.0
    %v2203 = vsel %vm153, 1, 0
    %v2204 = vcvt.s32.f32 %v2203
    %v2205 = vpack.c.bf16 %v2204, %v2204
    %v2206 = vpack.c.bf16 %v2124, %v2124
    %v2208 = vsel %vm102, %v2205, 0
    %v2211 = vsel %vm106, %v2206, 0
    %2213 = vmatprep.subr.bf16.mxu0 0
    %2214 = vmatpush1.bf16.msra.mxu0 %v2211
    %2215 = vmatprep.subr.bf16.mxu0 0
    %2216 = vmatpush1.bf16.msra.mxu0 0
    %2217 = vmatprep.subr.bf16.mxu0 0
    %2218 = vmatpush1.bf16.msra.mxu0 0
    %2219 = vmatprep.subr.bf16.mxu0 0
    %2220 = vmatpush1.bf16.msra.mxu0 0
    %2221 = vmatprep.subr.bf16.mxu0 0
    %2222 = vmatpush1.bf16.msra.mxu0 0
    %2223 = vmatprep.subr.bf16.mxu0 0
    %2224 = vmatpush1.bf16.msra.mxu0 0
    %2225 = vmatprep.subr.bf16.mxu0 0
    %2226 = vmatpush1.bf16.msra.mxu0 0
    %2227 = vmatprep.subr.bf16.mxu0 0
    %2228 = vmatpush1.bf16.msra.mxu0 0
    %2229 = vmatprep.subr.bf16.mxu0 0
    %2230 = vmatpush1.bf16.msra.mxu0 0
    %2231 = vmatprep.subr.bf16.mxu0 0
    %2232 = vmatpush1.bf16.msra.mxu0 0
    %2233 = vmatprep.subr.bf16.mxu0 0
    %2234 = vmatpush1.bf16.msra.mxu0 0
    %2235 = vmatprep.subr.bf16.mxu0 0
    %2236 = vmatpush1.bf16.msra.mxu0 0
    %2237 = vmatprep.subr.bf16.mxu0 0
    %2238 = vmatpush1.bf16.msra.mxu0 0
    %2239 = vmatprep.subr.bf16.mxu0 0
    %2240 = vmatpush1.bf16.msra.mxu0 0
    %2241 = vmatprep.subr.bf16.mxu0 0
    %2242 = vmatpush1.bf16.msra.mxu0 0
    %2243 = vmatprep.subr.bf16.mxu0 0
    %2244 = vmatpush1.bf16.msra.mxu0 0
    %2245 = vmatprep.mubr.bf16.mxu0 0
    %2246 = vmatmul.mubr.bf16.gmra.mrb[0].mxu0 %v2208
    %v2247 = vpop.f32.mrb[0].mxu0
    %v2248 = vadd.f32 0.0, %v2247
    %v2249 = vpop.f32.mrb[0].mxu0
    %v2250 = vpop.f32.mrb[0].mxu0
    %v2251 = vpop.f32.mrb[0].mxu0
    %2252 = vdwg.mxu0
    %s2253 = scvt.s32.f32 %s76
    %v2254 = vstv %s2253
    %v2255 = vrcp.pop %v2254
    %s2256 = vtos %v2255
    %v2257 = vstv %s2256
    %v2258 = vmul.f32 %v2248, %v2257
    %v2259 = vpack.c.bf16 %v2258, %v2258
    %2260 = vrot.lane.b32.xlu0 %v2046, 64
    %v2261 = vpop.permute.xlu0 %2260
    %2262 = vrot.lane.b32.xlu0 %v2047, 64
    %v2263 = vpop.permute.xlu0 %2262
    %2264 = vrot.lane.b32.xlu0 %v2048, 64
    %v2265 = vpop.permute.xlu0 %2264
    %2266 = vrot.lane.b32.xlu0 %v2049, 64
    %v2267 = vpop.permute.xlu0 %2266
    %v2273 = vrot.slane %v78, 1
    %v2276 = vsel %vm229, %v2259, 0
    %2278 = vmatprep.subr.bf16.mxu0 0
    %2279 = vmatpush1.bf16.msra.mxu0 %v2261
    %2280 = vmatprep.subr.bf16.mxu0 0
    %2281 = vmatpush1.bf16.msra.mxu0 %v2263
    %2282 = vmatprep.subr.bf16.mxu0 0
    %2283 = vmatpush1.bf16.msra.mxu0 %v2265
    %2284 = vmatprep.subr.bf16.mxu0 0
    %2285 = vmatpush1.bf16.msra.mxu0 %v2267
    %2286 = vmatprep.subr.bf16.mxu0 0
    %2287 = vmatpush1.bf16.msra.mxu0 0
    %2288 = vmatprep.subr.bf16.mxu0 0
    %2289 = vmatpush1.bf16.msra.mxu0 0
    %2290 = vmatprep.subr.bf16.mxu0 0
    %2291 = vmatpush1.bf16.msra.mxu0 0
    %2292 = vmatprep.subr.bf16.mxu0 0
    %2293 = vmatpush1.bf16.msra.mxu0 0
    %2294 = vmatprep.subr.bf16.mxu0 0
    %2295 = vmatpush1.bf16.msra.mxu0 0
    %2296 = vmatprep.subr.bf16.mxu0 0
    %2297 = vmatpush1.bf16.msra.mxu0 0
    %2298 = vmatprep.subr.bf16.mxu0 0
    %2299 = vmatpush1.bf16.msra.mxu0 0
    %2300 = vmatprep.subr.bf16.mxu0 0
    %2301 = vmatpush1.bf16.msra.mxu0 0
    %2302 = vmatprep.subr.bf16.mxu0 0
    %2303 = vmatpush1.bf16.msra.mxu0 0
    %2304 = vmatprep.subr.bf16.mxu0 0
    %2305 = vmatpush1.bf16.msra.mxu0 0
    %2306 = vmatprep.subr.bf16.mxu0 0
    %2307 = vmatpush1.bf16.msra.mxu0 0
    %2308 = vmatprep.subr.bf16.mxu0 0
    %2309 = vmatpush1.bf16.msra.mxu0 0
    %2310 = vmatprep.mubr.bf16.mxu0 0
    %2311 = vmatmul.mubr.bf16.gmra.mrb[0].mxu0 %v2276
    %v2312 = vpop.f32.mrb[0].mxu0
    %v2313 = vadd.f32 %v2273, %v2312
    %v2314 = vpop.f32.mrb[0].mxu0
    %v2315 = vpop.f32.mrb[0].mxu0
    %v2316 = vpop.f32.mrb[0].mxu0
    %2317 = vdwg.mxu0
    %v2318 = vmax.f32 %v2313, 0.0
    %v2319 = vlaneseq
    %v2320 = vshrl.u32 %v2319, 7
    %vm2321 = vcmp.eq.s32.totalorder %v2320, 0
    %v2322 = vsel %vm2321, 1, 0
    %vm2323 = vcmp.eq.s32.totalorder %v2322, 1
    %v2324 = vlaneseq
    %v2325 = vshrl.u32 %v2324, 7
    %v2326 = vsub.s32 0, %v2325
    %v2327 = vrot.slane %v2318, %v2326
    %v2328 = vsel %vm2323, %v2327, 0.0
    %2330 = vrot.lane.b32.xlu0 %v2328, 64
    %v2331 = vpop.permute.xlu0 %2330
    %v2333 = vsel %vm229, %v2202, %v2331
    %2334 = vst [vmem:[#allocation11] sm:$0xff] %v2333
    // Predicated region
    $region38: #{tpu_custom_call.1} parent=1 // pred_check
      _
    $region39: #{tpu_custom_call.1} parent=1 // pred_check_branch
      %2336 = sbr.rel (0) target = $region41
    $region40: #{tpu_custom_call.1} parent=1 // pred_region
      %s2338 = ssub.s32 128, 128
      %2339 = vsyncadd [#allocation5], %s2338
      %s2341 = sshll.u32 [#allocation11], 4
      %s2342 = int_to_ptr.vmem [resolvable:$true] %s2341
      %2344 = dma.vmem_to_hbm [thread:$0]  %s2342, 128, %s5, [#allocation5]
    $region41: #{tpu_custom_call.1} parent=1 // pred_fallthru
      _
    // Predicated region
    $region42: #{tpu_custom_call.1} parent=1 // pred_check
      _
    $region43: #{tpu_custom_call.1} parent=1 // pred_check_branch
      %2346 = sbr.rel (0) target = $region45
    $region44: #{tpu_custom_call.1} parent=1 // pred_region
      %2347 = dma.done [#allocation5], 128
    $region45: #{tpu_custom_call.1} parent=1 // pred_fallthru
      _
    %2348 = vsyncpa [#allocation4], 1
    %2349 = vsyncpa [#allocation7], 1
    %2350 = vsyncpa [#allocation10], 1
    %2351 = vsyncpa [#allocation5], 1

</llo_original>
